<compile_context>
chip_gen: v6e
topology: v6e:2x2x1
jax: 0.10.0
libtpu: 0.0.40
codegen_flags: <defaults>
</compile_context>

<pallas_src>
import functools

import jax
import jax.numpy as jnp
from jax.experimental import pallas as pl
from jax.experimental.pallas import tpu as pltpu


# ----------------------------------------------------------------------------
# helpers
# ----------------------------------------------------------------------------
def _round_up(v, m):
    return -(-v // m) * m


def _sublane(itemsize):
    # minimum sublane tile per element width
    return {4: 8, 2: 16, 1: 32}.get(itemsize, 8)


def _vmem_capacity_bytes():
    try:
        cap = getattr(pltpu.get_tpu_info(), "vmem_capacity_bytes", None)
        if cap:
            return int(cap)
    except Exception:
        pass
    return 64 * 1024 * 1024  # conservative (v7x per-TC)


def _gelu_exact(x):
    # F.gelu default (approximate='none'): x * 0.5 * (1 + erf(x / sqrt(2)))
    return x * 0.5 * (1.0 + jax.lax.erf(x * (1.0 / jnp.sqrt(2.0))))


def _dot(a, b):
    # Native-dtype MXU feed, f32 accumulation. For f32 operands force the
    # full-precision multi-pass path so we match the f32 reference.
    prec = (jax.lax.Precision.HIGHEST
            if (a.dtype == jnp.float32 and b.dtype == jnp.float32) else None)
    return jnp.dot(a, b, preferred_element_type=jnp.float32, precision=prec)


def _residual_layernorm(y, x_f32, gamma, beta, eps):
    z = y + x_f32
    mean = jnp.mean(z, axis=-1, keepdims=True)
    zc = z - mean
    var = jnp.mean(zc * zc, axis=-1, keepdims=True)
    inv = jax.lax.rsqrt(var + eps)
    return zc * inv * gamma + beta


# ----------------------------------------------------------------------------
# kernels
# ----------------------------------------------------------------------------
def _ff_resident_kernel(x_ref, w1_ref, b1_ref, w2_ref, b2_ref,
                        gamma_ref, beta_ref, o_ref, *, eps):
    """Whole FFN for one row tile; W1/W2 are VMEM-resident across the grid."""
    x = x_ref[...]
    h = _dot(x, w1_ref[...]) + b1_ref[...].astype(jnp.float32)
    h = _gelu_exact(h)
    y = _dot(h.astype(w2_ref.dtype), w2_ref[...]) + b2_ref[...].astype(jnp.float32)
    out = _residual_layernorm(y, x.astype(jnp.float32),
                              gamma_ref[...].astype(jnp.float32),
                              beta_ref[...].astype(jnp.float32), eps)
    # dropout: eval-mode identity
    o_ref[...] = out.astype(o_ref.dtype)


def _ff_tiled_kernel(x_ref, w1_ref, b1_ref, w2_ref, b2_ref,
                     gamma_ref, beta_ref, o_ref, acc_ref, *, eps):
    """d_ff-tiled path: innermost grid axis reduces over d_ff tiles."""
    j = pl.program_id(1)

    @pl.when(j == 0)
    def _init():
        acc_ref[...] = jnp.zeros_like(acc_ref)

    h = _dot(x_ref[...], w1_ref[...]) + b1_ref[...].astype(jnp.float32)
    h = _gelu_exact(h)
    acc_ref[...] += _dot(h.astype(w2_ref.dtype), w2_ref[...])

    @pl.when(j == pl.num_programs(1) - 1)
    def _finalize():
        y = acc_ref[...] + b2_ref[...].astype(jnp.float32)
        out = _residual_layernorm(y, x_ref[...].astype(jnp.float32),
                                  gamma_ref[...].astype(jnp.float32),
                                  beta_ref[...].astype(jnp.float32), eps)
        # dropout: eval-mode identity
        o_ref[...] = out.astype(o_ref.dtype)


# ----------------------------------------------------------------------------
# wrapper
# ----------------------------------------------------------------------------
def feedforward(x, w1, b1, w2, b2, gamma, beta, *, eps=1e-5,
                matmul_dtype=None, tm=None, tff=None, weights_resident=None):
    """x: (batch, seq, d_model) -> (batch, seq, d_model)."""
    batch, seq, d_model = x.shape
    d_ff = w1.shape[1]
    n = batch * seq
    out_dtype = x.dtype
    out_isz = jnp.dtype(out_dtype).itemsize

    # ---- MXU operand dtype (bf16 fast path when requested / params are bf16)
    if matmul_dtype is None:
        matmul_dtype = (w1.dtype if jnp.dtype(w1.dtype).itemsize
                        < jnp.dtype(x.dtype).itemsize else x.dtype)
    matmul_dtype = jnp.dtype(matmul_dtype)
    isz = matmul_dtype.itemsize
    sub = _sublane(isz)

    x2d = x.reshape(n, d_model).astype(matmul_dtype)
    w1c = w1.astype(matmul_dtype)
    w2c = w2.astype(matmul_dtype)

    b1_2d = b1.reshape(1, d_ff)
    b2_2d = b2.reshape(1, d_model)
    gamma_2d = gamma.reshape(1, d_model)
    beta_2d = beta.reshape(1, d_model)
    small_isz = jnp.dtype(b1.dtype).itemsize
    small_bytes = 2 * (d_ff + 3 * d_model) * small_isz

    # ---- VMEM budget (derived from the actual chip, not a fixed clamp) -----
    vmem_cap = _vmem_capacity_bytes()
    budget = int(vmem_cap * 0.7)

    # resident weights are double-buffer-allocated by Pallas (DMA'd once)
    w_bytes_res = 2 * (d_model * d_ff + d_ff * d_model) * isz

    def bytes_resident(tm_):
        return (2 * tm_ * d_model * isz        # x tiles (double-buffered)
                + 2 * tm_ * d_model * out_isz  # out tiles
                + w_bytes_res                  # W1 + W2 resident
                + 2 * tm_ * d_ff * 4           # f32 GELU intermediate slack
                + small_bytes)

    def bytes_tiled(tm_, tff_):
        return (2 * tm_ * d_model * isz
                + 2 * tm_ * d_model * out_isz
                + 2 * d_model * tff_ * isz     # W1 tiles
                + 2 * tff_ * d_model * isz     # W2 tiles
                + tm_ * d_model * 4            # f32 accumulator scratch
                + 2 * tm_ * tff_ * 4           # f32 GELU intermediate slack
                + small_bytes)

    # ---- row-tile selection -------------------------------------------------
    if tm is None:
        if n >= 1024:
            tm = 512                       # high arithmetic intensity per weight byte
        elif n >= 2 * sub:
            # keep >= 2 row tiles so both v7x TensorCores get work
            tm = min(256, _round_up(-(-n // 2), sub))
        else:
            tm = _round_up(max(n, 1), sub)
    tm = _round_up(tm, sub)

    # ---- path selection -----------------------------------------------------
    if weights_resident is None:
        weights_resident = (tff is None) and (w_bytes_res <= budget // 3)

    if weights_resident:
        while tm > sub and bytes_resident(tm) > budget:
            tm = max(sub, _round_up(tm // 2, sub))
        need = bytes_resident(tm)
    else:
        if tff is None:
            for cand in (512, 256, 128):
                if d_ff % cand == 0:
                    tff = cand
                    break
            else:
                tff = d_ff
        assert d_ff % tff == 0, "d_ff tile must divide d_ff"
        for _ in range(16):
            if bytes_tiled(tm, tff) <= budget:
                break
            if tff > 128 and tff % 2 == 0 and d_ff % (tff // 2) == 0:
                tff //= 2
            elif tm > sub:
                tm = max(sub, _round_up(tm // 2, sub))
            else:
                break
        need = bytes_tiled(tm, tff)

    n_pad = _round_up(n, tm)
    if n_pad != n:
        x2d = jnp.pad(x2d, ((0, n_pad - n), (0, 0)))
    n_row_tiles = n_pad // tm

    vmem_limit = int(min(int(vmem_cap * 0.98),
                         max(int(need * 1.25), 32 * 1024 * 1024)))

    # ---- cost estimate (own itemsizes; weights counted per streaming pass) --
    w_passes = 1 if weights_resident else n_row_tiles
    cost = pl.CostEstimate(
        flops=4 * n_pad * d_model * d_ff,          # two matmuls
        transcendentals=n_pad * d_ff,              # erf in GELU
        bytes_accessed=int(
            n_pad * d_model * isz                  # x read
            + n_pad * d_model * out_isz            # out write
            + w_passes * (w1c.size + w2c.size) * isz
            + (b1.size + b2.size + gamma.size + beta.size) * small_isz),
    )

    if weights_resident:
        kernel = functools.partial(_ff_resident_kernel, eps=eps)
        out2d = pl.pallas_call(
            kernel,
            out_shape=jax.ShapeDtypeStruct((n_pad, d_model), out_dtype),
            grid_spec=pltpu.PrefetchScalarGridSpec(
                num_scalar_prefetch=0,
                grid=(n_row_tiles,),
                in_specs=[
                    pl.BlockSpec((tm, d_model), lambda i: (i, 0)),     # x rows
                    pl.BlockSpec((d_model, d_ff), lambda i: (0, 0)),   # W1 (resident)
                    pl.BlockSpec((1, d_ff), lambda i: (0, 0)),         # b1
                    pl.BlockSpec((d_ff, d_model), lambda i: (0, 0)),   # W2 (resident)
                    pl.BlockSpec((1, d_model), lambda i: (0, 0)),      # b2
                    pl.BlockSpec((1, d_model), lambda i: (0, 0)),      # gamma
                    pl.BlockSpec((1, d_model), lambda i: (0, 0)),      # beta
                ],
                out_specs=pl.BlockSpec((tm, d_model), lambda i: (i, 0)),
            ),
            compiler_params=pltpu.CompilerParams(
                dimension_semantics=("parallel",),
                vmem_limit_bytes=vmem_limit,
            ),
            cost_estimate=cost,
        )(x2d, w1c, b1_2d, w2c, b2_2d, gamma_2d, beta_2d)
    else:
        kernel = functools.partial(_ff_tiled_kernel, eps=eps)
        out2d = pl.pallas_call(
            kernel,
            out_shape=jax.ShapeDtypeStruct((n_pad, d_model), out_dtype),
            grid_spec=pltpu.PrefetchScalarGridSpec(
                num_scalar_prefetch=0,
                # rows (parallel, megacore-shardable) x d_ff reduction (last)
                grid=(n_row_tiles, d_ff // tff),
                in_specs=[
                    pl.BlockSpec((tm, d_model), lambda i, j: (i, 0)),    # x rows
                    pl.BlockSpec((d_model, tff), lambda i, j: (0, j)),   # W1 tile
                    pl.BlockSpec((1, tff), lambda i, j: (0, j)),         # b1 tile
                    pl.BlockSpec((tff, d_model), lambda i, j: (j, 0)),   # W2 tile
                    pl.BlockSpec((1, d_model), lambda i, j: (0, 0)),     # b2
                    pl.BlockSpec((1, d_model), lambda i, j: (0, 0)),     # gamma
                    pl.BlockSpec((1, d_model), lambda i, j: (0, 0)),     # beta
                ],
                out_specs=pl.BlockSpec((tm, d_model), lambda i, j: (i, 0)),
                scratch_shapes=[pltpu.VMEM((tm, d_model), jnp.float32)],
            ),
            compiler_params=pltpu.CompilerParams(
                dimension_semantics=("parallel", "arbitrary"),
                vmem_limit_bytes=vmem_limit,
            ),
            cost_estimate=cost,
        )(x2d, w1c, b1_2d, w2c, b2_2d, gamma_2d, beta_2d)

    return out2d[:n].reshape(batch, seq, d_model)


# ----------------------------------------------------------------------------
# pure-JAX reference (matches the PyTorch module in eval mode)
# ----------------------------------------------------------------------------
def _reference(x, w1, b1, w2, b2, gamma, beta, eps=1e-5):
    xf = x.astype(jnp.float32)
    h = _gelu_exact(xf @ w1.astype(jnp.float32) + b1)
    y = h @ w2.astype(jnp.float32) + b2
    z = y + xf
    mean = jnp.mean(z, axis=-1, keepdims=True)
    var = jnp.mean((z - mean) ** 2, axis=-1, keepdims=True)
    return ((z - mean) * jax.lax.rsqrt(var + eps) * gamma + beta).astype(x.dtype)


if __name__ == "__main__":
    d_model = 128          # multiple of 128 -> lane-dense tiles / stores
    ff_factor = 4
    d_ff = d_model * ff_factor
    batch, seq = 2, 61     # n = 122 rows -> two row tiles + row-padding path

    key = jax.random.PRNGKey(0)
    kx, k1, k2, k3, k4 = jax.random.split(key, 5)

    x = jax.random.normal(kx, (batch, seq, d_model), dtype=jnp.float32)
    # Deterministic parameter init (Linear weights stored as (in, out)).
    w1 = jax.random.normal(k1, (d_model, d_ff), dtype=jnp.float32) * 0.05
    b1 = jax.random.normal(k2, (d_ff,), dtype=jnp.float32) * 0.05
    w2 = jax.random.normal(k3, (d_ff, d_model), dtype=jnp.float32) * 0.05
    b2 = jax.random.normal(k4, (d_model,), dtype=jnp.float32) * 0.05
    gamma = jnp.ones((d_model,), dtype=jnp.float32)
    beta = jnp.zeros((d_model,), dtype=jnp.float32)

    ref = _reference(x, w1, b1, w2, b2, gamma, beta)

    # 1) default: f32 exact path, resident-weights kernel (weights fit VMEM).
    out = jax.block_until_ready(feedforward(x, w1, b1, w2, b2, gamma, beta))
    assert out.shape == (batch, seq, d_model)
    assert jnp.allclose(out, ref, atol=2e-4, rtol=2e-4), "resident f32 mismatch"

    # 2) forced d_ff-tiled reduction path (accumulator scratch), still f32.
    out_t = jax.block_until_ready(
        feedforward(x, w1, b1, w2, b2, gamma, beta,
                    weights_resident=False, tff=256))
    assert jnp.allclose(out_t, ref, atol=2e-4, rtol=2e-4), "tiled f32 mismatch"

    # 3) bf16 MXU fast path (x/W1/W2 cast in wrapper); looser tolerance.
    out_bf = jax.block_until_ready(
        feedforward(x, w1, b1, w2, b2, gamma, beta, matmul_dtype=jnp.bfloat16))
    assert jnp.allclose(out_bf, ref, atol=6e-2, rtol=6e-2), "bf16 path mismatch"

    print("KERNEL_OK")
</pallas_src>

<mosaic_0001>
module attributes {stable_mosaic.version = 11 : i64} {
  func.func @_ff_resident_kernel(%arg0: i32, %arg1: memref<64x128xf32, #tpu.memory_space<vmem>>, %arg2: memref<128x512xf32, #tpu.memory_space<vmem>>, %arg3: memref<1x512xf32, #tpu.memory_space<vmem>>, %arg4: memref<512x128xf32, #tpu.memory_space<vmem>>, %arg5: memref<1x128xf32, #tpu.memory_space<vmem>>, %arg6: memref<1x128xf32, #tpu.memory_space<vmem>>, %arg7: memref<1x128xf32, #tpu.memory_space<vmem>>, %arg8: memref<64x128xf32, #tpu.memory_space<vmem>>) attributes {dimension_semantics = [#tpu.dimension_semantics<parallel>], iteration_bounds = array<i64: 2>, scalar_prefetch = 0 : i64, scratch_operands = 0 : i64, tpu.core_type = #tpu.core_type<tc>, window_params = [{transform_indices = @transform_0, window_bounds = array<i64: 64, 128>}, {pipeline_mode = #tpu.pipeline_mode<synchronous>, transform_indices = @transform_1, window_bounds = array<i64: 128, 512>}, {pipeline_mode = #tpu.pipeline_mode<synchronous>, transform_indices = @transform_2, window_bounds = array<i64: 1, 512>}, {pipeline_mode = #tpu.pipeline_mode<synchronous>, transform_indices = @transform_3, window_bounds = array<i64: 512, 128>}, {pipeline_mode = #tpu.pipeline_mode<synchronous>, transform_indices = @transform_4, window_bounds = array<i64: 1, 128>}, {pipeline_mode = #tpu.pipeline_mode<synchronous>, transform_indices = @transform_5, window_bounds = array<i64: 1, 128>}, {pipeline_mode = #tpu.pipeline_mode<synchronous>, transform_indices = @transform_6, window_bounds = array<i64: 1, 128>}, {transform_indices = @transform_7, window_bounds = array<i64: 64, 128>}]} {
    %c0 = arith.constant 0 : index
    %c0_0 = arith.constant 0 : index
    %0 = vector.load %arg1[%c0, %c0_0] : memref<64x128xf32, #tpu.memory_space<vmem>>, vector<64x128xf32>
    %c0_1 = arith.constant 0 : index
    %c0_2 = arith.constant 0 : index
    %1 = vector.load %arg2[%c0_1, %c0_2] : memref<128x512xf32, #tpu.memory_space<vmem>>, vector<128x512xf32>
    %cst = arith.constant dense<0.000000e+00> : vector<64x512xf32>
    %2 = tpu.matmul %0, %1, %cst {dimension_numbers = #tpu.dot_dimension_numbers<[1], [0], [0], [1], [0, 0, 1, 1], [], []>, precision = #tpu.contract_precision<fp32>} : vector<64x128xf32>, vector<128x512xf32>, vector<64x512xf32> -> vector<64x512xf32>
    %c0_3 = arith.constant 0 : index
    %c0_4 = arith.constant 0 : index
    %3 = vector.load %arg3[%c0_3, %c0_4] : memref<1x512xf32, #tpu.memory_space<vmem>>, vector<1x512xf32>
    %4 = vector.broadcast %3 : vector<1x512xf32> to vector<64x512xf32>
    %5 = arith.addf %2, %4 : vector<64x512xf32>
    %cst_5 = arith.constant 5.000000e-01 : f32
    %6 = vector.broadcast %cst_5 : f32 to vector<64x512xf32>
    %7 = arith.mulf %5, %6 : vector<64x512xf32>
    %cst_6 = arith.constant 2.000000e+00 : f32
    %8 = math.sqrt %cst_6 : f32
    %cst_7 = arith.constant 1.000000e+00 : f32
    %9 = arith.divf %cst_7, %8 : f32
    %10 = vector.broadcast %9 : f32 to vector<64x512xf32>
    %11 = arith.mulf %5, %10 : vector<64x512xf32>
    %12 = math.erf %11 : vector<64x512xf32>
    %cst_8 = arith.constant 1.000000e+00 : f32
    %13 = vector.broadcast %cst_8 : f32 to vector<64x512xf32>
    %14 = arith.addf %13, %12 : vector<64x512xf32>
    %15 = arith.mulf %7, %14 : vector<64x512xf32>
    %c0_9 = arith.constant 0 : index
    %c0_10 = arith.constant 0 : index
    %16 = vector.load %arg4[%c0_9, %c0_10] : memref<512x128xf32, #tpu.memory_space<vmem>>, vector<512x128xf32>
    %cst_11 = arith.constant dense<0.000000e+00> : vector<64x128xf32>
    %17 = tpu.matmul %15, %16, %cst_11 {dimension_numbers = #tpu.dot_dimension_numbers<[1], [0], [0], [1], [0, 0, 1, 1], [], []>, precision = #tpu.contract_precision<fp32>} : vector<64x512xf32>, vector<512x128xf32>, vector<64x128xf32> -> vector<64x128xf32>
    %c0_12 = arith.constant 0 : index
    %c0_13 = arith.constant 0 : index
    %18 = vector.load %arg5[%c0_12, %c0_13] : memref<1x128xf32, #tpu.memory_space<vmem>>, vector<1x128xf32>
    %19 = vector.broadcast %18 : vector<1x128xf32> to vector<64x128xf32>
    %20 = arith.addf %17, %19 : vector<64x128xf32>
    %c0_14 = arith.constant 0 : index
    %c0_15 = arith.constant 0 : index
    %21 = vector.load %arg6[%c0_14, %c0_15] : memref<1x128xf32, #tpu.memory_space<vmem>>, vector<1x128xf32>
    %c0_16 = arith.constant 0 : index
    %c0_17 = arith.constant 0 : index
    %22 = vector.load %arg7[%c0_16, %c0_17] : memref<1x128xf32, #tpu.memory_space<vmem>>, vector<1x128xf32>
    %23 = arith.addf %20, %0 : vector<64x128xf32>
    %cst_18 = arith.constant dense<0.000000e+00> : vector<64xf32>
    %24 = vector.multi_reduction <add>, %23, %cst_18 [1] : vector<64x128xf32> to vector<64xf32>
    %25 = vector.shape_cast %24 : vector<64xf32> to vector<64x1xf32>
    %cst_19 = arith.constant 1.280000e+02 : f32
    %26 = vector.broadcast %cst_19 : f32 to vector<64x1xf32>
    %27 = arith.divf %25, %26 : vector<64x1xf32>
    %28 = vector.broadcast %27 : vector<64x1xf32> to vector<64x128xf32>
    %29 = arith.subf %23, %28 : vector<64x128xf32>
    %30 = arith.mulf %29, %29 : vector<64x128xf32>
    %cst_20 = arith.constant dense<0.000000e+00> : vector<64xf32>
    %31 = vector.multi_reduction <add>, %30, %cst_20 [1] : vector<64x128xf32> to vector<64xf32>
    %32 = vector.shape_cast %31 : vector<64xf32> to vector<64x1xf32>
    %cst_21 = arith.constant 1.280000e+02 : f32
    %33 = vector.broadcast %cst_21 : f32 to vector<64x1xf32>
    %34 = arith.divf %32, %33 : vector<64x1xf32>
    %cst_22 = arith.constant 9.99999974E-6 : f32
    %35 = vector.broadcast %cst_22 : f32 to vector<64x1xf32>
    %36 = arith.addf %34, %35 : vector<64x1xf32>
    %37 = math.rsqrt %36 : vector<64x1xf32>
    %38 = vector.broadcast %37 : vector<64x1xf32> to vector<64x128xf32>
    %39 = arith.mulf %29, %38 : vector<64x128xf32>
    %40 = vector.broadcast %21 : vector<1x128xf32> to vector<64x128xf32>
    %41 = arith.mulf %39, %40 : vector<64x128xf32>
    %42 = vector.broadcast %22 : vector<1x128xf32> to vector<64x128xf32>
    %43 = arith.addf %41, %42 : vector<64x128xf32>
    %c0_23 = arith.constant 0 : index
    %c0_24 = arith.constant 0 : index
    %44 = vector.load %arg8[%c0_23, %c0_24] : memref<64x128xf32, #tpu.memory_space<vmem>>, vector<64x128xf32>
    tpu.vector_store %arg8[%c0_23, %c0_24], %43 {strides = array<i32>} : memref<64x128xf32, #tpu.memory_space<vmem>>, vector<64x128xf32>,
    return
  }
  func.func @transform_0(%arg0: i32) -> (i32, i32) {
    %c0_i32 = arith.constant 0 : i32
    %c0_i32_0 = arith.constant 0 : i32
    return %arg0, %c0_i32 : i32, i32
  }
  func.func @transform_1(%arg0: i32) -> (i32, i32) {
    %c0_i32 = arith.constant 0 : i32
    %c0_i32_0 = arith.constant 0 : i32
    %c0_i32_1 = arith.constant 0 : i32
    return %c0_i32, %c0_i32_0 : i32, i32
  }
  func.func @transform_2(%arg0: i32) -> (i32, i32) {
    %c0_i32 = arith.constant 0 : i32
    %c0_i32_0 = arith.constant 0 : i32
    %c0_i32_1 = arith.constant 0 : i32
    return %c0_i32, %c0_i32_0 : i32, i32
  }
  func.func @transform_3(%arg0: i32) -> (i32, i32) {
    %c0_i32 = arith.constant 0 : i32
    %c0_i32_0 = arith.constant 0 : i32
    %c0_i32_1 = arith.constant 0 : i32
    return %c0_i32, %c0_i32_0 : i32, i32
  }
  func.func @transform_4(%arg0: i32) -> (i32, i32) {
    %c0_i32 = arith.constant 0 : i32
    %c0_i32_0 = arith.constant 0 : i32
    %c0_i32_1 = arith.constant 0 : i32
    return %c0_i32, %c0_i32_0 : i32, i32
  }
  func.func @transform_5(%arg0: i32) -> (i32, i32) {
    %c0_i32 = arith.constant 0 : i32
    %c0_i32_0 = arith.constant 0 : i32
    %c0_i32_1 = arith.constant 0 : i32
    return %c0_i32, %c0_i32_0 : i32, i32
  }
  func.func @transform_6(%arg0: i32) -> (i32, i32) {
    %c0_i32 = arith.constant 0 : i32
    %c0_i32_0 = arith.constant 0 : i32
    %c0_i32_1 = arith.constant 0 : i32
    return %c0_i32, %c0_i32_0 : i32, i32
  }
  func.func @transform_7(%arg0: i32) -> (i32, i32) {
    %c0_i32 = arith.constant 0 : i32
    %c0_i32_0 = arith.constant 0 : i32
    return %arg0, %c0_i32 : i32, i32
  }
}

</mosaic_0001>

<llo_original>
// kernel: tpu_custom_call.1
$region0: #{tpu_custom_call.1}
  #allocation0 [shape = 'u32[]', space=smem, size = 0x4, offset = 0x4, fixed_abs, tag = 'smem constant byte address 0x4 - core index']
  #allocation1 [shape = 'u32[144,128]{1,0:T(1,128)}', space=vmem, size = 0x12000, scoped, tag = 'internal scratch']
  %s0 = inlined_call_operand.hbm [shape: f32[128,128], index: 0, kind: input, shape index: {}]
  %s1 = inlined_call_operand.hbm [shape: f32[128,512], index: 1, kind: input, shape index: {}]
  %s2 = inlined_call_operand.hbm [shape: f32[1,512], index: 2, kind: input, shape index: {}]
  %s3 = inlined_call_operand.hbm [shape: f32[512,128], index: 3, kind: input, shape index: {}]
  %s4 = inlined_call_operand.vmem [shape: f32[1,128], index: 4, kind: input, shape index: {}]
  %s5 = inlined_call_operand.vmem [shape: f32[1,128], index: 5, kind: input, shape index: {}]
  %s6 = inlined_call_operand.vmem [shape: f32[1,128], index: 6, kind: input, shape index: {}]
  %s7 = inlined_call_operand.hbm [shape: f32[128,128], index: 7, kind: output, shape index: {}]
  %s8 = sld [smem:[#allocation0]]
  $region77: #{tpu_custom_call.1} parent=0
    _
  %s10 = ssub.s32 1, %s8
  %s11 = scalar_select 0, %s10, %s8
  $region1: #{tpu_custom_call.1} parent=0
    #allocation2 [shape = 'u8[65536]{0}', space=vmem, size = 0x10000, scoped, tag = 'input window, operand 0']
    #allocation3 [shape = 's32[2]{0}', space=sflag, size = 0x8, scoped, tag = 'scoped memory for tpu_custom_call.1']
    #allocation4 [shape = 's32[2]{0}', space=sflag, size = 0x8, scoped, tag = 'scoped memory for tpu_custom_call.1']
    #allocation5 [shape = 'u8[262144]{0}', space=vmem, size = 0x40000, scoped, tag = 'input window, operand 1, single buffered']
    #allocation6 [shape = 's32[1]{0}', space=sflag, size = 0x4, scoped, tag = 'scoped memory for tpu_custom_call.1']
    #allocation7 [shape = 'u8[2048]{0}', space=vmem, size = 0x800, scoped, tag = 'input window, operand 2, single buffered']
    #allocation8 [shape = 'u8[262144]{0}', space=vmem, size = 0x40000, scoped, tag = 'input window, operand 3, single buffered']
    #allocation9 [shape = 's32[1]{0}', space=sflag, size = 0x4, scoped, tag = 'scoped memory for tpu_custom_call.1']
    #allocation10 [shape = 'u8[65536]{0}', space=vmem, size = 0x10000, scoped, tag = 'output window, operand 0']
    %12 = vsyncpa [#allocation3], 0
    %s13 = scalar_lea.sflag [#allocation3], 1
    %14 = vsyncpa %s13, 0
    %15 = vsyncpa [#allocation6], 0
    %16 = vsyncpa [#allocation9], 0
    %17 = vsyncpa [#allocation4], 0
    %s18 = scalar_lea.sflag [#allocation4], 1
    %19 = vsyncpa %s18, 0
    loop: start=0, step=1, limit=4
    $region2: #{tpu_custom_call.1} parent=1 // loop_pre_header
      _
    $region3: #{tpu_custom_call.1} parent=1 // loop_header
      %s21 = sphi 0, %s25
      %p22 = scmp.ge.s32.totalorder %s21, 4
      %s31 = sphi 0, %s33
      %s34 = sphi 0, %s31
      %s35 = sphi 0, %s34
      %s51 = sphi 0, %s35
      %s55 = sphi 0, %s55
      %s57 = sphi 0, %s55
      %s58 = sphi 0, %s57
      %s72 = sphi 0, %s58
      %s76 = sphi 0, %s76
      %s78 = sphi 0, %s76
      %s79 = sphi 0, %s78
      %s93 = sphi 0, %s79
      %s97 = sphi 0, %s97
      %s99 = sphi 0, %s97
      %s100 = sphi 0, %s99
      %s114 = sphi 0, %s100
      %s118 = sphi 0, %s118
      %s120 = sphi 0, %s118
      %s121 = sphi 0, %s120
      %s135 = sphi 0, %s121
      %s139 = sphi 0, %s139
      %s141 = sphi 0, %s139
      %s142 = sphi 0, %s141
      %s156 = sphi 0, %s142
      %s160 = sphi 0, %s160
      %s162 = sphi 0, %s160
      %s163 = sphi 0, %s162
      %s177 = sphi 0, %s163
      %s183 = sphi 0, %s185
      %s186 = sphi 0, %s183
      %s187 = sphi 0, %s186
      %s203 = sphi 0, %s187
    $region4: #{tpu_custom_call.1} parent=1 // loop_header_branch
      %24 = sbr.rel (%p22) target = $region8
    $region5: #{tpu_custom_call.1} parent=1 // loop_body
      %s26 = ssub.s32 %s21, 1
      %s27 = ssub.s32 %s21, 2
      %s28 = sadd.s32 %s21, 1
      %s29 = ssub.s32 %s21, %s28
      %p30 = scmp.eq.s32.totalorder %s29, 0
      %s32 = sadd.s32 %s31, 1
      %s33 = scalar_select %p30, %s31, %s32
      %p36 = pneg %p30
      %p37 = scmp.eq.s32.totalorder %s21, 1
      %p38 = por %p36, %p37
      %p39 = scmp.ne.s32.totalorder %s31, %s34
      %p40 = scmp.eq.s32.totalorder %s21, 0
      %p41 = por %p39, %p40
      %p42 = scmp.ne.s32.totalorder %s31, %s34
      %p43 = scmp.eq.s32.totalorder %s26, 1
      %p44 = por %p42, %p43
      %p45 = scmp.ne.s32.totalorder %s34, %s35
      %p46 = scmp.eq.s32.totalorder %s26, 0
      %p47 = por %p45, %p46
      %p48 = scmp.ne.s32.totalorder %s34, %s35
      %p49 = scmp.eq.s32.totalorder %s27, 1
      %p50 = por %p48, %p49
      %p52 = scmp.ne.s32.totalorder %s35, %s51
      %p53 = scmp.eq.s32.totalorder %s27, 0
      %p54 = por %p52, %p53
      %s56 = sadd.s32 %s55, 1
      %p59 = scmp.eq.s32.totalorder %s21, 1
      %p60 = scmp.ne.s32.totalorder %s55, %s57
      %p61 = scmp.eq.s32.totalorder %s21, 0
      %p62 = por %p60, %p61
      %p63 = scmp.ne.s32.totalorder %s55, %s57
      %p64 = scmp.eq.s32.totalorder %s26, 1
      %p65 = por %p63, %p64
      %p66 = scmp.ne.s32.totalorder %s57, %s58
      %p67 = scmp.eq.s32.totalorder %s26, 0
      %p68 = por %p66, %p67
      %p69 = scmp.ne.s32.totalorder %s57, %s58
      %p70 = scmp.eq.s32.totalorder %s27, 1
      %p71 = por %p69, %p70
      %p73 = scmp.ne.s32.totalorder %s58, %s72
      %p74 = scmp.eq.s32.totalorder %s27, 0
      %p75 = por %p73, %p74
      %s77 = sadd.s32 %s76, 1
      %p80 = scmp.eq.s32.totalorder %s21, 1
      %p81 = scmp.ne.s32.totalorder %s76, %s78
      %p82 = scmp.eq.s32.totalorder %s21, 0
      %p83 = por %p81, %p82
      %p84 = scmp.ne.s32.totalorder %s76, %s78
      %p85 = scmp.eq.s32.totalorder %s26, 1
      %p86 = por %p84, %p85
      %p87 = scmp.ne.s32.totalorder %s78, %s79
      %p88 = scmp.eq.s32.totalorder %s26, 0
      %p89 = por %p87, %p88
      %p90 = scmp.ne.s32.totalorder %s78, %s79
      %p91 = scmp.eq.s32.totalorder %s27, 1
      %p92 = por %p90, %p91
      %p94 = scmp.ne.s32.totalorder %s79, %s93
      %p95 = scmp.eq.s32.totalorder %s27, 0
      %p96 = por %p94, %p95
      %s98 = sadd.s32 %s97, 1
      %p101 = scmp.eq.s32.totalorder %s21, 1
      %p102 = scmp.ne.s32.totalorder %s97, %s99
      %p103 = scmp.eq.s32.totalorder %s21, 0
      %p104 = por %p102, %p103
      %p105 = scmp.ne.s32.totalorder %s97, %s99
      %p106 = scmp.eq.s32.totalorder %s26, 1
      %p107 = por %p105, %p106
      %p108 = scmp.ne.s32.totalorder %s99, %s100
      %p109 = scmp.eq.s32.totalorder %s26, 0
      %p110 = por %p108, %p109
      %p111 = scmp.ne.s32.totalorder %s99, %s100
      %p112 = scmp.eq.s32.totalorder %s27, 1
      %p113 = por %p111, %p112
      %p115 = scmp.ne.s32.totalorder %s100, %s114
      %p116 = scmp.eq.s32.totalorder %s27, 0
      %p117 = por %p115, %p116
      %s119 = sadd.s32 %s118, 1
      %p122 = scmp.eq.s32.totalorder %s21, 1
      %p123 = scmp.ne.s32.totalorder %s118, %s120
      %p124 = scmp.eq.s32.totalorder %s21, 0
      %p125 = por %p123, %p124
      %p126 = scmp.ne.s32.totalorder %s118, %s120
      %p127 = scmp.eq.s32.totalorder %s26, 1
      %p128 = por %p126, %p127
      %p129 = scmp.ne.s32.totalorder %s120, %s121
      %p130 = scmp.eq.s32.totalorder %s26, 0
      %p131 = por %p129, %p130
      %p132 = scmp.ne.s32.totalorder %s120, %s121
      %p133 = scmp.eq.s32.totalorder %s27, 1
      %p134 = por %p132, %p133
      %p136 = scmp.ne.s32.totalorder %s121, %s135
      %p137 = scmp.eq.s32.totalorder %s27, 0
      %p138 = por %p136, %p137
      %s140 = sadd.s32 %s139, 1
      %p143 = scmp.eq.s32.totalorder %s21, 1
      %p144 = scmp.ne.s32.totalorder %s139, %s141
      %p145 = scmp.eq.s32.totalorder %s21, 0
      %p146 = por %p144, %p145
      %p147 = scmp.ne.s32.totalorder %s139, %s141
      %p148 = scmp.eq.s32.totalorder %s26, 1
      %p149 = por %p147, %p148
      %p150 = scmp.ne.s32.totalorder %s141, %s142
      %p151 = scmp.eq.s32.totalorder %s26, 0
      %p152 = por %p150, %p151
      %p153 = scmp.ne.s32.totalorder %s141, %s142
      %p154 = scmp.eq.s32.totalorder %s27, 1
      %p155 = por %p153, %p154
      %p157 = scmp.ne.s32.totalorder %s142, %s156
      %p158 = scmp.eq.s32.totalorder %s27, 0
      %p159 = por %p157, %p158
      %s161 = sadd.s32 %s160, 1
      %p164 = scmp.eq.s32.totalorder %s21, 1
      %p165 = scmp.ne.s32.totalorder %s160, %s162
      %p166 = scmp.eq.s32.totalorder %s21, 0
      %p167 = por %p165, %p166
      %p168 = scmp.ne.s32.totalorder %s160, %s162
      %p169 = scmp.eq.s32.totalorder %s26, 1
      %p170 = por %p168, %p169
      %p171 = scmp.ne.s32.totalorder %s162, %s163
      %p172 = scmp.eq.s32.totalorder %s26, 0
      %p173 = por %p171, %p172
      %p174 = scmp.ne.s32.totalorder %s162, %s163
      %p175 = scmp.eq.s32.totalorder %s27, 1
      %p176 = por %p174, %p175
      %p178 = scmp.ne.s32.totalorder %s163, %s177
      %p179 = scmp.eq.s32.totalorder %s27, 0
      %p180 = por %p178, %p179
      %s181 = ssub.s32 %s21, %s28
      %p182 = scmp.eq.s32.totalorder %s181, 0
      %s184 = sadd.s32 %s183, 1
      %s185 = scalar_select %p182, %s183, %s184
      %p188 = pneg %p182
      %p189 = scmp.eq.s32.totalorder %s21, 1
      %p190 = por %p188, %p189
      %p191 = scmp.ne.s32.totalorder %s183, %s186
      %p192 = scmp.eq.s32.totalorder %s21, 0
      %p193 = por %p191, %p192
      %p194 = scmp.ne.s32.totalorder %s183, %s186
      %p195 = scmp.eq.s32.totalorder %s26, 1
      %p196 = por %p194, %p195
      %p197 = scmp.ne.s32.totalorder %s186, %s187
      %p198 = scmp.eq.s32.totalorder %s26, 0
      %p199 = por %p197, %p198
      %p200 = scmp.ne.s32.totalorder %s186, %s187
      %p201 = scmp.eq.s32.totalorder %s27, 1
      %p202 = por %p200, %p201
      %p204 = scmp.ne.s32.totalorder %s187, %s203
      %p205 = scmp.eq.s32.totalorder %s27, 0
      %p206 = por %p204, %p205
      %p207 = scmp.le.s32.totalorder 1, %s21
      %p208 = scmp.lt.s32.totalorder %s21, 3
      %p209 = pnand %p207, %p208
      %p210 = pneg %p209
      // Predicated region
      $region9: #{tpu_custom_call.1} parent=5 // pred_check
        _
      $region10: #{tpu_custom_call.1} parent=5 // pred_check_branch
        %212 = sbr.rel (%p209) target = $region12
      $region11: #{tpu_custom_call.1} parent=5 // pred_region
        %s213 = ssub.s32 %s21, 1
        // Predicated region
        $region13: #{tpu_custom_call.1} parent=11 // pred_check
          %p214 = pneg %p68
        $region14: #{tpu_custom_call.1} parent=11 // pred_check_branch
          %216 = sbr.rel (%p214) target = $region16
        $region15: #{tpu_custom_call.1} parent=11 // pred_region
          %s218 = ssub.s32 8192, 8192
          %219 = vsyncadd [#allocation6], %s218
          %s220 = sshll.u32 [#allocation5], 4
          %s221 = int_to_ptr.vmem [resolvable:$true] %s220
          %226 = dma.hbm_to_vmem [thread:$0]  %s1, 8192, %s221, [#allocation6], 512, 512, 32
        $region16: #{tpu_custom_call.1} parent=11 // pred_fallthru
          _
        // Predicated region
        $region17: #{tpu_custom_call.1} parent=11 // pred_check
          %p227 = pneg %p89
        $region18: #{tpu_custom_call.1} parent=11 // pred_check_branch
          %229 = sbr.rel (%p227) target = $region20
        $region19: #{tpu_custom_call.1} parent=11 // pred_region
          %s231 = ssub.s32 64, 64
          %232 = vsyncadd [#allocation6], %s231
          %s234 = sshll.u32 [#allocation7], 4
          %s235 = int_to_ptr.vmem [resolvable:$true] %s234
          %237 = dma.hbm_to_vmem [thread:$0]  %s2, 64, %s235, [#allocation6]
        $region20: #{tpu_custom_call.1} parent=11 // pred_fallthru
          _
        // Predicated region
        $region21: #{tpu_custom_call.1} parent=11 // pred_check
          %p238 = pneg %p110
        $region22: #{tpu_custom_call.1} parent=11 // pred_check_branch
          %240 = sbr.rel (%p238) target = $region24
        $region23: #{tpu_custom_call.1} parent=11 // pred_region
          %s242 = ssub.s32 8192, 8192
          %243 = vsyncadd [#allocation9], %s242
          %s244 = sshll.u32 [#allocation8], 4
          %s245 = int_to_ptr.vmem [resolvable:$true] %s244
          %250 = dma.hbm_to_vmem [thread:$0]  %s3, 8192, %s245, [#allocation9], 128, 128, 8
        $region24: #{tpu_custom_call.1} parent=11 // pred_fallthru
          _
        // Predicated region
        $region25: #{tpu_custom_call.1} parent=11 // pred_check
          %p251 = pneg %p131
        $region26: #{tpu_custom_call.1} parent=11 // pred_check_branch
          %253 = sbr.rel (%p251) target = $region28
        $region27: #{tpu_custom_call.1} parent=11 // pred_region
          _
        $region28: #{tpu_custom_call.1} parent=11 // pred_fallthru
          _
        // Predicated region
        $region29: #{tpu_custom_call.1} parent=11 // pred_check
          %p254 = pneg %p152
        $region30: #{tpu_custom_call.1} parent=11 // pred_check_branch
          %256 = sbr.rel (%p254) target = $region32
        $region31: #{tpu_custom_call.1} parent=11 // pred_region
          _
        $region32: #{tpu_custom_call.1} parent=11 // pred_fallthru
          _
        // Predicated region
        $region33: #{tpu_custom_call.1} parent=11 // pred_check
          %p257 = pneg %p173
        $region34: #{tpu_custom_call.1} parent=11 // pred_check_branch
          %259 = sbr.rel (%p257) target = $region36
        $region35: #{tpu_custom_call.1} parent=11 // pred_region
          _
        $region36: #{tpu_custom_call.1} parent=11 // pred_fallthru
          _
      $region12: #{tpu_custom_call.1} parent=5 // pred_fallthru
        _
      %p260 = scmp.lt.s32.totalorder %s21, 2
      // Predicated region
      $region37: #{tpu_custom_call.1} parent=5 // pred_check
        %p261 = pneg %p260
      $region38: #{tpu_custom_call.1} parent=5 // pred_check_branch
        %263 = sbr.rel (%p261) target = $region40
      $region39: #{tpu_custom_call.1} parent=5 // pred_region
        // Predicated region
        $region41: #{tpu_custom_call.1} parent=39 // pred_check
          %p264 = pneg %p41
        $region42: #{tpu_custom_call.1} parent=39 // pred_check_branch
          %266 = sbr.rel (%p264) target = $region44
        $region43: #{tpu_custom_call.1} parent=39 // pred_region
          %s267 = sand.u32 %s31, 1
          %s268 = scalar_lea.sflag [#allocation3], %s267
          %s269 = sand.u32 %s31, 1
          %s270 = smul.addr %s269, 64
          %s271 = scalar_lea.vmem [#allocation2], %s270
          %s272 = smul.u32 8, %s21
          %s274 = ssub.s32 1024, 1024
          %275 = vsyncadd %s268, %s274
          %s276 = smul.addr %s272, 128
          %s277 = scalar_lea.hbm %s0, %s276
          %s278 = sshll.u32 %s271, 4
          %s279 = int_to_ptr.vmem [resolvable:$true] %s278
          %284 = dma.hbm_to_vmem [thread:$0]  %s277, 1024, %s279, %s268, 128, 128, 8
        $region44: #{tpu_custom_call.1} parent=39 // pred_fallthru
          _
      $region40: #{tpu_custom_call.1} parent=5 // pred_fallthru
        _
      %p285 = scmp.le.s32.totalorder 1, %s21
      %p286 = scmp.lt.s32.totalorder %s21, 3
      %p287 = pnand %p285, %p286
      %p288 = pneg %p287
      // Predicated region
      $region45: #{tpu_custom_call.1} parent=5 // pred_check
        _
      $region46: #{tpu_custom_call.1} parent=5 // pred_check_branch
        %290 = sbr.rel (%p287) target = $region48
      $region47: #{tpu_custom_call.1} parent=5 // pred_region
        %s291 = ssub.s32 %s21, 1
        %s292 = sand.u32 %s34, 1
        %s293 = scalar_lea.sflag [#allocation3], %s292
        %s294 = sand.u32 %s34, 1
        %s295 = smul.addr %s294, 64
        %s296 = scalar_lea.vmem [#allocation2], %s295
        // Predicated region
        $region49: #{tpu_custom_call.1} parent=47 // pred_check
          %p297 = pneg %p47
        $region50: #{tpu_custom_call.1} parent=47 // pred_check_branch
          %299 = sbr.rel (%p297) target = $region52
        $region51: #{tpu_custom_call.1} parent=47 // pred_region
          %300 = dma.done %s293, 1024
        $region52: #{tpu_custom_call.1} parent=47 // pred_fallthru
          _
        // Predicated region
        $region53: #{tpu_custom_call.1} parent=47 // pred_check
          %p301 = pneg %p68
        $region54: #{tpu_custom_call.1} parent=47 // pred_check_branch
          %303 = sbr.rel (%p301) target = $region56
        $region55: #{tpu_custom_call.1} parent=47 // pred_region
          %304 = dma.done [#allocation6], 8192
        $region56: #{tpu_custom_call.1} parent=47 // pred_fallthru
          _
        // Predicated region
        $region57: #{tpu_custom_call.1} parent=47 // pred_check
          %p305 = pneg %p89
        $region58: #{tpu_custom_call.1} parent=47 // pred_check_branch
          %307 = sbr.rel (%p305) target = $region60
        $region59: #{tpu_custom_call.1} parent=47 // pred_region
          %308 = dma.done [#allocation6], 64
        $region60: #{tpu_custom_call.1} parent=47 // pred_fallthru
          _
        // Predicated region
        $region61: #{tpu_custom_call.1} parent=47 // pred_check
          %p309 = pneg %p110
        $region62: #{tpu_custom_call.1} parent=47 // pred_check_branch
          %311 = sbr.rel (%p309) target = $region64
        $region63: #{tpu_custom_call.1} parent=47 // pred_region
          %312 = dma.done [#allocation9], 8192
        $region64: #{tpu_custom_call.1} parent=47 // pred_fallthru
          _
        %s313 = sand.u32 %s34, 1
        %s314 = scalar_lea.sflag [#allocation3], %s313
        %s315 = sand.u32 %s34, 1
        %s316 = smul.addr %s315, 64
        %s317 = scalar_lea.vmem [#allocation2], %s316
        %p318 = pneg %p47
        %p319 = pneg %p44
        %p320 = pneg %p68
        %p321 = pneg %p65
        %p322 = pneg %p89
        %p323 = pneg %p86
        %p324 = pneg %p110
        %p325 = pneg %p107
        %p326 = pneg %p131
        %p327 = pneg %p128
        %p328 = pneg %p152
        %p329 = pneg %p149
        %p330 = pneg %p173
        %p331 = pneg %p170
        %p332 = pneg %p199
        %p333 = pneg %p196
        %s334 = sand.u32 %s186, 1
        %s335 = scalar_lea.sflag [#allocation4], %s334
        %s336 = sand.u32 %s186, 1
        %s337 = smul.addr %s336, 64
        %s338 = scalar_lea.vmem [#allocation10], %s337
        %s339 = smul.u32 8, %s26
        %s340 = smul.u32 8, %s26
        %v341 = vld [vmem:[%s296] sm:$0xff]
        %v342 = vld [vmem:[%s296 + $0x8] sm:$0xff]
        %v343 = vld [vmem:[%s296 + $0x10] sm:$0xff]
        %v344 = vld [vmem:[%s296 + $0x18] sm:$0xff]
        %v345 = vld [vmem:[%s296 + $0x20] sm:$0xff]
        %v346 = vld [vmem:[%s296 + $0x28] sm:$0xff]
        %v347 = vld [vmem:[%s296 + $0x30] sm:$0xff]
        %v348 = vld [vmem:[%s296 + $0x38] sm:$0xff]
        %v349 = vld [vmem:[#allocation5] sm:$0xff]
        %v350 = vld [vmem:[#allocation5 + $0x8] sm:$0xff]
        %v351 = vld [vmem:[#allocation5 + $0x10] sm:$0xff]
        %v352 = vld [vmem:[#allocation5 + $0x18] sm:$0xff]
        %v353 = vld [vmem:[#allocation5 + $0x20] sm:$0xff]
        %v354 = vld [vmem:[#allocation5 + $0x28] sm:$0xff]
        %v355 = vld [vmem:[#allocation5 + $0x30] sm:$0xff]
        %v356 = vld [vmem:[#allocation5 + $0x38] sm:$0xff]
        %v357 = vld [vmem:[#allocation5 + $0x40] sm:$0xff]
        %v358 = vld [vmem:[#allocation5 + $0x48] sm:$0xff]
        %v359 = vld [vmem:[#allocation5 + $0x50] sm:$0xff]
        %v360 = vld [vmem:[#allocation5 + $0x58] sm:$0xff]
        %v361 = vld [vmem:[#allocation5 + $0x60] sm:$0xff]
        %v362 = vld [vmem:[#allocation5 + $0x68] sm:$0xff]
        %v363 = vld [vmem:[#allocation5 + $0x70] sm:$0xff]
        %v364 = vld [vmem:[#allocation5 + $0x78] sm:$0xff]
        %v365 = vld [vmem:[#allocation5 + $0x80] sm:$0xff]
        %v366 = vld [vmem:[#allocation5 + $0x88] sm:$0xff]
        %v367 = vld [vmem:[#allocation5 + $0x90] sm:$0xff]
        %v368 = vld [vmem:[#allocation5 + $0x98] sm:$0xff]
        %v369 = vld [vmem:[#allocation5 + $0xa0] sm:$0xff]
        %v370 = vld [vmem:[#allocation5 + $0xa8] sm:$0xff]
        %v371 = vld [vmem:[#allocation5 + $0xb0] sm:$0xff]
        %v372 = vld [vmem:[#allocation5 + $0xb8] sm:$0xff]
        %v373 = vld [vmem:[#allocation5 + $0xc0] sm:$0xff]
        %v374 = vld [vmem:[#allocation5 + $0xc8] sm:$0xff]
        %v375 = vld [vmem:[#allocation5 + $0xd0] sm:$0xff]
        %v376 = vld [vmem:[#allocation5 + $0xd8] sm:$0xff]
        %v377 = vld [vmem:[#allocation5 + $0xe0] sm:$0xff]
        %v378 = vld [vmem:[#allocation5 + $0xe8] sm:$0xff]
        %v379 = vld [vmem:[#allocation5 + $0xf0] sm:$0xff]
        %v380 = vld [vmem:[#allocation5 + $0xf8] sm:$0xff]
        %v381 = vld [vmem:[#allocation5 + $0x100] sm:$0xff]
        %v382 = vld [vmem:[#allocation5 + $0x108] sm:$0xff]
        %v383 = vld [vmem:[#allocation5 + $0x110] sm:$0xff]
        %v384 = vld [vmem:[#allocation5 + $0x118] sm:$0xff]
        %v385 = vld [vmem:[#allocation5 + $0x120] sm:$0xff]
        %v386 = vld [vmem:[#allocation5 + $0x128] sm:$0xff]
        %v387 = vld [vmem:[#allocation5 + $0x130] sm:$0xff]
        %v388 = vld [vmem:[#allocation5 + $0x138] sm:$0xff]
        %v389 = vld [vmem:[#allocation5 + $0x140] sm:$0xff]
        %v390 = vld [vmem:[#allocation5 + $0x148] sm:$0xff]
        %v391 = vld [vmem:[#allocation5 + $0x150] sm:$0xff]
        %v392 = vld [vmem:[#allocation5 + $0x158] sm:$0xff]
        %v393 = vld [vmem:[#allocation5 + $0x160] sm:$0xff]
        %v394 = vld [vmem:[#allocation5 + $0x168] sm:$0xff]
        %v395 = vld [vmem:[#allocation5 + $0x170] sm:$0xff]
        %v396 = vld [vmem:[#allocation5 + $0x178] sm:$0xff]
        %v397 = vld [vmem:[#allocation5 + $0x180] sm:$0xff]
        %v398 = vld [vmem:[#allocation5 + $0x188] sm:$0xff]
        %v399 = vld [vmem:[#allocation5 + $0x190] sm:$0xff]
        %v400 = vld [vmem:[#allocation5 + $0x198] sm:$0xff]
        %v401 = vld [vmem:[#allocation5 + $0x1a0] sm:$0xff]
        %v402 = vld [vmem:[#allocation5 + $0x1a8] sm:$0xff]
        %v403 = vld [vmem:[#allocation5 + $0x1b0] sm:$0xff]
        %v404 = vld [vmem:[#allocation5 + $0x1b8] sm:$0xff]
        %v405 = vld [vmem:[#allocation5 + $0x1c0] sm:$0xff]
        %v406 = vld [vmem:[#allocation5 + $0x1c8] sm:$0xff]
        %v407 = vld [vmem:[#allocation5 + $0x1d0] sm:$0xff]
        %v408 = vld [vmem:[#allocation5 + $0x1d8] sm:$0xff]
        %v409 = vld [vmem:[#allocation5 + $0x1e0] sm:$0xff]
        %v410 = vld [vmem:[#allocation5 + $0x1e8] sm:$0xff]
        %v411 = vld [vmem:[#allocation5 + $0x1f0] sm:$0xff]
        %v412 = vld [vmem:[#allocation5 + $0x1f8] sm:$0xff]
        %v413 = vld [vmem:[#allocation7] sm:$0xf]
        %v415 = vlaneseq
        %v416 = vshrl.u32 %v415, 7
        %v417 = vsub.s32 0, %v416
        %v418 = vrot.slane %v413, %v417
        %v419 = vlaneseq
        %v420 = vshrl.u32 %v419, 7
        %v421 = vsub.s32 1, %v420
        %v422 = vrot.slane %v413, %v421
        %v423 = vlaneseq
        %v424 = vshrl.u32 %v423, 7
        %v425 = vsub.s32 2, %v424
        %v426 = vrot.slane %v413, %v425
        %v427 = vlaneseq
        %v428 = vshrl.u32 %v427, 7
        %v429 = vsub.s32 3, %v428
        %v430 = vrot.slane %v413, %v429
        %v435 = vand.u32 %v410, 4294901760
        %436 = vmatprep.subr.mxu0 %v435
        %v437 = vand.u32 %v409, 4294901760
        %438 = vmatpush1.msra.mxu0 %v437
        %v439 = vand.u32 %v406, 4294901760
        %440 = vmatprep.subr.mxu0 %v439
        %v441 = vand.u32 %v405, 4294901760
        %442 = vmatpush1.msra.mxu0 %v441
        %v443 = vand.u32 %v402, 4294901760
        %444 = vmatprep.subr.mxu0 %v443
        %v445 = vand.u32 %v401, 4294901760
        %446 = vmatpush1.msra.mxu0 %v445
        %v447 = vand.u32 %v398, 4294901760
        %448 = vmatprep.subr.mxu0 %v447
        %v449 = vand.u32 %v397, 4294901760
        %450 = vmatpush1.msra.mxu0 %v449
        %v451 = vand.u32 %v394, 4294901760
        %452 = vmatprep.subr.mxu0 %v451
        %v453 = vand.u32 %v393, 4294901760
        %454 = vmatpush1.msra.mxu0 %v453
        %v455 = vand.u32 %v390, 4294901760
        %456 = vmatprep.subr.mxu0 %v455
        %v457 = vand.u32 %v389, 4294901760
        %458 = vmatpush1.msra.mxu0 %v457
        %v459 = vand.u32 %v386, 4294901760
        %460 = vmatprep.subr.mxu0 %v459
        %v461 = vand.u32 %v385, 4294901760
        %462 = vmatpush1.msra.mxu0 %v461
        %v463 = vand.u32 %v382, 4294901760
        %464 = vmatprep.subr.mxu0 %v463
        %v465 = vand.u32 %v381, 4294901760
        %466 = vmatpush1.msra.mxu0 %v465
        %v467 = vand.u32 %v378, 4294901760
        %468 = vmatprep.subr.mxu0 %v467
        %v469 = vand.u32 %v377, 4294901760
        %470 = vmatpush1.msra.mxu0 %v469
        %v471 = vand.u32 %v374, 4294901760
        %472 = vmatprep.subr.mxu0 %v471
        %v473 = vand.u32 %v373, 4294901760
        %474 = vmatpush1.msra.mxu0 %v473
        %v475 = vand.u32 %v370, 4294901760
        %476 = vmatprep.subr.mxu0 %v475
        %v477 = vand.u32 %v369, 4294901760
        %478 = vmatpush1.msra.mxu0 %v477
        %v479 = vand.u32 %v366, 4294901760
        %480 = vmatprep.subr.mxu0 %v479
        %v481 = vand.u32 %v365, 4294901760
        %482 = vmatpush1.msra.mxu0 %v481
        %v483 = vand.u32 %v362, 4294901760
        %484 = vmatprep.subr.mxu0 %v483
        %v485 = vand.u32 %v361, 4294901760
        %486 = vmatpush1.msra.mxu0 %v485
        %v487 = vand.u32 %v358, 4294901760
        %488 = vmatprep.subr.mxu0 %v487
        %v489 = vand.u32 %v357, 4294901760
        %490 = vmatpush1.msra.mxu0 %v489
        %v491 = vand.u32 %v354, 4294901760
        %492 = vmatprep.subr.mxu0 %v491
        %v493 = vand.u32 %v353, 4294901760
        %494 = vmatpush1.msra.mxu0 %v493
        %v495 = vand.u32 %v350, 4294901760
        %496 = vmatprep.subr.mxu0 %v495
        %v497 = vand.u32 %v349, 4294901760
        %498 = vmatpush1.msra.mxu0 %v497
        %499 = vmatprep.subr.mxu0 0.0
        %500 = vmatpush2.msra.mxu0 0.0
        %501 = vmatprep.subr.mxu0 0.0
        %502 = vmatpush2.msra.mxu0 0.0
        %503 = vmatprep.subr.mxu0 0.0
        %504 = vmatpush2.msra.mxu0 0.0
        %505 = vmatprep.subr.mxu0 0.0
        %506 = vmatpush2.msra.mxu0 0.0
        %507 = vmatprep.subr.mxu0 0.0
        %508 = vmatpush2.msra.mxu0 0.0
        %509 = vmatprep.subr.mxu0 0.0
        %510 = vmatpush2.msra.mxu0 0.0
        %511 = vmatprep.subr.mxu0 0.0
        %512 = vmatpush2.msra.mxu0 0.0
        %513 = vmatprep.subr.mxu0 0.0
        %514 = vmatpush2.msra.mxu0 0.0
        %515 = vmatprep.subr.mxu0 0.0
        %516 = vmatpush2.msra.mxu0 0.0
        %517 = vmatprep.subr.mxu0 0.0
        %518 = vmatpush2.msra.mxu0 0.0
        %519 = vmatprep.subr.mxu0 0.0
        %520 = vmatpush2.msra.mxu0 0.0
        %521 = vmatprep.subr.mxu0 0.0
        %522 = vmatpush2.msra.mxu0 0.0
        %523 = vmatprep.subr.mxu0 0.0
        %524 = vmatpush2.msra.mxu0 0.0
        %525 = vmatprep.subr.mxu0 0.0
        %526 = vmatpush2.msra.mxu0 0.0
        %527 = vmatprep.subr.mxu0 0.0
        %528 = vmatpush2.msra.mxu0 0.0
        %529 = vmatprep.subr.mxu0 0.0
        %530 = vmatpush2.msra.mxu0 0.0
        %531 = vmatprep.mubr.f32.mxu0 0.0
        %v532 = vand.u32 %v341, 4294901760
        %v533 = vsub.f32 %v341, %v532
        %v534 = vand.u32 %v533, 4294901760
        %v535 = vsub.f32 %v533, %v534
        %v536 = vand.u32 %v535, 4294901760
        %537 = vmatmul.mubr.f32.gmra.mxu0 %v536
        %v538 = vpop.f32.mrf.mxu0
        %v539 = vadd.f32 %v418, %v538
        %v540 = vpop.f32.mrf.mxu0
        %v541 = vadd.f32 %v422, %v540
        %542 = vmatprep.mubr.f32.mxu0 0.0
        %v543 = vand.u32 %v342, 4294901760
        %v544 = vsub.f32 %v342, %v543
        %v545 = vand.u32 %v544, 4294901760
        %v546 = vsub.f32 %v544, %v545
        %v547 = vand.u32 %v546, 4294901760
        %548 = vmatmul.mubr.f32.gmra.mxu0 %v547
        %v549 = vpop.f32.mrf.mxu0
        %v550 = vadd.f32 %v418, %v549
        %v551 = vpop.f32.mrf.mxu0
        %v552 = vadd.f32 %v422, %v551
        %553 = vmatprep.mubr.f32.mxu0 0.0
        %v554 = vand.u32 %v343, 4294901760
        %v555 = vsub.f32 %v343, %v554
        %v556 = vand.u32 %v555, 4294901760
        %v557 = vsub.f32 %v555, %v556
        %v558 = vand.u32 %v557, 4294901760
        %559 = vmatmul.mubr.f32.gmra.mxu0 %v558
        %v560 = vpop.f32.mrf.mxu0
        %v561 = vadd.f32 %v418, %v560
        %v562 = vpop.f32.mrf.mxu0
        %v563 = vadd.f32 %v422, %v562
        %564 = vmatprep.mubr.f32.mxu0 0.0
        %v565 = vand.u32 %v344, 4294901760
        %v566 = vsub.f32 %v344, %v565
        %v567 = vand.u32 %v566, 4294901760
        %v568 = vsub.f32 %v566, %v567
        %v569 = vand.u32 %v568, 4294901760
        %570 = vmatmul.mubr.f32.gmra.mxu0 %v569
        %v571 = vpop.f32.mrf.mxu0
        %v572 = vadd.f32 %v418, %v571
        %v573 = vpop.f32.mrf.mxu0
        %v574 = vadd.f32 %v422, %v573
        %575 = vmatprep.mubr.f32.mxu0 0.0
        %v576 = vand.u32 %v345, 4294901760
        %v577 = vsub.f32 %v345, %v576
        %v578 = vand.u32 %v577, 4294901760
        %v579 = vsub.f32 %v577, %v578
        %v580 = vand.u32 %v579, 4294901760
        %581 = vmatmul.mubr.f32.gmra.mxu0 %v580
        %v582 = vpop.f32.mrf.mxu0
        %v583 = vadd.f32 %v418, %v582
        %v584 = vpop.f32.mrf.mxu0
        %v585 = vadd.f32 %v422, %v584
        %586 = vmatprep.mubr.f32.mxu0 0.0
        %v587 = vand.u32 %v346, 4294901760
        %v588 = vsub.f32 %v346, %v587
        %v589 = vand.u32 %v588, 4294901760
        %v590 = vsub.f32 %v588, %v589
        %v591 = vand.u32 %v590, 4294901760
        %592 = vmatmul.mubr.f32.gmra.mxu0 %v591
        %v593 = vpop.f32.mrf.mxu0
        %v594 = vadd.f32 %v418, %v593
        %v595 = vpop.f32.mrf.mxu0
        %v596 = vadd.f32 %v422, %v595
        %597 = vmatprep.mubr.f32.mxu0 0.0
        %v598 = vand.u32 %v347, 4294901760
        %v599 = vsub.f32 %v347, %v598
        %v600 = vand.u32 %v599, 4294901760
        %v601 = vsub.f32 %v599, %v600
        %v602 = vand.u32 %v601, 4294901760
        %603 = vmatmul.mubr.f32.gmra.mxu0 %v602
        %v604 = vpop.f32.mrf.mxu0
        %v605 = vadd.f32 %v418, %v604
        %v606 = vpop.f32.mrf.mxu0
        %v607 = vadd.f32 %v422, %v606
        %608 = vmatprep.mubr.f32.mxu0 0.0
        %v609 = vand.u32 %v348, 4294901760
        %v610 = vsub.f32 %v348, %v609
        %v611 = vand.u32 %v610, 4294901760
        %v612 = vsub.f32 %v610, %v611
        %v613 = vand.u32 %v612, 4294901760
        %614 = vmatmul.mubr.f32.gmra.mxu0 %v613
        %v615 = vpop.f32.mrf.mxu0
        %v616 = vadd.f32 %v418, %v615
        %v617 = vpop.f32.mrf.mxu0
        %v618 = vadd.f32 %v422, %v617
        %619 = vdwg.mxu0
        %v620 = vand.u32 %v410, 4294901760
        %v621 = vsub.f32 %v410, %v620
        %v622 = vand.u32 %v621, 4294901760
        %v623 = vsub.f32 %v621, %v622
        %v624 = vand.u32 %v623, 4294901760
        %625 = vmatprep.subr.mxu0 %v624
        %v626 = vand.u32 %v409, 4294901760
        %v627 = vsub.f32 %v409, %v626
        %v628 = vand.u32 %v627, 4294901760
        %v629 = vsub.f32 %v627, %v628
        %v630 = vand.u32 %v629, 4294901760
        %631 = vmatpush1.msra.mxu0 %v630
        %v632 = vand.u32 %v406, 4294901760
        %v633 = vsub.f32 %v406, %v632
        %v634 = vand.u32 %v633, 4294901760
        %v635 = vsub.f32 %v633, %v634
        %v636 = vand.u32 %v635, 4294901760
        %637 = vmatprep.subr.mxu0 %v636
        %v638 = vand.u32 %v405, 4294901760
        %v639 = vsub.f32 %v405, %v638
        %v640 = vand.u32 %v639, 4294901760
        %v641 = vsub.f32 %v639, %v640
        %v642 = vand.u32 %v641, 4294901760
        %643 = vmatpush1.msra.mxu0 %v642
        %v644 = vand.u32 %v402, 4294901760
        %v645 = vsub.f32 %v402, %v644
        %v646 = vand.u32 %v645, 4294901760
        %v647 = vsub.f32 %v645, %v646
        %v648 = vand.u32 %v647, 4294901760
        %649 = vmatprep.subr.mxu0 %v648
        %v650 = vand.u32 %v401, 4294901760
        %v651 = vsub.f32 %v401, %v650
        %v652 = vand.u32 %v651, 4294901760
        %v653 = vsub.f32 %v651, %v652
        %v654 = vand.u32 %v653, 4294901760
        %655 = vmatpush1.msra.mxu0 %v654
        %v656 = vand.u32 %v398, 4294901760
        %v657 = vsub.f32 %v398, %v656
        %v658 = vand.u32 %v657, 4294901760
        %v659 = vsub.f32 %v657, %v658
        %v660 = vand.u32 %v659, 4294901760
        %661 = vmatprep.subr.mxu0 %v660
        %v662 = vand.u32 %v397, 4294901760
        %v663 = vsub.f32 %v397, %v662
        %v664 = vand.u32 %v663, 4294901760
        %v665 = vsub.f32 %v663, %v664
        %v666 = vand.u32 %v665, 4294901760
        %667 = vmatpush1.msra.mxu0 %v666
        %v668 = vand.u32 %v394, 4294901760
        %v669 = vsub.f32 %v394, %v668
        %v670 = vand.u32 %v669, 4294901760
        %v671 = vsub.f32 %v669, %v670
        %v672 = vand.u32 %v671, 4294901760
        %673 = vmatprep.subr.mxu0 %v672
        %v674 = vand.u32 %v393, 4294901760
        %v675 = vsub.f32 %v393, %v674
        %v676 = vand.u32 %v675, 4294901760
        %v677 = vsub.f32 %v675, %v676
        %v678 = vand.u32 %v677, 4294901760
        %679 = vmatpush1.msra.mxu0 %v678
        %v680 = vand.u32 %v390, 4294901760
        %v681 = vsub.f32 %v390, %v680
        %v682 = vand.u32 %v681, 4294901760
        %v683 = vsub.f32 %v681, %v682
        %v684 = vand.u32 %v683, 4294901760
        %685 = vmatprep.subr.mxu0 %v684
        %v686 = vand.u32 %v389, 4294901760
        %v687 = vsub.f32 %v389, %v686
        %v688 = vand.u32 %v687, 4294901760
        %v689 = vsub.f32 %v687, %v688
        %v690 = vand.u32 %v689, 4294901760
        %691 = vmatpush1.msra.mxu0 %v690
        %v692 = vand.u32 %v386, 4294901760
        %v693 = vsub.f32 %v386, %v692
        %v694 = vand.u32 %v693, 4294901760
        %v695 = vsub.f32 %v693, %v694
        %v696 = vand.u32 %v695, 4294901760
        %697 = vmatprep.subr.mxu0 %v696
        %v698 = vand.u32 %v385, 4294901760
        %v699 = vsub.f32 %v385, %v698
        %v700 = vand.u32 %v699, 4294901760
        %v701 = vsub.f32 %v699, %v700
        %v702 = vand.u32 %v701, 4294901760
        %703 = vmatpush1.msra.mxu0 %v702
        %v704 = vand.u32 %v382, 4294901760
        %v705 = vsub.f32 %v382, %v704
        %v706 = vand.u32 %v705, 4294901760
        %v707 = vsub.f32 %v705, %v706
        %v708 = vand.u32 %v707, 4294901760
        %709 = vmatprep.subr.mxu0 %v708
        %v710 = vand.u32 %v381, 4294901760
        %v711 = vsub.f32 %v381, %v710
        %v712 = vand.u32 %v711, 4294901760
        %v713 = vsub.f32 %v711, %v712
        %v714 = vand.u32 %v713, 4294901760
        %715 = vmatpush1.msra.mxu0 %v714
        %v716 = vand.u32 %v378, 4294901760
        %v717 = vsub.f32 %v378, %v716
        %v718 = vand.u32 %v717, 4294901760
        %v719 = vsub.f32 %v717, %v718
        %v720 = vand.u32 %v719, 4294901760
        %721 = vmatprep.subr.mxu0 %v720
        %v722 = vand.u32 %v377, 4294901760
        %v723 = vsub.f32 %v377, %v722
        %v724 = vand.u32 %v723, 4294901760
        %v725 = vsub.f32 %v723, %v724
        %v726 = vand.u32 %v725, 4294901760
        %727 = vmatpush1.msra.mxu0 %v726
        %v728 = vand.u32 %v374, 4294901760
        %v729 = vsub.f32 %v374, %v728
        %v730 = vand.u32 %v729, 4294901760
        %v731 = vsub.f32 %v729, %v730
        %v732 = vand.u32 %v731, 4294901760
        %733 = vmatprep.subr.mxu0 %v732
        %v734 = vand.u32 %v373, 4294901760
        %v735 = vsub.f32 %v373, %v734
        %v736 = vand.u32 %v735, 4294901760
        %v737 = vsub.f32 %v735, %v736
        %v738 = vand.u32 %v737, 4294901760
        %739 = vmatpush1.msra.mxu0 %v738
        %v740 = vand.u32 %v370, 4294901760
        %v741 = vsub.f32 %v370, %v740
        %v742 = vand.u32 %v741, 4294901760
        %v743 = vsub.f32 %v741, %v742
        %v744 = vand.u32 %v743, 4294901760
        %745 = vmatprep.subr.mxu0 %v744
        %v746 = vand.u32 %v369, 4294901760
        %v747 = vsub.f32 %v369, %v746
        %v748 = vand.u32 %v747, 4294901760
        %v749 = vsub.f32 %v747, %v748
        %v750 = vand.u32 %v749, 4294901760
        %751 = vmatpush1.msra.mxu0 %v750
        %v752 = vand.u32 %v366, 4294901760
        %v753 = vsub.f32 %v366, %v752
        %v754 = vand.u32 %v753, 4294901760
        %v755 = vsub.f32 %v753, %v754
        %v756 = vand.u32 %v755, 4294901760
        %757 = vmatprep.subr.mxu0 %v756
        %v758 = vand.u32 %v365, 4294901760
        %v759 = vsub.f32 %v365, %v758
        %v760 = vand.u32 %v759, 4294901760
        %v761 = vsub.f32 %v759, %v760
        %v762 = vand.u32 %v761, 4294901760
        %763 = vmatpush1.msra.mxu0 %v762
        %v764 = vand.u32 %v362, 4294901760
        %v765 = vsub.f32 %v362, %v764
        %v766 = vand.u32 %v765, 4294901760
        %v767 = vsub.f32 %v765, %v766
        %v768 = vand.u32 %v767, 4294901760
        %769 = vmatprep.subr.mxu0 %v768
        %v770 = vand.u32 %v361, 4294901760
        %v771 = vsub.f32 %v361, %v770
        %v772 = vand.u32 %v771, 4294901760
        %v773 = vsub.f32 %v771, %v772
        %v774 = vand.u32 %v773, 4294901760
        %775 = vmatpush1.msra.mxu0 %v774
        %v776 = vand.u32 %v358, 4294901760
        %v777 = vsub.f32 %v358, %v776
        %v778 = vand.u32 %v777, 4294901760
        %v779 = vsub.f32 %v777, %v778
        %v780 = vand.u32 %v779, 4294901760
        %781 = vmatprep.subr.mxu0 %v780
        %v782 = vand.u32 %v357, 4294901760
        %v783 = vsub.f32 %v357, %v782
        %v784 = vand.u32 %v783, 4294901760
        %v785 = vsub.f32 %v783, %v784
        %v786 = vand.u32 %v785, 4294901760
        %787 = vmatpush1.msra.mxu0 %v786
        %v788 = vand.u32 %v354, 4294901760
        %v789 = vsub.f32 %v354, %v788
        %v790 = vand.u32 %v789, 4294901760
        %v791 = vsub.f32 %v789, %v790
        %v792 = vand.u32 %v791, 4294901760
        %793 = vmatprep.subr.mxu0 %v792
        %v794 = vand.u32 %v353, 4294901760
        %v795 = vsub.f32 %v353, %v794
        %v796 = vand.u32 %v795, 4294901760
        %v797 = vsub.f32 %v795, %v796
        %v798 = vand.u32 %v797, 4294901760
        %799 = vmatpush1.msra.mxu0 %v798
        %v800 = vand.u32 %v350, 4294901760
        %v801 = vsub.f32 %v350, %v800
        %v802 = vand.u32 %v801, 4294901760
        %v803 = vsub.f32 %v801, %v802
        %v804 = vand.u32 %v803, 4294901760
        %805 = vmatprep.subr.mxu0 %v804
        %v806 = vand.u32 %v349, 4294901760
        %v807 = vsub.f32 %v349, %v806
        %v808 = vand.u32 %v807, 4294901760
        %v809 = vsub.f32 %v807, %v808
        %v810 = vand.u32 %v809, 4294901760
        %811 = vmatpush1.msra.mxu0 %v810
        %812 = vmatprep.subr.mxu0 0.0
        %813 = vmatpush2.msra.mxu0 0.0
        %814 = vmatprep.subr.mxu0 0.0
        %815 = vmatpush2.msra.mxu0 0.0
        %816 = vmatprep.subr.mxu0 0.0
        %817 = vmatpush2.msra.mxu0 0.0
        %818 = vmatprep.subr.mxu0 0.0
        %819 = vmatpush2.msra.mxu0 0.0
        %820 = vmatprep.subr.mxu0 0.0
        %821 = vmatpush2.msra.mxu0 0.0
        %822 = vmatprep.subr.mxu0 0.0
        %823 = vmatpush2.msra.mxu0 0.0
        %824 = vmatprep.subr.mxu0 0.0
        %825 = vmatpush2.msra.mxu0 0.0
        %826 = vmatprep.subr.mxu0 0.0
        %827 = vmatpush2.msra.mxu0 0.0
        %828 = vmatprep.subr.mxu0 0.0
        %829 = vmatpush2.msra.mxu0 0.0
        %830 = vmatprep.subr.mxu0 0.0
        %831 = vmatpush2.msra.mxu0 0.0
        %832 = vmatprep.subr.mxu0 0.0
        %833 = vmatpush2.msra.mxu0 0.0
        %834 = vmatprep.subr.mxu0 0.0
        %835 = vmatpush2.msra.mxu0 0.0
        %836 = vmatprep.subr.mxu0 0.0
        %837 = vmatpush2.msra.mxu0 0.0
        %838 = vmatprep.subr.mxu0 0.0
        %839 = vmatpush2.msra.mxu0 0.0
        %840 = vmatprep.subr.mxu0 0.0
        %841 = vmatpush2.msra.mxu0 0.0
        %842 = vmatprep.subr.mxu0 0.0
        %843 = vmatpush2.msra.mxu0 0.0
        %844 = vmatprep.mubr.f32.mxu0 0.0
        %v845 = vand.u32 %v341, 4294901760
        %846 = vmatmul.mubr.f32.gmra.mxu0 %v845
        %v847 = vpop.f32.mrf.mxu0
        %v848 = vadd.f32 %v539, %v847
        %v849 = vpop.f32.mrf.mxu0
        %v850 = vadd.f32 %v541, %v849
        %851 = vmatprep.mubr.f32.mxu0 0.0
        %v852 = vand.u32 %v342, 4294901760
        %853 = vmatmul.mubr.f32.gmra.mxu0 %v852
        %v854 = vpop.f32.mrf.mxu0
        %v855 = vadd.f32 %v550, %v854
        %v856 = vpop.f32.mrf.mxu0
        %v857 = vadd.f32 %v552, %v856
        %858 = vmatprep.mubr.f32.mxu0 0.0
        %v859 = vand.u32 %v343, 4294901760
        %860 = vmatmul.mubr.f32.gmra.mxu0 %v859
        %v861 = vpop.f32.mrf.mxu0
        %v862 = vadd.f32 %v561, %v861
        %v863 = vpop.f32.mrf.mxu0
        %v864 = vadd.f32 %v563, %v863
        %865 = vmatprep.mubr.f32.mxu0 0.0
        %v866 = vand.u32 %v344, 4294901760
        %867 = vmatmul.mubr.f32.gmra.mxu0 %v866
        %v868 = vpop.f32.mrf.mxu0
        %v869 = vadd.f32 %v572, %v868
        %v870 = vpop.f32.mrf.mxu0
        %v871 = vadd.f32 %v574, %v870
        %872 = vmatprep.mubr.f32.mxu0 0.0
        %v873 = vand.u32 %v345, 4294901760
        %874 = vmatmul.mubr.f32.gmra.mxu0 %v873
        %v875 = vpop.f32.mrf.mxu0
        %v876 = vadd.f32 %v583, %v875
        %v877 = vpop.f32.mrf.mxu0
        %v878 = vadd.f32 %v585, %v877
        %879 = vmatprep.mubr.f32.mxu0 0.0
        %v880 = vand.u32 %v346, 4294901760
        %881 = vmatmul.mubr.f32.gmra.mxu0 %v880
        %v882 = vpop.f32.mrf.mxu0
        %v883 = vadd.f32 %v594, %v882
        %v884 = vpop.f32.mrf.mxu0
        %v885 = vadd.f32 %v596, %v884
        %886 = vmatprep.mubr.f32.mxu0 0.0
        %v887 = vand.u32 %v347, 4294901760
        %888 = vmatmul.mubr.f32.gmra.mxu0 %v887
        %v889 = vpop.f32.mrf.mxu0
        %v890 = vadd.f32 %v605, %v889
        %v891 = vpop.f32.mrf.mxu0
        %v892 = vadd.f32 %v607, %v891
        %893 = vmatprep.mubr.f32.mxu0 0.0
        %v894 = vand.u32 %v348, 4294901760
        %895 = vmatmul.mubr.f32.gmra.mxu0 %v894
        %v896 = vpop.f32.mrf.mxu0
        %v897 = vadd.f32 %v616, %v896
        %v898 = vpop.f32.mrf.mxu0
        %v899 = vadd.f32 %v618, %v898
        %900 = vdwg.mxu0
        %v901 = vand.u32 %v410, 4294901760
        %v902 = vsub.f32 %v410, %v901
        %903 = vmatprep.subr.mxu0 %v902
        %v904 = vand.u32 %v409, 4294901760
        %v905 = vsub.f32 %v409, %v904
        %906 = vmatpush1.msra.mxu0 %v905
        %v907 = vand.u32 %v406, 4294901760
        %v908 = vsub.f32 %v406, %v907
        %909 = vmatprep.subr.mxu0 %v908
        %v910 = vand.u32 %v405, 4294901760
        %v911 = vsub.f32 %v405, %v910
        %912 = vmatpush1.msra.mxu0 %v911
        %v913 = vand.u32 %v402, 4294901760
        %v914 = vsub.f32 %v402, %v913
        %915 = vmatprep.subr.mxu0 %v914
        %v916 = vand.u32 %v401, 4294901760
        %v917 = vsub.f32 %v401, %v916
        %918 = vmatpush1.msra.mxu0 %v917
        %v919 = vand.u32 %v398, 4294901760
        %v920 = vsub.f32 %v398, %v919
        %921 = vmatprep.subr.mxu0 %v920
        %v922 = vand.u32 %v397, 4294901760
        %v923 = vsub.f32 %v397, %v922
        %924 = vmatpush1.msra.mxu0 %v923
        %v925 = vand.u32 %v394, 4294901760
        %v926 = vsub.f32 %v394, %v925
        %927 = vmatprep.subr.mxu0 %v926
        %v928 = vand.u32 %v393, 4294901760
        %v929 = vsub.f32 %v393, %v928
        %930 = vmatpush1.msra.mxu0 %v929
        %v931 = vand.u32 %v390, 4294901760
        %v932 = vsub.f32 %v390, %v931
        %933 = vmatprep.subr.mxu0 %v932
        %v934 = vand.u32 %v389, 4294901760
        %v935 = vsub.f32 %v389, %v934
        %936 = vmatpush1.msra.mxu0 %v935
        %v937 = vand.u32 %v386, 4294901760
        %v938 = vsub.f32 %v386, %v937
        %939 = vmatprep.subr.mxu0 %v938
        %v940 = vand.u32 %v385, 4294901760
        %v941 = vsub.f32 %v385, %v940
        %942 = vmatpush1.msra.mxu0 %v941
        %v943 = vand.u32 %v382, 4294901760
        %v944 = vsub.f32 %v382, %v943
        %945 = vmatprep.subr.mxu0 %v944
        %v946 = vand.u32 %v381, 4294901760
        %v947 = vsub.f32 %v381, %v946
        %948 = vmatpush1.msra.mxu0 %v947
        %v949 = vand.u32 %v378, 4294901760
        %v950 = vsub.f32 %v378, %v949
        %951 = vmatprep.subr.mxu0 %v950
        %v952 = vand.u32 %v377, 4294901760
        %v953 = vsub.f32 %v377, %v952
        %954 = vmatpush1.msra.mxu0 %v953
        %v955 = vand.u32 %v374, 4294901760
        %v956 = vsub.f32 %v374, %v955
        %957 = vmatprep.subr.mxu0 %v956
        %v958 = vand.u32 %v373, 4294901760
        %v959 = vsub.f32 %v373, %v958
        %960 = vmatpush1.msra.mxu0 %v959
        %v961 = vand.u32 %v370, 4294901760
        %v962 = vsub.f32 %v370, %v961
        %963 = vmatprep.subr.mxu0 %v962
        %v964 = vand.u32 %v369, 4294901760
        %v965 = vsub.f32 %v369, %v964
        %966 = vmatpush1.msra.mxu0 %v965
        %v967 = vand.u32 %v366, 4294901760
        %v968 = vsub.f32 %v366, %v967
        %969 = vmatprep.subr.mxu0 %v968
        %v970 = vand.u32 %v365, 4294901760
        %v971 = vsub.f32 %v365, %v970
        %972 = vmatpush1.msra.mxu0 %v971
        %v973 = vand.u32 %v362, 4294901760
        %v974 = vsub.f32 %v362, %v973
        %975 = vmatprep.subr.mxu0 %v974
        %v976 = vand.u32 %v361, 4294901760
        %v977 = vsub.f32 %v361, %v976
        %978 = vmatpush1.msra.mxu0 %v977
        %v979 = vand.u32 %v358, 4294901760
        %v980 = vsub.f32 %v358, %v979
        %981 = vmatprep.subr.mxu0 %v980
        %v982 = vand.u32 %v357, 4294901760
        %v983 = vsub.f32 %v357, %v982
        %984 = vmatpush1.msra.mxu0 %v983
        %v985 = vand.u32 %v354, 4294901760
        %v986 = vsub.f32 %v354, %v985
        %987 = vmatprep.subr.mxu0 %v986
        %v988 = vand.u32 %v353, 4294901760
        %v989 = vsub.f32 %v353, %v988
        %990 = vmatpush1.msra.mxu0 %v989
        %v991 = vand.u32 %v350, 4294901760
        %v992 = vsub.f32 %v350, %v991
        %993 = vmatprep.subr.mxu0 %v992
        %v994 = vand.u32 %v349, 4294901760
        %v995 = vsub.f32 %v349, %v994
        %996 = vmatpush1.msra.mxu0 %v995
        %997 = vmatprep.subr.mxu0 0.0
        %998 = vmatpush2.msra.mxu0 0.0
        %999 = vmatprep.subr.mxu0 0.0
        %1000 = vmatpush2.msra.mxu0 0.0
        %1001 = vmatprep.subr.mxu0 0.0
        %1002 = vmatpush2.msra.mxu0 0.0
        %1003 = vmatprep.subr.mxu0 0.0
        %1004 = vmatpush2.msra.mxu0 0.0
        %1005 = vmatprep.subr.mxu0 0.0
        %1006 = vmatpush2.msra.mxu0 0.0
        %1007 = vmatprep.subr.mxu0 0.0
        %1008 = vmatpush2.msra.mxu0 0.0
        %1009 = vmatprep.subr.mxu0 0.0
        %1010 = vmatpush2.msra.mxu0 0.0
        %1011 = vmatprep.subr.mxu0 0.0
        %1012 = vmatpush2.msra.mxu0 0.0
        %1013 = vmatprep.subr.mxu0 0.0
        %1014 = vmatpush2.msra.mxu0 0.0
        %1015 = vmatprep.subr.mxu0 0.0
        %1016 = vmatpush2.msra.mxu0 0.0
        %1017 = vmatprep.subr.mxu0 0.0
        %1018 = vmatpush2.msra.mxu0 0.0
        %1019 = vmatprep.subr.mxu0 0.0
        %1020 = vmatpush2.msra.mxu0 0.0
        %1021 = vmatprep.subr.mxu0 0.0
        %1022 = vmatpush2.msra.mxu0 0.0
        %1023 = vmatprep.subr.mxu0 0.0
        %1024 = vmatpush2.msra.mxu0 0.0
        %1025 = vmatprep.subr.mxu0 0.0
        %1026 = vmatpush2.msra.mxu0 0.0
        %1027 = vmatprep.subr.mxu0 0.0
        %1028 = vmatpush2.msra.mxu0 0.0
        %1029 = vmatprep.mubr.f32.mxu0 0.0
        %v1030 = vand.u32 %v341, 4294901760
        %v1031 = vsub.f32 %v341, %v1030
        %1032 = vmatmul.mubr.f32.gmra.mxu0 %v1031
        %v1033 = vpop.f32.mrf.mxu0
        %v1034 = vadd.f32 %v848, %v1033
        %v1035 = vpop.f32.mrf.mxu0
        %v1036 = vadd.f32 %v850, %v1035
        %1037 = vmatprep.mubr.f32.mxu0 0.0
        %v1038 = vand.u32 %v342, 4294901760
        %v1039 = vsub.f32 %v342, %v1038
        %1040 = vmatmul.mubr.f32.gmra.mxu0 %v1039
        %v1041 = vpop.f32.mrf.mxu0
        %v1042 = vadd.f32 %v855, %v1041
        %v1043 = vpop.f32.mrf.mxu0
        %v1044 = vadd.f32 %v857, %v1043
        %1045 = vmatprep.mubr.f32.mxu0 0.0
        %v1046 = vand.u32 %v343, 4294901760
        %v1047 = vsub.f32 %v343, %v1046
        %1048 = vmatmul.mubr.f32.gmra.mxu0 %v1047
        %v1049 = vpop.f32.mrf.mxu0
        %v1050 = vadd.f32 %v862, %v1049
        %v1051 = vpop.f32.mrf.mxu0
        %v1052 = vadd.f32 %v864, %v1051
        %1053 = vmatprep.mubr.f32.mxu0 0.0
        %v1054 = vand.u32 %v344, 4294901760
        %v1055 = vsub.f32 %v344, %v1054
        %1056 = vmatmul.mubr.f32.gmra.mxu0 %v1055
        %v1057 = vpop.f32.mrf.mxu0
        %v1058 = vadd.f32 %v869, %v1057
        %v1059 = vpop.f32.mrf.mxu0
        %v1060 = vadd.f32 %v871, %v1059
        %1061 = vmatprep.mubr.f32.mxu0 0.0
        %v1062 = vand.u32 %v345, 4294901760
        %v1063 = vsub.f32 %v345, %v1062
        %1064 = vmatmul.mubr.f32.gmra.mxu0 %v1063
        %v1065 = vpop.f32.mrf.mxu0
        %v1066 = vadd.f32 %v876, %v1065
        %v1067 = vpop.f32.mrf.mxu0
        %v1068 = vadd.f32 %v878, %v1067
        %1069 = vmatprep.mubr.f32.mxu0 0.0
        %v1070 = vand.u32 %v346, 4294901760
        %v1071 = vsub.f32 %v346, %v1070
        %1072 = vmatmul.mubr.f32.gmra.mxu0 %v1071
        %v1073 = vpop.f32.mrf.mxu0
        %v1074 = vadd.f32 %v883, %v1073
        %v1075 = vpop.f32.mrf.mxu0
        %v1076 = vadd.f32 %v885, %v1075
        %1077 = vmatprep.mubr.f32.mxu0 0.0
        %v1078 = vand.u32 %v347, 4294901760
        %v1079 = vsub.f32 %v347, %v1078
        %1080 = vmatmul.mubr.f32.gmra.mxu0 %v1079
        %v1081 = vpop.f32.mrf.mxu0
        %v1082 = vadd.f32 %v890, %v1081
        %v1083 = vpop.f32.mrf.mxu0
        %v1084 = vadd.f32 %v892, %v1083
        %1085 = vmatprep.mubr.f32.mxu0 0.0
        %v1086 = vand.u32 %v348, 4294901760
        %v1087 = vsub.f32 %v348, %v1086
        %1088 = vmatmul.mubr.f32.gmra.mxu0 %v1087
        %v1089 = vpop.f32.mrf.mxu0
        %v1090 = vadd.f32 %v897, %v1089
        %v1091 = vpop.f32.mrf.mxu0
        %v1092 = vadd.f32 %v899, %v1091
        %1093 = vdwg.mxu0
        %v1094 = vand.u32 %v410, 4294901760
        %1095 = vmatprep.subr.mxu0 %v1094
        %v1096 = vand.u32 %v409, 4294901760
        %1097 = vmatpush1.msra.mxu0 %v1096
        %v1098 = vand.u32 %v406, 4294901760
        %1099 = vmatprep.subr.mxu0 %v1098
        %v1100 = vand.u32 %v405, 4294901760
        %1101 = vmatpush1.msra.mxu0 %v1100
        %v1102 = vand.u32 %v402, 4294901760
        %1103 = vmatprep.subr.mxu0 %v1102
        %v1104 = vand.u32 %v401, 4294901760
        %1105 = vmatpush1.msra.mxu0 %v1104
        %v1106 = vand.u32 %v398, 4294901760
        %1107 = vmatprep.subr.mxu0 %v1106
        %v1108 = vand.u32 %v397, 4294901760
        %1109 = vmatpush1.msra.mxu0 %v1108
        %v1110 = vand.u32 %v394, 4294901760
        %1111 = vmatprep.subr.mxu0 %v1110
        %v1112 = vand.u32 %v393, 4294901760
        %1113 = vmatpush1.msra.mxu0 %v1112
        %v1114 = vand.u32 %v390, 4294901760
        %1115 = vmatprep.subr.mxu0 %v1114
        %v1116 = vand.u32 %v389, 4294901760
        %1117 = vmatpush1.msra.mxu0 %v1116
        %v1118 = vand.u32 %v386, 4294901760
        %1119 = vmatprep.subr.mxu0 %v1118
        %v1120 = vand.u32 %v385, 4294901760
        %1121 = vmatpush1.msra.mxu0 %v1120
        %v1122 = vand.u32 %v382, 4294901760
        %1123 = vmatprep.subr.mxu0 %v1122
        %v1124 = vand.u32 %v381, 4294901760
        %1125 = vmatpush1.msra.mxu0 %v1124
        %v1126 = vand.u32 %v378, 4294901760
        %1127 = vmatprep.subr.mxu0 %v1126
        %v1128 = vand.u32 %v377, 4294901760
        %1129 = vmatpush1.msra.mxu0 %v1128
        %v1130 = vand.u32 %v374, 4294901760
        %1131 = vmatprep.subr.mxu0 %v1130
        %v1132 = vand.u32 %v373, 4294901760
        %1133 = vmatpush1.msra.mxu0 %v1132
        %v1134 = vand.u32 %v370, 4294901760
        %1135 = vmatprep.subr.mxu0 %v1134
        %v1136 = vand.u32 %v369, 4294901760
        %1137 = vmatpush1.msra.mxu0 %v1136
        %v1138 = vand.u32 %v366, 4294901760
        %1139 = vmatprep.subr.mxu0 %v1138
        %v1140 = vand.u32 %v365, 4294901760
        %1141 = vmatpush1.msra.mxu0 %v1140
        %v1142 = vand.u32 %v362, 4294901760
        %1143 = vmatprep.subr.mxu0 %v1142
        %v1144 = vand.u32 %v361, 4294901760
        %1145 = vmatpush1.msra.mxu0 %v1144
        %v1146 = vand.u32 %v358, 4294901760
        %1147 = vmatprep.subr.mxu0 %v1146
        %v1148 = vand.u32 %v357, 4294901760
        %1149 = vmatpush1.msra.mxu0 %v1148
        %v1150 = vand.u32 %v354, 4294901760
        %1151 = vmatprep.subr.mxu0 %v1150
        %v1152 = vand.u32 %v353, 4294901760
        %1153 = vmatpush1.msra.mxu0 %v1152
        %v1154 = vand.u32 %v350, 4294901760
        %1155 = vmatprep.subr.mxu0 %v1154
        %v1156 = vand.u32 %v349, 4294901760
        %1157 = vmatpush1.msra.mxu0 %v1156
        %1158 = vmatprep.subr.mxu0 0.0
        %1159 = vmatpush2.msra.mxu0 0.0
        %1160 = vmatprep.subr.mxu0 0.0
        %1161 = vmatpush2.msra.mxu0 0.0
        %1162 = vmatprep.subr.mxu0 0.0
        %1163 = vmatpush2.msra.mxu0 0.0
        %1164 = vmatprep.subr.mxu0 0.0
        %1165 = vmatpush2.msra.mxu0 0.0
        %1166 = vmatprep.subr.mxu0 0.0
        %1167 = vmatpush2.msra.mxu0 0.0
        %1168 = vmatprep.subr.mxu0 0.0
        %1169 = vmatpush2.msra.mxu0 0.0
        %1170 = vmatprep.subr.mxu0 0.0
        %1171 = vmatpush2.msra.mxu0 0.0
        %1172 = vmatprep.subr.mxu0 0.0
        %1173 = vmatpush2.msra.mxu0 0.0
        %1174 = vmatprep.subr.mxu0 0.0
        %1175 = vmatpush2.msra.mxu0 0.0
        %1176 = vmatprep.subr.mxu0 0.0
        %1177 = vmatpush2.msra.mxu0 0.0
        %1178 = vmatprep.subr.mxu0 0.0
        %1179 = vmatpush2.msra.mxu0 0.0
        %1180 = vmatprep.subr.mxu0 0.0
        %1181 = vmatpush2.msra.mxu0 0.0
        %1182 = vmatprep.subr.mxu0 0.0
        %1183 = vmatpush2.msra.mxu0 0.0
        %1184 = vmatprep.subr.mxu0 0.0
        %1185 = vmatpush2.msra.mxu0 0.0
        %1186 = vmatprep.subr.mxu0 0.0
        %1187 = vmatpush2.msra.mxu0 0.0
        %1188 = vmatprep.subr.mxu0 0.0
        %1189 = vmatpush2.msra.mxu0 0.0
        %1190 = vmatprep.mubr.f32.mxu0 0.0
        %v1191 = vand.u32 %v341, 4294901760
        %v1192 = vsub.f32 %v341, %v1191
        %v1193 = vand.u32 %v1192, 4294901760
        %1194 = vmatmul.mubr.f32.gmra.mxu0 %v1193
        %v1195 = vpop.f32.mrf.mxu0
        %v1196 = vadd.f32 %v1034, %v1195
        %v1197 = vpop.f32.mrf.mxu0
        %v1198 = vadd.f32 %v1036, %v1197
        %1199 = vmatprep.mubr.f32.mxu0 0.0
        %v1200 = vand.u32 %v342, 4294901760
        %v1201 = vsub.f32 %v342, %v1200
        %v1202 = vand.u32 %v1201, 4294901760
        %1203 = vmatmul.mubr.f32.gmra.mxu0 %v1202
        %v1204 = vpop.f32.mrf.mxu0
        %v1205 = vadd.f32 %v1042, %v1204
        %v1206 = vpop.f32.mrf.mxu0
        %v1207 = vadd.f32 %v1044, %v1206
        %1208 = vmatprep.mubr.f32.mxu0 0.0
        %v1209 = vand.u32 %v343, 4294901760
        %v1210 = vsub.f32 %v343, %v1209
        %v1211 = vand.u32 %v1210, 4294901760
        %1212 = vmatmul.mubr.f32.gmra.mxu0 %v1211
        %v1213 = vpop.f32.mrf.mxu0
        %v1214 = vadd.f32 %v1050, %v1213
        %v1215 = vpop.f32.mrf.mxu0
        %v1216 = vadd.f32 %v1052, %v1215
        %1217 = vmatprep.mubr.f32.mxu0 0.0
        %v1218 = vand.u32 %v344, 4294901760
        %v1219 = vsub.f32 %v344, %v1218
        %v1220 = vand.u32 %v1219, 4294901760
        %1221 = vmatmul.mubr.f32.gmra.mxu0 %v1220
        %v1222 = vpop.f32.mrf.mxu0
        %v1223 = vadd.f32 %v1058, %v1222
        %v1224 = vpop.f32.mrf.mxu0
        %v1225 = vadd.f32 %v1060, %v1224
        %1226 = vmatprep.mubr.f32.mxu0 0.0
        %v1227 = vand.u32 %v345, 4294901760
        %v1228 = vsub.f32 %v345, %v1227
        %v1229 = vand.u32 %v1228, 4294901760
        %1230 = vmatmul.mubr.f32.gmra.mxu0 %v1229
        %v1231 = vpop.f32.mrf.mxu0
        %v1232 = vadd.f32 %v1066, %v1231
        %v1233 = vpop.f32.mrf.mxu0
        %v1234 = vadd.f32 %v1068, %v1233
        %1235 = vmatprep.mubr.f32.mxu0 0.0
        %v1236 = vand.u32 %v346, 4294901760
        %v1237 = vsub.f32 %v346, %v1236
        %v1238 = vand.u32 %v1237, 4294901760
        %1239 = vmatmul.mubr.f32.gmra.mxu0 %v1238
        %v1240 = vpop.f32.mrf.mxu0
        %v1241 = vadd.f32 %v1074, %v1240
        %v1242 = vpop.f32.mrf.mxu0
        %v1243 = vadd.f32 %v1076, %v1242
        %1244 = vmatprep.mubr.f32.mxu0 0.0
        %v1245 = vand.u32 %v347, 4294901760
        %v1246 = vsub.f32 %v347, %v1245
        %v1247 = vand.u32 %v1246, 4294901760
        %1248 = vmatmul.mubr.f32.gmra.mxu0 %v1247
        %v1249 = vpop.f32.mrf.mxu0
        %v1250 = vadd.f32 %v1082, %v1249
        %v1251 = vpop.f32.mrf.mxu0
        %v1252 = vadd.f32 %v1084, %v1251
        %1253 = vmatprep.mubr.f32.mxu0 0.0
        %v1254 = vand.u32 %v348, 4294901760
        %v1255 = vsub.f32 %v348, %v1254
        %v1256 = vand.u32 %v1255, 4294901760
        %1257 = vmatmul.mubr.f32.gmra.mxu0 %v1256
        %v1258 = vpop.f32.mrf.mxu0
        %v1259 = vadd.f32 %v1090, %v1258
        %v1260 = vpop.f32.mrf.mxu0
        %v1261 = vadd.f32 %v1092, %v1260
        %1262 = vdwg.mxu0
        %v1263 = vand.u32 %v410, 4294901760
        %v1264 = vsub.f32 %v410, %v1263
        %v1265 = vand.u32 %v1264, 4294901760
        %1266 = vmatprep.subr.mxu0 %v1265
        %v1267 = vand.u32 %v409, 4294901760
        %v1268 = vsub.f32 %v409, %v1267
        %v1269 = vand.u32 %v1268, 4294901760
        %1270 = vmatpush1.msra.mxu0 %v1269
        %v1271 = vand.u32 %v406, 4294901760
        %v1272 = vsub.f32 %v406, %v1271
        %v1273 = vand.u32 %v1272, 4294901760
        %1274 = vmatprep.subr.mxu0 %v1273
        %v1275 = vand.u32 %v405, 4294901760
        %v1276 = vsub.f32 %v405, %v1275
        %v1277 = vand.u32 %v1276, 4294901760
        %1278 = vmatpush1.msra.mxu0 %v1277
        %v1279 = vand.u32 %v402, 4294901760
        %v1280 = vsub.f32 %v402, %v1279
        %v1281 = vand.u32 %v1280, 4294901760
        %1282 = vmatprep.subr.mxu0 %v1281
        %v1283 = vand.u32 %v401, 4294901760
        %v1284 = vsub.f32 %v401, %v1283
        %v1285 = vand.u32 %v1284, 4294901760
        %1286 = vmatpush1.msra.mxu0 %v1285
        %v1287 = vand.u32 %v398, 4294901760
        %v1288 = vsub.f32 %v398, %v1287
        %v1289 = vand.u32 %v1288, 4294901760
        %1290 = vmatprep.subr.mxu0 %v1289
        %v1291 = vand.u32 %v397, 4294901760
        %v1292 = vsub.f32 %v397, %v1291
        %v1293 = vand.u32 %v1292, 4294901760
        %1294 = vmatpush1.msra.mxu0 %v1293
        %v1295 = vand.u32 %v394, 4294901760
        %v1296 = vsub.f32 %v394, %v1295
        %v1297 = vand.u32 %v1296, 4294901760
        %1298 = vmatprep.subr.mxu0 %v1297
        %v1299 = vand.u32 %v393, 4294901760
        %v1300 = vsub.f32 %v393, %v1299
        %v1301 = vand.u32 %v1300, 4294901760
        %1302 = vmatpush1.msra.mxu0 %v1301
        %v1303 = vand.u32 %v390, 4294901760
        %v1304 = vsub.f32 %v390, %v1303
        %v1305 = vand.u32 %v1304, 4294901760
        %1306 = vmatprep.subr.mxu0 %v1305
        %v1307 = vand.u32 %v389, 4294901760
        %v1308 = vsub.f32 %v389, %v1307
        %v1309 = vand.u32 %v1308, 4294901760
        %1310 = vmatpush1.msra.mxu0 %v1309
        %v1311 = vand.u32 %v386, 4294901760
        %v1312 = vsub.f32 %v386, %v1311
        %v1313 = vand.u32 %v1312, 4294901760
        %1314 = vmatprep.subr.mxu0 %v1313
        %v1315 = vand.u32 %v385, 4294901760
        %v1316 = vsub.f32 %v385, %v1315
        %v1317 = vand.u32 %v1316, 4294901760
        %1318 = vmatpush1.msra.mxu0 %v1317
        %v1319 = vand.u32 %v382, 4294901760
        %v1320 = vsub.f32 %v382, %v1319
        %v1321 = vand.u32 %v1320, 4294901760
        %1322 = vmatprep.subr.mxu0 %v1321
        %v1323 = vand.u32 %v381, 4294901760
        %v1324 = vsub.f32 %v381, %v1323
        %v1325 = vand.u32 %v1324, 4294901760
        %1326 = vmatpush1.msra.mxu0 %v1325
        %v1327 = vand.u32 %v378, 4294901760
        %v1328 = vsub.f32 %v378, %v1327
        %v1329 = vand.u32 %v1328, 4294901760
        %1330 = vmatprep.subr.mxu0 %v1329
        %v1331 = vand.u32 %v377, 4294901760
        %v1332 = vsub.f32 %v377, %v1331
        %v1333 = vand.u32 %v1332, 4294901760
        %1334 = vmatpush1.msra.mxu0 %v1333
        %v1335 = vand.u32 %v374, 4294901760
        %v1336 = vsub.f32 %v374, %v1335
        %v1337 = vand.u32 %v1336, 4294901760
        %1338 = vmatprep.subr.mxu0 %v1337
        %v1339 = vand.u32 %v373, 4294901760
        %v1340 = vsub.f32 %v373, %v1339
        %v1341 = vand.u32 %v1340, 4294901760
        %1342 = vmatpush1.msra.mxu0 %v1341
        %v1343 = vand.u32 %v370, 4294901760
        %v1344 = vsub.f32 %v370, %v1343
        %v1345 = vand.u32 %v1344, 4294901760
        %1346 = vmatprep.subr.mxu0 %v1345
        %v1347 = vand.u32 %v369, 4294901760
        %v1348 = vsub.f32 %v369, %v1347
        %v1349 = vand.u32 %v1348, 4294901760
        %1350 = vmatpush1.msra.mxu0 %v1349
        %v1351 = vand.u32 %v366, 4294901760
        %v1352 = vsub.f32 %v366, %v1351
        %v1353 = vand.u32 %v1352, 4294901760
        %1354 = vmatprep.subr.mxu0 %v1353
        %v1355 = vand.u32 %v365, 4294901760
        %v1356 = vsub.f32 %v365, %v1355
        %v1357 = vand.u32 %v1356, 4294901760
        %1358 = vmatpush1.msra.mxu0 %v1357
        %v1359 = vand.u32 %v362, 4294901760
        %v1360 = vsub.f32 %v362, %v1359
        %v1361 = vand.u32 %v1360, 4294901760
        %1362 = vmatprep.subr.mxu0 %v1361
        %v1363 = vand.u32 %v361, 4294901760
        %v1364 = vsub.f32 %v361, %v1363
        %v1365 = vand.u32 %v1364, 4294901760
        %1366 = vmatpush1.msra.mxu0 %v1365
        %v1367 = vand.u32 %v358, 4294901760
        %v1368 = vsub.f32 %v358, %v1367
        %v1369 = vand.u32 %v1368, 4294901760
        %1370 = vmatprep.subr.mxu0 %v1369
        %v1371 = vand.u32 %v357, 4294901760
        %v1372 = vsub.f32 %v357, %v1371
        %v1373 = vand.u32 %v1372, 4294901760
        %1374 = vmatpush1.msra.mxu0 %v1373
        %v1375 = vand.u32 %v354, 4294901760
        %v1376 = vsub.f32 %v354, %v1375
        %v1377 = vand.u32 %v1376, 4294901760
        %1378 = vmatprep.subr.mxu0 %v1377
        %v1379 = vand.u32 %v353, 4294901760
        %v1380 = vsub.f32 %v353, %v1379
        %v1381 = vand.u32 %v1380, 4294901760
        %1382 = vmatpush1.msra.mxu0 %v1381
        %v1383 = vand.u32 %v350, 4294901760
        %v1384 = vsub.f32 %v350, %v1383
        %v1385 = vand.u32 %v1384, 4294901760
        %1386 = vmatprep.subr.mxu0 %v1385
        %v1387 = vand.u32 %v349, 4294901760
        %v1388 = vsub.f32 %v349, %v1387
        %v1389 = vand.u32 %v1388, 4294901760
        %1390 = vmatpush1.msra.mxu0 %v1389
        %1391 = vmatprep.subr.mxu0 0.0
        %1392 = vmatpush2.msra.mxu0 0.0
        %1393 = vmatprep.subr.mxu0 0.0
        %1394 = vmatpush2.msra.mxu0 0.0
        %1395 = vmatprep.subr.mxu0 0.0
        %1396 = vmatpush2.msra.mxu0 0.0
        %1397 = vmatprep.subr.mxu0 0.0
        %1398 = vmatpush2.msra.mxu0 0.0
        %1399 = vmatprep.subr.mxu0 0.0
        %1400 = vmatpush2.msra.mxu0 0.0
        %1401 = vmatprep.subr.mxu0 0.0
        %1402 = vmatpush2.msra.mxu0 0.0
        %1403 = vmatprep.subr.mxu0 0.0
        %1404 = vmatpush2.msra.mxu0 0.0
        %1405 = vmatprep.subr.mxu0 0.0
        %1406 = vmatpush2.msra.mxu0 0.0
        %1407 = vmatprep.subr.mxu0 0.0
        %1408 = vmatpush2.msra.mxu0 0.0
        %1409 = vmatprep.subr.mxu0 0.0
        %1410 = vmatpush2.msra.mxu0 0.0
        %1411 = vmatprep.subr.mxu0 0.0
        %1412 = vmatpush2.msra.mxu0 0.0
        %1413 = vmatprep.subr.mxu0 0.0
        %1414 = vmatpush2.msra.mxu0 0.0
        %1415 = vmatprep.subr.mxu0 0.0
        %1416 = vmatpush2.msra.mxu0 0.0
        %1417 = vmatprep.subr.mxu0 0.0
        %1418 = vmatpush2.msra.mxu0 0.0
        %1419 = vmatprep.subr.mxu0 0.0
        %1420 = vmatpush2.msra.mxu0 0.0
        %1421 = vmatprep.subr.mxu0 0.0
        %1422 = vmatpush2.msra.mxu0 0.0
        %1423 = vmatprep.mubr.f32.mxu0 0.0
        %v1424 = vand.u32 %v341, 4294901760
        %1425 = vmatmul.mubr.f32.gmra.mxu0 %v1424
        %v1426 = vpop.f32.mrf.mxu0
        %v1427 = vadd.f32 %v1196, %v1426
        %v1428 = vpop.f32.mrf.mxu0
        %v1429 = vadd.f32 %v1198, %v1428
        %1430 = vmatprep.mubr.f32.mxu0 0.0
        %v1431 = vand.u32 %v342, 4294901760
        %1432 = vmatmul.mubr.f32.gmra.mxu0 %v1431
        %v1433 = vpop.f32.mrf.mxu0
        %v1434 = vadd.f32 %v1205, %v1433
        %v1435 = vpop.f32.mrf.mxu0
        %v1436 = vadd.f32 %v1207, %v1435
        %1437 = vmatprep.mubr.f32.mxu0 0.0
        %v1438 = vand.u32 %v343, 4294901760
        %1439 = vmatmul.mubr.f32.gmra.mxu0 %v1438
        %v1440 = vpop.f32.mrf.mxu0
        %v1441 = vadd.f32 %v1214, %v1440
        %v1442 = vpop.f32.mrf.mxu0
        %v1443 = vadd.f32 %v1216, %v1442
        %1444 = vmatprep.mubr.f32.mxu0 0.0
        %v1445 = vand.u32 %v344, 4294901760
        %1446 = vmatmul.mubr.f32.gmra.mxu0 %v1445
        %v1447 = vpop.f32.mrf.mxu0
        %v1448 = vadd.f32 %v1223, %v1447
        %v1449 = vpop.f32.mrf.mxu0
        %v1450 = vadd.f32 %v1225, %v1449
        %1451 = vmatprep.mubr.f32.mxu0 0.0
        %v1452 = vand.u32 %v345, 4294901760
        %1453 = vmatmul.mubr.f32.gmra.mxu0 %v1452
        %v1454 = vpop.f32.mrf.mxu0
        %v1455 = vadd.f32 %v1232, %v1454
        %v1456 = vpop.f32.mrf.mxu0
        %v1457 = vadd.f32 %v1234, %v1456
        %1458 = vmatprep.mubr.f32.mxu0 0.0
        %v1459 = vand.u32 %v346, 4294901760
        %1460 = vmatmul.mubr.f32.gmra.mxu0 %v1459
        %v1461 = vpop.f32.mrf.mxu0
        %v1462 = vadd.f32 %v1241, %v1461
        %v1463 = vpop.f32.mrf.mxu0
        %v1464 = vadd.f32 %v1243, %v1463
        %1465 = vmatprep.mubr.f32.mxu0 0.0
        %v1466 = vand.u32 %v347, 4294901760
        %1467 = vmatmul.mubr.f32.gmra.mxu0 %v1466
        %v1468 = vpop.f32.mrf.mxu0
        %v1469 = vadd.f32 %v1250, %v1468
        %v1470 = vpop.f32.mrf.mxu0
        %v1471 = vadd.f32 %v1252, %v1470
        %1472 = vmatprep.mubr.f32.mxu0 0.0
        %v1473 = vand.u32 %v348, 4294901760
        %1474 = vmatmul.mubr.f32.gmra.mxu0 %v1473
        %v1475 = vpop.f32.mrf.mxu0
        %v1476 = vadd.f32 %v1259, %v1475
        %v1477 = vpop.f32.mrf.mxu0
        %v1478 = vadd.f32 %v1261, %v1477
        %1479 = vdwg.mxu0
        %v1480 = vand.u32 %v410, 4294901760
        %1481 = vmatprep.subr.mxu0 %v1480
        %v1482 = vand.u32 %v409, 4294901760
        %1483 = vmatpush1.msra.mxu0 %v1482
        %v1484 = vand.u32 %v406, 4294901760
        %1485 = vmatprep.subr.mxu0 %v1484
        %v1486 = vand.u32 %v405, 4294901760
        %1487 = vmatpush1.msra.mxu0 %v1486
        %v1488 = vand.u32 %v402, 4294901760
        %1489 = vmatprep.subr.mxu0 %v1488
        %v1490 = vand.u32 %v401, 4294901760
        %1491 = vmatpush1.msra.mxu0 %v1490
        %v1492 = vand.u32 %v398, 4294901760
        %1493 = vmatprep.subr.mxu0 %v1492
        %v1494 = vand.u32 %v397, 4294901760
        %1495 = vmatpush1.msra.mxu0 %v1494
        %v1496 = vand.u32 %v394, 4294901760
        %1497 = vmatprep.subr.mxu0 %v1496
        %v1498 = vand.u32 %v393, 4294901760
        %1499 = vmatpush1.msra.mxu0 %v1498
        %v1500 = vand.u32 %v390, 4294901760
        %1501 = vmatprep.subr.mxu0 %v1500
        %v1502 = vand.u32 %v389, 4294901760
        %1503 = vmatpush1.msra.mxu0 %v1502
        %v1504 = vand.u32 %v386, 4294901760
        %1505 = vmatprep.subr.mxu0 %v1504
        %v1506 = vand.u32 %v385, 4294901760
        %1507 = vmatpush1.msra.mxu0 %v1506
        %v1508 = vand.u32 %v382, 4294901760
        %1509 = vmatprep.subr.mxu0 %v1508
        %v1510 = vand.u32 %v381, 4294901760
        %1511 = vmatpush1.msra.mxu0 %v1510
        %v1512 = vand.u32 %v378, 4294901760
        %1513 = vmatprep.subr.mxu0 %v1512
        %v1514 = vand.u32 %v377, 4294901760
        %1515 = vmatpush1.msra.mxu0 %v1514
        %v1516 = vand.u32 %v374, 4294901760
        %1517 = vmatprep.subr.mxu0 %v1516
        %v1518 = vand.u32 %v373, 4294901760
        %1519 = vmatpush1.msra.mxu0 %v1518
        %v1520 = vand.u32 %v370, 4294901760
        %1521 = vmatprep.subr.mxu0 %v1520
        %v1522 = vand.u32 %v369, 4294901760
        %1523 = vmatpush1.msra.mxu0 %v1522
        %v1524 = vand.u32 %v366, 4294901760
        %1525 = vmatprep.subr.mxu0 %v1524
        %v1526 = vand.u32 %v365, 4294901760
        %1527 = vmatpush1.msra.mxu0 %v1526
        %v1528 = vand.u32 %v362, 4294901760
        %1529 = vmatprep.subr.mxu0 %v1528
        %v1530 = vand.u32 %v361, 4294901760
        %1531 = vmatpush1.msra.mxu0 %v1530
        %v1532 = vand.u32 %v358, 4294901760
        %1533 = vmatprep.subr.mxu0 %v1532
        %v1534 = vand.u32 %v357, 4294901760
        %1535 = vmatpush1.msra.mxu0 %v1534
        %v1536 = vand.u32 %v354, 4294901760
        %1537 = vmatprep.subr.mxu0 %v1536
        %v1538 = vand.u32 %v353, 4294901760
        %1539 = vmatpush1.msra.mxu0 %v1538
        %v1540 = vand.u32 %v350, 4294901760
        %1541 = vmatprep.subr.mxu0 %v1540
        %v1542 = vand.u32 %v349, 4294901760
        %1543 = vmatpush1.msra.mxu0 %v1542
        %1544 = vmatprep.subr.mxu0 0.0
        %1545 = vmatpush2.msra.mxu0 0.0
        %1546 = vmatprep.subr.mxu0 0.0
        %1547 = vmatpush2.msra.mxu0 0.0
        %1548 = vmatprep.subr.mxu0 0.0
        %1549 = vmatpush2.msra.mxu0 0.0
        %1550 = vmatprep.subr.mxu0 0.0
        %1551 = vmatpush2.msra.mxu0 0.0
        %1552 = vmatprep.subr.mxu0 0.0
        %1553 = vmatpush2.msra.mxu0 0.0
        %1554 = vmatprep.subr.mxu0 0.0
        %1555 = vmatpush2.msra.mxu0 0.0
        %1556 = vmatprep.subr.mxu0 0.0
        %1557 = vmatpush2.msra.mxu0 0.0
        %1558 = vmatprep.subr.mxu0 0.0
        %1559 = vmatpush2.msra.mxu0 0.0
        %1560 = vmatprep.subr.mxu0 0.0
        %1561 = vmatpush2.msra.mxu0 0.0
        %1562 = vmatprep.subr.mxu0 0.0
        %1563 = vmatpush2.msra.mxu0 0.0
        %1564 = vmatprep.subr.mxu0 0.0
        %1565 = vmatpush2.msra.mxu0 0.0
        %1566 = vmatprep.subr.mxu0 0.0
        %1567 = vmatpush2.msra.mxu0 0.0
        %1568 = vmatprep.subr.mxu0 0.0
        %1569 = vmatpush2.msra.mxu0 0.0
        %1570 = vmatprep.subr.mxu0 0.0
        %1571 = vmatpush2.msra.mxu0 0.0
        %1572 = vmatprep.subr.mxu0 0.0
        %1573 = vmatpush2.msra.mxu0 0.0
        %1574 = vmatprep.subr.mxu0 0.0
        %1575 = vmatpush2.msra.mxu0 0.0
        %1576 = vmatprep.mubr.f32.mxu0 0.0
        %v1577 = vand.u32 %v341, 4294901760
        %1578 = vmatmul.mubr.f32.gmra.mxu0 %v1577
        %v1579 = vpop.f32.mrf.mxu0
        %v1580 = vadd.f32 %v1427, %v1579
        %v1581 = vpop.f32.mrf.mxu0
        %v1582 = vadd.f32 %v1429, %v1581
        %1583 = vmatprep.mubr.f32.mxu0 0.0
        %v1584 = vand.u32 %v342, 4294901760
        %1585 = vmatmul.mubr.f32.gmra.mxu0 %v1584
        %v1586 = vpop.f32.mrf.mxu0
        %v1587 = vadd.f32 %v1434, %v1586
        %v1588 = vpop.f32.mrf.mxu0
        %v1589 = vadd.f32 %v1436, %v1588
        %1590 = vmatprep.mubr.f32.mxu0 0.0
        %v1591 = vand.u32 %v343, 4294901760
        %1592 = vmatmul.mubr.f32.gmra.mxu0 %v1591
        %v1593 = vpop.f32.mrf.mxu0
        %v1594 = vadd.f32 %v1441, %v1593
        %v1595 = vpop.f32.mrf.mxu0
        %v1596 = vadd.f32 %v1443, %v1595
        %1597 = vmatprep.mubr.f32.mxu0 0.0
        %v1598 = vand.u32 %v344, 4294901760
        %1599 = vmatmul.mubr.f32.gmra.mxu0 %v1598
        %v1600 = vpop.f32.mrf.mxu0
        %v1601 = vadd.f32 %v1448, %v1600
        %v1602 = vpop.f32.mrf.mxu0
        %v1603 = vadd.f32 %v1450, %v1602
        %1604 = vmatprep.mubr.f32.mxu0 0.0
        %v1605 = vand.u32 %v345, 4294901760
        %1606 = vmatmul.mubr.f32.gmra.mxu0 %v1605
        %v1607 = vpop.f32.mrf.mxu0
        %v1608 = vadd.f32 %v1455, %v1607
        %v1609 = vpop.f32.mrf.mxu0
        %v1610 = vadd.f32 %v1457, %v1609
        %1611 = vmatprep.mubr.f32.mxu0 0.0
        %v1612 = vand.u32 %v346, 4294901760
        %1613 = vmatmul.mubr.f32.gmra.mxu0 %v1612
        %v1614 = vpop.f32.mrf.mxu0
        %v1615 = vadd.f32 %v1462, %v1614
        %v1616 = vpop.f32.mrf.mxu0
        %v1617 = vadd.f32 %v1464, %v1616
        %1618 = vmatprep.mubr.f32.mxu0 0.0
        %v1619 = vand.u32 %v347, 4294901760
        %1620 = vmatmul.mubr.f32.gmra.mxu0 %v1619
        %v1621 = vpop.f32.mrf.mxu0
        %v1622 = vadd.f32 %v1469, %v1621
        %v1623 = vpop.f32.mrf.mxu0
        %v1624 = vadd.f32 %v1471, %v1623
        %1625 = vmatprep.mubr.f32.mxu0 0.0
        %v1626 = vand.u32 %v348, 4294901760
        %1627 = vmatmul.mubr.f32.gmra.mxu0 %v1626
        %v1628 = vpop.f32.mrf.mxu0
        %v1629 = vadd.f32 %v1476, %v1628
        %v1630 = vpop.f32.mrf.mxu0
        %v1631 = vadd.f32 %v1478, %v1630
        %1632 = vdwg.mxu0
        %v1633 = vand.u32 %v412, 4294901760
        %1634 = vmatprep.subr.mxu0 %v1633
        %v1635 = vand.u32 %v411, 4294901760
        %1636 = vmatpush1.msra.mxu0 %v1635
        %v1637 = vand.u32 %v408, 4294901760
        %1638 = vmatprep.subr.mxu0 %v1637
        %v1639 = vand.u32 %v407, 4294901760
        %1640 = vmatpush1.msra.mxu0 %v1639
        %v1641 = vand.u32 %v404, 4294901760
        %1642 = vmatprep.subr.mxu0 %v1641
        %v1643 = vand.u32 %v403, 4294901760
        %1644 = vmatpush1.msra.mxu0 %v1643
        %v1645 = vand.u32 %v400, 4294901760
        %1646 = vmatprep.subr.mxu0 %v1645
        %v1647 = vand.u32 %v399, 4294901760
        %1648 = vmatpush1.msra.mxu0 %v1647
        %v1649 = vand.u32 %v396, 4294901760
        %1650 = vmatprep.subr.mxu0 %v1649
        %v1651 = vand.u32 %v395, 4294901760
        %1652 = vmatpush1.msra.mxu0 %v1651
        %v1653 = vand.u32 %v392, 4294901760
        %1654 = vmatprep.subr.mxu0 %v1653
        %v1655 = vand.u32 %v391, 4294901760
        %1656 = vmatpush1.msra.mxu0 %v1655
        %v1657 = vand.u32 %v388, 4294901760
        %1658 = vmatprep.subr.mxu0 %v1657
        %v1659 = vand.u32 %v387, 4294901760
        %1660 = vmatpush1.msra.mxu0 %v1659
        %v1661 = vand.u32 %v384, 4294901760
        %1662 = vmatprep.subr.mxu0 %v1661
        %v1663 = vand.u32 %v383, 4294901760
        %1664 = vmatpush1.msra.mxu0 %v1663
        %v1665 = vand.u32 %v380, 4294901760
        %1666 = vmatprep.subr.mxu0 %v1665
        %v1667 = vand.u32 %v379, 4294901760
        %1668 = vmatpush1.msra.mxu0 %v1667
        %v1669 = vand.u32 %v376, 4294901760
        %1670 = vmatprep.subr.mxu0 %v1669
        %v1671 = vand.u32 %v375, 4294901760
        %1672 = vmatpush1.msra.mxu0 %v1671
        %v1673 = vand.u32 %v372, 4294901760
        %1674 = vmatprep.subr.mxu0 %v1673
        %v1675 = vand.u32 %v371, 4294901760
        %1676 = vmatpush1.msra.mxu0 %v1675
        %v1677 = vand.u32 %v368, 4294901760
        %1678 = vmatprep.subr.mxu0 %v1677
        %v1679 = vand.u32 %v367, 4294901760
        %1680 = vmatpush1.msra.mxu0 %v1679
        %v1681 = vand.u32 %v364, 4294901760
        %1682 = vmatprep.subr.mxu0 %v1681
        %v1683 = vand.u32 %v363, 4294901760
        %1684 = vmatpush1.msra.mxu0 %v1683
        %v1685 = vand.u32 %v360, 4294901760
        %1686 = vmatprep.subr.mxu0 %v1685
        %v1687 = vand.u32 %v359, 4294901760
        %1688 = vmatpush1.msra.mxu0 %v1687
        %v1689 = vand.u32 %v356, 4294901760
        %1690 = vmatprep.subr.mxu0 %v1689
        %v1691 = vand.u32 %v355, 4294901760
        %1692 = vmatpush1.msra.mxu0 %v1691
        %v1693 = vand.u32 %v352, 4294901760
        %1694 = vmatprep.subr.mxu0 %v1693
        %v1695 = vand.u32 %v351, 4294901760
        %1696 = vmatpush1.msra.mxu0 %v1695
        %1697 = vmatprep.subr.mxu0 0.0
        %1698 = vmatpush2.msra.mxu0 0.0
        %1699 = vmatprep.subr.mxu0 0.0
        %1700 = vmatpush2.msra.mxu0 0.0
        %1701 = vmatprep.subr.mxu0 0.0
        %1702 = vmatpush2.msra.mxu0 0.0
        %1703 = vmatprep.subr.mxu0 0.0
        %1704 = vmatpush2.msra.mxu0 0.0
        %1705 = vmatprep.subr.mxu0 0.0
        %1706 = vmatpush2.msra.mxu0 0.0
        %1707 = vmatprep.subr.mxu0 0.0
        %1708 = vmatpush2.msra.mxu0 0.0
        %1709 = vmatprep.subr.mxu0 0.0
        %1710 = vmatpush2.msra.mxu0 0.0
        %1711 = vmatprep.subr.mxu0 0.0
        %1712 = vmatpush2.msra.mxu0 0.0
        %1713 = vmatprep.subr.mxu0 0.0
        %1714 = vmatpush2.msra.mxu0 0.0
        %1715 = vmatprep.subr.mxu0 0.0
        %1716 = vmatpush2.msra.mxu0 0.0
        %1717 = vmatprep.subr.mxu0 0.0
        %1718 = vmatpush2.msra.mxu0 0.0
        %1719 = vmatprep.subr.mxu0 0.0
        %1720 = vmatpush2.msra.mxu0 0.0
        %1721 = vmatprep.subr.mxu0 0.0
        %1722 = vmatpush2.msra.mxu0 0.0
        %1723 = vmatprep.subr.mxu0 0.0
        %1724 = vmatpush2.msra.mxu0 0.0
        %1725 = vmatprep.subr.mxu0 0.0
        %1726 = vmatpush2.msra.mxu0 0.0
        %1727 = vmatprep.subr.mxu0 0.0
        %1728 = vmatpush2.msra.mxu0 0.0
        %1729 = vmatprep.mubr.f32.mxu0 0.0
        %v1730 = vand.u32 %v341, 4294901760
        %v1731 = vsub.f32 %v341, %v1730
        %v1732 = vand.u32 %v1731, 4294901760
        %v1733 = vsub.f32 %v1731, %v1732
        %v1734 = vand.u32 %v1733, 4294901760
        %1735 = vmatmul.mubr.f32.gmra.mxu0 %v1734
        %v1736 = vpop.f32.mrf.mxu0
        %v1737 = vadd.f32 %v426, %v1736
        %v1738 = vpop.f32.mrf.mxu0
        %v1739 = vadd.f32 %v430, %v1738
        %1740 = vmatprep.mubr.f32.mxu0 0.0
        %v1741 = vand.u32 %v342, 4294901760
        %v1742 = vsub.f32 %v342, %v1741
        %v1743 = vand.u32 %v1742, 4294901760
        %v1744 = vsub.f32 %v1742, %v1743
        %v1745 = vand.u32 %v1744, 4294901760
        %1746 = vmatmul.mubr.f32.gmra.mxu0 %v1745
        %v1747 = vpop.f32.mrf.mxu0
        %v1748 = vadd.f32 %v426, %v1747
        %v1749 = vpop.f32.mrf.mxu0
        %v1750 = vadd.f32 %v430, %v1749
        %1751 = vmatprep.mubr.f32.mxu0 0.0
        %v1752 = vand.u32 %v343, 4294901760
        %v1753 = vsub.f32 %v343, %v1752
        %v1754 = vand.u32 %v1753, 4294901760
        %v1755 = vsub.f32 %v1753, %v1754
        %v1756 = vand.u32 %v1755, 4294901760
        %1757 = vmatmul.mubr.f32.gmra.mxu0 %v1756
        %v1758 = vpop.f32.mrf.mxu0
        %v1759 = vadd.f32 %v426, %v1758
        %v1760 = vpop.f32.mrf.mxu0
        %v1761 = vadd.f32 %v430, %v1760
        %1762 = vmatprep.mubr.f32.mxu0 0.0
        %v1763 = vand.u32 %v344, 4294901760
        %v1764 = vsub.f32 %v344, %v1763
        %v1765 = vand.u32 %v1764, 4294901760
        %v1766 = vsub.f32 %v1764, %v1765
        %v1767 = vand.u32 %v1766, 4294901760
        %1768 = vmatmul.mubr.f32.gmra.mxu0 %v1767
        %v1769 = vpop.f32.mrf.mxu0
        %v1770 = vadd.f32 %v426, %v1769
        %v1771 = vpop.f32.mrf.mxu0
        %v1772 = vadd.f32 %v430, %v1771
        %1773 = vmatprep.mubr.f32.mxu0 0.0
        %v1774 = vand.u32 %v345, 4294901760
        %v1775 = vsub.f32 %v345, %v1774
        %v1776 = vand.u32 %v1775, 4294901760
        %v1777 = vsub.f32 %v1775, %v1776
        %v1778 = vand.u32 %v1777, 4294901760
        %1779 = vmatmul.mubr.f32.gmra.mxu0 %v1778
        %v1780 = vpop.f32.mrf.mxu0
        %v1781 = vadd.f32 %v426, %v1780
        %v1782 = vpop.f32.mrf.mxu0
        %v1783 = vadd.f32 %v430, %v1782
        %1784 = vmatprep.mubr.f32.mxu0 0.0
        %v1785 = vand.u32 %v346, 4294901760
        %v1786 = vsub.f32 %v346, %v1785
        %v1787 = vand.u32 %v1786, 4294901760
        %v1788 = vsub.f32 %v1786, %v1787
        %v1789 = vand.u32 %v1788, 4294901760
        %1790 = vmatmul.mubr.f32.gmra.mxu0 %v1789
        %v1791 = vpop.f32.mrf.mxu0
        %v1792 = vadd.f32 %v426, %v1791
        %v1793 = vpop.f32.mrf.mxu0
        %v1794 = vadd.f32 %v430, %v1793
        %1795 = vmatprep.mubr.f32.mxu0 0.0
        %v1796 = vand.u32 %v347, 4294901760
        %v1797 = vsub.f32 %v347, %v1796
        %v1798 = vand.u32 %v1797, 4294901760
        %v1799 = vsub.f32 %v1797, %v1798
        %v1800 = vand.u32 %v1799, 4294901760
        %1801 = vmatmul.mubr.f32.gmra.mxu0 %v1800
        %v1802 = vpop.f32.mrf.mxu0
        %v1803 = vadd.f32 %v426, %v1802
        %v1804 = vpop.f32.mrf.mxu0
        %v1805 = vadd.f32 %v430, %v1804
        %1806 = vmatprep.mubr.f32.mxu0 0.0
        %v1807 = vand.u32 %v348, 4294901760
        %v1808 = vsub.f32 %v348, %v1807
        %v1809 = vand.u32 %v1808, 4294901760
        %v1810 = vsub.f32 %v1808, %v1809
        %v1811 = vand.u32 %v1810, 4294901760
        %1812 = vmatmul.mubr.f32.gmra.mxu0 %v1811
        %v1813 = vpop.f32.mrf.mxu0
        %v1814 = vadd.f32 %v426, %v1813
        %v1815 = vpop.f32.mrf.mxu0
        %v1816 = vadd.f32 %v430, %v1815
        %1817 = vdwg.mxu0
        %v1818 = vand.u32 %v412, 4294901760
        %v1819 = vsub.f32 %v412, %v1818
        %v1820 = vand.u32 %v1819, 4294901760
        %v1821 = vsub.f32 %v1819, %v1820
        %v1822 = vand.u32 %v1821, 4294901760
        %1823 = vmatprep.subr.mxu0 %v1822
        %v1824 = vand.u32 %v411, 4294901760
        %v1825 = vsub.f32 %v411, %v1824
        %v1826 = vand.u32 %v1825, 4294901760
        %v1827 = vsub.f32 %v1825, %v1826
        %v1828 = vand.u32 %v1827, 4294901760
        %1829 = vmatpush1.msra.mxu0 %v1828
        %v1830 = vand.u32 %v408, 4294901760
        %v1831 = vsub.f32 %v408, %v1830
        %v1832 = vand.u32 %v1831, 4294901760
        %v1833 = vsub.f32 %v1831, %v1832
        %v1834 = vand.u32 %v1833, 4294901760
        %1835 = vmatprep.subr.mxu0 %v1834
        %v1836 = vand.u32 %v407, 4294901760
        %v1837 = vsub.f32 %v407, %v1836
        %v1838 = vand.u32 %v1837, 4294901760
        %v1839 = vsub.f32 %v1837, %v1838
        %v1840 = vand.u32 %v1839, 4294901760
        %1841 = vmatpush1.msra.mxu0 %v1840
        %v1842 = vand.u32 %v404, 4294901760
        %v1843 = vsub.f32 %v404, %v1842
        %v1844 = vand.u32 %v1843, 4294901760
        %v1845 = vsub.f32 %v1843, %v1844
        %v1846 = vand.u32 %v1845, 4294901760
        %1847 = vmatprep.subr.mxu0 %v1846
        %v1848 = vand.u32 %v403, 4294901760
        %v1849 = vsub.f32 %v403, %v1848
        %v1850 = vand.u32 %v1849, 4294901760
        %v1851 = vsub.f32 %v1849, %v1850
        %v1852 = vand.u32 %v1851, 4294901760
        %1853 = vmatpush1.msra.mxu0 %v1852
        %v1854 = vand.u32 %v400, 4294901760
        %v1855 = vsub.f32 %v400, %v1854
        %v1856 = vand.u32 %v1855, 4294901760
        %v1857 = vsub.f32 %v1855, %v1856
        %v1858 = vand.u32 %v1857, 4294901760
        %1859 = vmatprep.subr.mxu0 %v1858
        %v1860 = vand.u32 %v399, 4294901760
        %v1861 = vsub.f32 %v399, %v1860
        %v1862 = vand.u32 %v1861, 4294901760
        %v1863 = vsub.f32 %v1861, %v1862
        %v1864 = vand.u32 %v1863, 4294901760
        %1865 = vmatpush1.msra.mxu0 %v1864
        %v1866 = vand.u32 %v396, 4294901760
        %v1867 = vsub.f32 %v396, %v1866
        %v1868 = vand.u32 %v1867, 4294901760
        %v1869 = vsub.f32 %v1867, %v1868
        %v1870 = vand.u32 %v1869, 4294901760
        %1871 = vmatprep.subr.mxu0 %v1870
        %v1872 = vand.u32 %v395, 4294901760
        %v1873 = vsub.f32 %v395, %v1872
        %v1874 = vand.u32 %v1873, 4294901760
        %v1875 = vsub.f32 %v1873, %v1874
        %v1876 = vand.u32 %v1875, 4294901760
        %1877 = vmatpush1.msra.mxu0 %v1876
        %v1878 = vand.u32 %v392, 4294901760
        %v1879 = vsub.f32 %v392, %v1878
        %v1880 = vand.u32 %v1879, 4294901760
        %v1881 = vsub.f32 %v1879, %v1880
        %v1882 = vand.u32 %v1881, 4294901760
        %1883 = vmatprep.subr.mxu0 %v1882
        %v1884 = vand.u32 %v391, 4294901760
        %v1885 = vsub.f32 %v391, %v1884
        %v1886 = vand.u32 %v1885, 4294901760
        %v1887 = vsub.f32 %v1885, %v1886
        %v1888 = vand.u32 %v1887, 4294901760
        %1889 = vmatpush1.msra.mxu0 %v1888
        %v1890 = vand.u32 %v388, 4294901760
        %v1891 = vsub.f32 %v388, %v1890
        %v1892 = vand.u32 %v1891, 4294901760
        %v1893 = vsub.f32 %v1891, %v1892
        %v1894 = vand.u32 %v1893, 4294901760
        %1895 = vmatprep.subr.mxu0 %v1894
        %v1896 = vand.u32 %v387, 4294901760
        %v1897 = vsub.f32 %v387, %v1896
        %v1898 = vand.u32 %v1897, 4294901760
        %v1899 = vsub.f32 %v1897, %v1898
        %v1900 = vand.u32 %v1899, 4294901760
        %1901 = vmatpush1.msra.mxu0 %v1900
        %v1902 = vand.u32 %v384, 4294901760
        %v1903 = vsub.f32 %v384, %v1902
        %v1904 = vand.u32 %v1903, 4294901760
        %v1905 = vsub.f32 %v1903, %v1904
        %v1906 = vand.u32 %v1905, 4294901760
        %1907 = vmatprep.subr.mxu0 %v1906
        %v1908 = vand.u32 %v383, 4294901760
        %v1909 = vsub.f32 %v383, %v1908
        %v1910 = vand.u32 %v1909, 4294901760
        %v1911 = vsub.f32 %v1909, %v1910
        %v1912 = vand.u32 %v1911, 4294901760
        %1913 = vmatpush1.msra.mxu0 %v1912
        %v1914 = vand.u32 %v380, 4294901760
        %v1915 = vsub.f32 %v380, %v1914
        %v1916 = vand.u32 %v1915, 4294901760
        %v1917 = vsub.f32 %v1915, %v1916
        %v1918 = vand.u32 %v1917, 4294901760
        %1919 = vmatprep.subr.mxu0 %v1918
        %v1920 = vand.u32 %v379, 4294901760
        %v1921 = vsub.f32 %v379, %v1920
        %v1922 = vand.u32 %v1921, 4294901760
        %v1923 = vsub.f32 %v1921, %v1922
        %v1924 = vand.u32 %v1923, 4294901760
        %1925 = vmatpush1.msra.mxu0 %v1924
        %v1926 = vand.u32 %v376, 4294901760
        %v1927 = vsub.f32 %v376, %v1926
        %v1928 = vand.u32 %v1927, 4294901760
        %v1929 = vsub.f32 %v1927, %v1928
        %v1930 = vand.u32 %v1929, 4294901760
        %1931 = vmatprep.subr.mxu0 %v1930
        %v1932 = vand.u32 %v375, 4294901760
        %v1933 = vsub.f32 %v375, %v1932
        %v1934 = vand.u32 %v1933, 4294901760
        %v1935 = vsub.f32 %v1933, %v1934
        %v1936 = vand.u32 %v1935, 4294901760
        %1937 = vmatpush1.msra.mxu0 %v1936
        %v1938 = vand.u32 %v372, 4294901760
        %v1939 = vsub.f32 %v372, %v1938
        %v1940 = vand.u32 %v1939, 4294901760
        %v1941 = vsub.f32 %v1939, %v1940
        %v1942 = vand.u32 %v1941, 4294901760
        %1943 = vmatprep.subr.mxu0 %v1942
        %v1944 = vand.u32 %v371, 4294901760
        %v1945 = vsub.f32 %v371, %v1944
        %v1946 = vand.u32 %v1945, 4294901760
        %v1947 = vsub.f32 %v1945, %v1946
        %v1948 = vand.u32 %v1947, 4294901760
        %1949 = vmatpush1.msra.mxu0 %v1948
        %v1950 = vand.u32 %v368, 4294901760
        %v1951 = vsub.f32 %v368, %v1950
        %v1952 = vand.u32 %v1951, 4294901760
        %v1953 = vsub.f32 %v1951, %v1952
        %v1954 = vand.u32 %v1953, 4294901760
        %1955 = vmatprep.subr.mxu0 %v1954
        %v1956 = vand.u32 %v367, 4294901760
        %v1957 = vsub.f32 %v367, %v1956
        %v1958 = vand.u32 %v1957, 4294901760
        %v1959 = vsub.f32 %v1957, %v1958
        %v1960 = vand.u32 %v1959, 4294901760
        %1961 = vmatpush1.msra.mxu0 %v1960
        %v1962 = vand.u32 %v364, 4294901760
        %v1963 = vsub.f32 %v364, %v1962
        %v1964 = vand.u32 %v1963, 4294901760
        %v1965 = vsub.f32 %v1963, %v1964
        %v1966 = vand.u32 %v1965, 4294901760
        %1967 = vmatprep.subr.mxu0 %v1966
        %v1968 = vand.u32 %v363, 4294901760
        %v1969 = vsub.f32 %v363, %v1968
        %v1970 = vand.u32 %v1969, 4294901760
        %v1971 = vsub.f32 %v1969, %v1970
        %v1972 = vand.u32 %v1971, 4294901760
        %1973 = vmatpush1.msra.mxu0 %v1972
        %v1974 = vand.u32 %v360, 4294901760
        %v1975 = vsub.f32 %v360, %v1974
        %v1976 = vand.u32 %v1975, 4294901760
        %v1977 = vsub.f32 %v1975, %v1976
        %v1978 = vand.u32 %v1977, 4294901760
        %1979 = vmatprep.subr.mxu0 %v1978
        %v1980 = vand.u32 %v359, 4294901760
        %v1981 = vsub.f32 %v359, %v1980
        %v1982 = vand.u32 %v1981, 4294901760
        %v1983 = vsub.f32 %v1981, %v1982
        %v1984 = vand.u32 %v1983, 4294901760
        %1985 = vmatpush1.msra.mxu0 %v1984
        %v1986 = vand.u32 %v356, 4294901760
        %v1987 = vsub.f32 %v356, %v1986
        %v1988 = vand.u32 %v1987, 4294901760
        %v1989 = vsub.f32 %v1987, %v1988
        %v1990 = vand.u32 %v1989, 4294901760
        %1991 = vmatprep.subr.mxu0 %v1990
        %v1992 = vand.u32 %v355, 4294901760
        %v1993 = vsub.f32 %v355, %v1992
        %v1994 = vand.u32 %v1993, 4294901760
        %v1995 = vsub.f32 %v1993, %v1994
        %v1996 = vand.u32 %v1995, 4294901760
        %1997 = vmatpush1.msra.mxu0 %v1996
        %v1998 = vand.u32 %v352, 4294901760
        %v1999 = vsub.f32 %v352, %v1998
        %v2000 = vand.u32 %v1999, 4294901760
        %v2001 = vsub.f32 %v1999, %v2000
        %v2002 = vand.u32 %v2001, 4294901760
        %2003 = vmatprep.subr.mxu0 %v2002
        %v2004 = vand.u32 %v351, 4294901760
        %v2005 = vsub.f32 %v351, %v2004
        %v2006 = vand.u32 %v2005, 4294901760
        %v2007 = vsub.f32 %v2005, %v2006
        %v2008 = vand.u32 %v2007, 4294901760
        %2009 = vmatpush1.msra.mxu0 %v2008
        %2010 = vmatprep.subr.mxu0 0.0
        %2011 = vmatpush2.msra.mxu0 0.0
        %2012 = vmatprep.subr.mxu0 0.0
        %2013 = vmatpush2.msra.mxu0 0.0
        %2014 = vmatprep.subr.mxu0 0.0
        %2015 = vmatpush2.msra.mxu0 0.0
        %2016 = vmatprep.subr.mxu0 0.0
        %2017 = vmatpush2.msra.mxu0 0.0
        %2018 = vmatprep.subr.mxu0 0.0
        %2019 = vmatpush2.msra.mxu0 0.0
        %2020 = vmatprep.subr.mxu0 0.0
        %2021 = vmatpush2.msra.mxu0 0.0
        %2022 = vmatprep.subr.mxu0 0.0
        %2023 = vmatpush2.msra.mxu0 0.0
        %2024 = vmatprep.subr.mxu0 0.0
        %2025 = vmatpush2.msra.mxu0 0.0
        %2026 = vmatprep.subr.mxu0 0.0
        %2027 = vmatpush2.msra.mxu0 0.0
        %2028 = vmatprep.subr.mxu0 0.0
        %2029 = vmatpush2.msra.mxu0 0.0
        %2030 = vmatprep.subr.mxu0 0.0
        %2031 = vmatpush2.msra.mxu0 0.0
        %2032 = vmatprep.subr.mxu0 0.0
        %2033 = vmatpush2.msra.mxu0 0.0
        %2034 = vmatprep.subr.mxu0 0.0
        %2035 = vmatpush2.msra.mxu0 0.0
        %2036 = vmatprep.subr.mxu0 0.0
        %2037 = vmatpush2.msra.mxu0 0.0
        %2038 = vmatprep.subr.mxu0 0.0
        %2039 = vmatpush2.msra.mxu0 0.0
        %2040 = vmatprep.subr.mxu0 0.0
        %2041 = vmatpush2.msra.mxu0 0.0
        %2042 = vmatprep.mubr.f32.mxu0 0.0
        %v2043 = vand.u32 %v341, 4294901760
        %2044 = vmatmul.mubr.f32.gmra.mxu0 %v2043
        %v2045 = vpop.f32.mrf.mxu0
        %v2046 = vadd.f32 %v1737, %v2045
        %v2047 = vpop.f32.mrf.mxu0
        %v2048 = vadd.f32 %v1739, %v2047
        %2049 = vmatprep.mubr.f32.mxu0 0.0
        %v2050 = vand.u32 %v342, 4294901760
        %2051 = vmatmul.mubr.f32.gmra.mxu0 %v2050
        %v2052 = vpop.f32.mrf.mxu0
        %v2053 = vadd.f32 %v1748, %v2052
        %v2054 = vpop.f32.mrf.mxu0
        %v2055 = vadd.f32 %v1750, %v2054
        %2056 = vmatprep.mubr.f32.mxu0 0.0
        %v2057 = vand.u32 %v343, 4294901760
        %2058 = vmatmul.mubr.f32.gmra.mxu0 %v2057
        %v2059 = vpop.f32.mrf.mxu0
        %v2060 = vadd.f32 %v1759, %v2059
        %v2061 = vpop.f32.mrf.mxu0
        %v2062 = vadd.f32 %v1761, %v2061
        %2063 = vmatprep.mubr.f32.mxu0 0.0
        %v2064 = vand.u32 %v344, 4294901760
        %2065 = vmatmul.mubr.f32.gmra.mxu0 %v2064
        %v2066 = vpop.f32.mrf.mxu0
        %v2067 = vadd.f32 %v1770, %v2066
        %v2068 = vpop.f32.mrf.mxu0
        %v2069 = vadd.f32 %v1772, %v2068
        %2070 = vmatprep.mubr.f32.mxu0 0.0
        %v2071 = vand.u32 %v345, 4294901760
        %2072 = vmatmul.mubr.f32.gmra.mxu0 %v2071
        %v2073 = vpop.f32.mrf.mxu0
        %v2074 = vadd.f32 %v1781, %v2073
        %v2075 = vpop.f32.mrf.mxu0
        %v2076 = vadd.f32 %v1783, %v2075
        %2077 = vmatprep.mubr.f32.mxu0 0.0
        %v2078 = vand.u32 %v346, 4294901760
        %2079 = vmatmul.mubr.f32.gmra.mxu0 %v2078
        %v2080 = vpop.f32.mrf.mxu0
        %v2081 = vadd.f32 %v1792, %v2080
        %v2082 = vpop.f32.mrf.mxu0
        %v2083 = vadd.f32 %v1794, %v2082
        %2084 = vmatprep.mubr.f32.mxu0 0.0
        %v2085 = vand.u32 %v347, 4294901760
        %2086 = vmatmul.mubr.f32.gmra.mxu0 %v2085
        %v2087 = vpop.f32.mrf.mxu0
        %v2088 = vadd.f32 %v1803, %v2087
        %v2089 = vpop.f32.mrf.mxu0
        %v2090 = vadd.f32 %v1805, %v2089
        %2091 = vmatprep.mubr.f32.mxu0 0.0
        %v2092 = vand.u32 %v348, 4294901760
        %2093 = vmatmul.mubr.f32.gmra.mxu0 %v2092
        %v2094 = vpop.f32.mrf.mxu0
        %v2095 = vadd.f32 %v1814, %v2094
        %v2096 = vpop.f32.mrf.mxu0
        %v2097 = vadd.f32 %v1816, %v2096
        %2098 = vdwg.mxu0
        %v2099 = vand.u32 %v412, 4294901760
        %v2100 = vsub.f32 %v412, %v2099
        %2101 = vmatprep.subr.mxu0 %v2100
        %v2102 = vand.u32 %v411, 4294901760
        %v2103 = vsub.f32 %v411, %v2102
        %2104 = vmatpush1.msra.mxu0 %v2103
        %v2105 = vand.u32 %v408, 4294901760
        %v2106 = vsub.f32 %v408, %v2105
        %2107 = vmatprep.subr.mxu0 %v2106
        %v2108 = vand.u32 %v407, 4294901760
        %v2109 = vsub.f32 %v407, %v2108
        %2110 = vmatpush1.msra.mxu0 %v2109
        %v2111 = vand.u32 %v404, 4294901760
        %v2112 = vsub.f32 %v404, %v2111
        %2113 = vmatprep.subr.mxu0 %v2112
        %v2114 = vand.u32 %v403, 4294901760
        %v2115 = vsub.f32 %v403, %v2114
        %2116 = vmatpush1.msra.mxu0 %v2115
        %v2117 = vand.u32 %v400, 4294901760
        %v2118 = vsub.f32 %v400, %v2117
        %2119 = vmatprep.subr.mxu0 %v2118
        %v2120 = vand.u32 %v399, 4294901760
        %v2121 = vsub.f32 %v399, %v2120
        %2122 = vmatpush1.msra.mxu0 %v2121
        %v2123 = vand.u32 %v396, 4294901760
        %v2124 = vsub.f32 %v396, %v2123
        %2125 = vmatprep.subr.mxu0 %v2124
        %v2126 = vand.u32 %v395, 4294901760
        %v2127 = vsub.f32 %v395, %v2126
        %2128 = vmatpush1.msra.mxu0 %v2127
        %v2129 = vand.u32 %v392, 4294901760
        %v2130 = vsub.f32 %v392, %v2129
        %2131 = vmatprep.subr.mxu0 %v2130
        %v2132 = vand.u32 %v391, 4294901760
        %v2133 = vsub.f32 %v391, %v2132
        %2134 = vmatpush1.msra.mxu0 %v2133
        %v2135 = vand.u32 %v388, 4294901760
        %v2136 = vsub.f32 %v388, %v2135
        %2137 = vmatprep.subr.mxu0 %v2136
        %v2138 = vand.u32 %v387, 4294901760
        %v2139 = vsub.f32 %v387, %v2138
        %2140 = vmatpush1.msra.mxu0 %v2139
        %v2141 = vand.u32 %v384, 4294901760
        %v2142 = vsub.f32 %v384, %v2141
        %2143 = vmatprep.subr.mxu0 %v2142
        %v2144 = vand.u32 %v383, 4294901760
        %v2145 = vsub.f32 %v383, %v2144
        %2146 = vmatpush1.msra.mxu0 %v2145
        %v2147 = vand.u32 %v380, 4294901760
        %v2148 = vsub.f32 %v380, %v2147
        %2149 = vmatprep.subr.mxu0 %v2148
        %v2150 = vand.u32 %v379, 4294901760
        %v2151 = vsub.f32 %v379, %v2150
        %2152 = vmatpush1.msra.mxu0 %v2151
        %v2153 = vand.u32 %v376, 4294901760
        %v2154 = vsub.f32 %v376, %v2153
        %2155 = vmatprep.subr.mxu0 %v2154
        %v2156 = vand.u32 %v375, 4294901760
        %v2157 = vsub.f32 %v375, %v2156
        %2158 = vmatpush1.msra.mxu0 %v2157
        %v2159 = vand.u32 %v372, 4294901760
        %v2160 = vsub.f32 %v372, %v2159
        %2161 = vmatprep.subr.mxu0 %v2160
        %v2162 = vand.u32 %v371, 4294901760
        %v2163 = vsub.f32 %v371, %v2162
        %2164 = vmatpush1.msra.mxu0 %v2163
        %v2165 = vand.u32 %v368, 4294901760
        %v2166 = vsub.f32 %v368, %v2165
        %2167 = vmatprep.subr.mxu0 %v2166
        %v2168 = vand.u32 %v367, 4294901760
        %v2169 = vsub.f32 %v367, %v2168
        %2170 = vmatpush1.msra.mxu0 %v2169
        %v2171 = vand.u32 %v364, 4294901760
        %v2172 = vsub.f32 %v364, %v2171
        %2173 = vmatprep.subr.mxu0 %v2172
        %v2174 = vand.u32 %v363, 4294901760
        %v2175 = vsub.f32 %v363, %v2174
        %2176 = vmatpush1.msra.mxu0 %v2175
        %v2177 = vand.u32 %v360, 4294901760
        %v2178 = vsub.f32 %v360, %v2177
        %2179 = vmatprep.subr.mxu0 %v2178
        %v2180 = vand.u32 %v359, 4294901760
        %v2181 = vsub.f32 %v359, %v2180
        %2182 = vmatpush1.msra.mxu0 %v2181
        %v2183 = vand.u32 %v356, 4294901760
        %v2184 = vsub.f32 %v356, %v2183
        %2185 = vmatprep.subr.mxu0 %v2184
        %v2186 = vand.u32 %v355, 4294901760
        %v2187 = vsub.f32 %v355, %v2186
        %2188 = vmatpush1.msra.mxu0 %v2187
        %v2189 = vand.u32 %v352, 4294901760
        %v2190 = vsub.f32 %v352, %v2189
        %2191 = vmatprep.subr.mxu0 %v2190
        %v2192 = vand.u32 %v351, 4294901760
        %v2193 = vsub.f32 %v351, %v2192
        %2194 = vmatpush1.msra.mxu0 %v2193
        %2195 = vmatprep.subr.mxu0 0.0
        %2196 = vmatpush2.msra.mxu0 0.0
        %2197 = vmatprep.subr.mxu0 0.0
        %2198 = vmatpush2.msra.mxu0 0.0
        %2199 = vmatprep.subr.mxu0 0.0
        %2200 = vmatpush2.msra.mxu0 0.0
        %2201 = vmatprep.subr.mxu0 0.0
        %2202 = vmatpush2.msra.mxu0 0.0
        %2203 = vmatprep.subr.mxu0 0.0
        %2204 = vmatpush2.msra.mxu0 0.0
        %2205 = vmatprep.subr.mxu0 0.0
        %2206 = vmatpush2.msra.mxu0 0.0
        %2207 = vmatprep.subr.mxu0 0.0
        %2208 = vmatpush2.msra.mxu0 0.0
        %2209 = vmatprep.subr.mxu0 0.0
        %2210 = vmatpush2.msra.mxu0 0.0
        %2211 = vmatprep.subr.mxu0 0.0
        %2212 = vmatpush2.msra.mxu0 0.0
        %2213 = vmatprep.subr.mxu0 0.0
        %2214 = vmatpush2.msra.mxu0 0.0
        %2215 = vmatprep.subr.mxu0 0.0
        %2216 = vmatpush2.msra.mxu0 0.0
        %2217 = vmatprep.subr.mxu0 0.0
        %2218 = vmatpush2.msra.mxu0 0.0
        %2219 = vmatprep.subr.mxu0 0.0
        %2220 = vmatpush2.msra.mxu0 0.0
        %2221 = vmatprep.subr.mxu0 0.0
        %2222 = vmatpush2.msra.mxu0 0.0
        %2223 = vmatprep.subr.mxu0 0.0
        %2224 = vmatpush2.msra.mxu0 0.0
        %2225 = vmatprep.subr.mxu0 0.0
        %2226 = vmatpush2.msra.mxu0 0.0
        %2227 = vmatprep.mubr.f32.mxu0 0.0
        %v2228 = vand.u32 %v341, 4294901760
        %v2229 = vsub.f32 %v341, %v2228
        %2230 = vmatmul.mubr.f32.gmra.mxu0 %v2229
        %v2231 = vpop.f32.mrf.mxu0
        %v2232 = vadd.f32 %v2046, %v2231
        %v2233 = vpop.f32.mrf.mxu0
        %v2234 = vadd.f32 %v2048, %v2233
        %2235 = vmatprep.mubr.f32.mxu0 0.0
        %v2236 = vand.u32 %v342, 4294901760
        %v2237 = vsub.f32 %v342, %v2236
        %2238 = vmatmul.mubr.f32.gmra.mxu0 %v2237
        %v2239 = vpop.f32.mrf.mxu0
        %v2240 = vadd.f32 %v2053, %v2239
        %v2241 = vpop.f32.mrf.mxu0
        %v2242 = vadd.f32 %v2055, %v2241
        %2243 = vmatprep.mubr.f32.mxu0 0.0
        %v2244 = vand.u32 %v343, 4294901760
        %v2245 = vsub.f32 %v343, %v2244
        %2246 = vmatmul.mubr.f32.gmra.mxu0 %v2245
        %v2247 = vpop.f32.mrf.mxu0
        %v2248 = vadd.f32 %v2060, %v2247
        %v2249 = vpop.f32.mrf.mxu0
        %v2250 = vadd.f32 %v2062, %v2249
        %2251 = vmatprep.mubr.f32.mxu0 0.0
        %v2252 = vand.u32 %v344, 4294901760
        %v2253 = vsub.f32 %v344, %v2252
        %2254 = vmatmul.mubr.f32.gmra.mxu0 %v2253
        %v2255 = vpop.f32.mrf.mxu0
        %v2256 = vadd.f32 %v2067, %v2255
        %v2257 = vpop.f32.mrf.mxu0
        %v2258 = vadd.f32 %v2069, %v2257
        %2259 = vmatprep.mubr.f32.mxu0 0.0
        %v2260 = vand.u32 %v345, 4294901760
        %v2261 = vsub.f32 %v345, %v2260
        %2262 = vmatmul.mubr.f32.gmra.mxu0 %v2261
        %v2263 = vpop.f32.mrf.mxu0
        %v2264 = vadd.f32 %v2074, %v2263
        %v2265 = vpop.f32.mrf.mxu0
        %v2266 = vadd.f32 %v2076, %v2265
        %2267 = vmatprep.mubr.f32.mxu0 0.0
        %v2268 = vand.u32 %v346, 4294901760
        %v2269 = vsub.f32 %v346, %v2268
        %2270 = vmatmul.mubr.f32.gmra.mxu0 %v2269
        %v2271 = vpop.f32.mrf.mxu0
        %v2272 = vadd.f32 %v2081, %v2271
        %v2273 = vpop.f32.mrf.mxu0
        %v2274 = vadd.f32 %v2083, %v2273
        %2275 = vmatprep.mubr.f32.mxu0 0.0
        %v2276 = vand.u32 %v347, 4294901760
        %v2277 = vsub.f32 %v347, %v2276
        %2278 = vmatmul.mubr.f32.gmra.mxu0 %v2277
        %v2279 = vpop.f32.mrf.mxu0
        %v2280 = vadd.f32 %v2088, %v2279
        %v2281 = vpop.f32.mrf.mxu0
        %v2282 = vadd.f32 %v2090, %v2281
        %2283 = vmatprep.mubr.f32.mxu0 0.0
        %v2284 = vand.u32 %v348, 4294901760
        %v2285 = vsub.f32 %v348, %v2284
        %2286 = vmatmul.mubr.f32.gmra.mxu0 %v2285
        %v2287 = vpop.f32.mrf.mxu0
        %v2288 = vadd.f32 %v2095, %v2287
        %v2289 = vpop.f32.mrf.mxu0
        %v2290 = vadd.f32 %v2097, %v2289
        %2291 = vdwg.mxu0
        %v2292 = vand.u32 %v412, 4294901760
        %2293 = vmatprep.subr.mxu0 %v2292
        %v2294 = vand.u32 %v411, 4294901760
        %2295 = vmatpush1.msra.mxu0 %v2294
        %v2296 = vand.u32 %v408, 4294901760
        %2297 = vmatprep.subr.mxu0 %v2296
        %v2298 = vand.u32 %v407, 4294901760
        %2299 = vmatpush1.msra.mxu0 %v2298
        %v2300 = vand.u32 %v404, 4294901760
        %2301 = vmatprep.subr.mxu0 %v2300
        %v2302 = vand.u32 %v403, 4294901760
        %2303 = vmatpush1.msra.mxu0 %v2302
        %v2304 = vand.u32 %v400, 4294901760
        %2305 = vmatprep.subr.mxu0 %v2304
        %v2306 = vand.u32 %v399, 4294901760
        %2307 = vmatpush1.msra.mxu0 %v2306
        %v2308 = vand.u32 %v396, 4294901760
        %2309 = vmatprep.subr.mxu0 %v2308
        %v2310 = vand.u32 %v395, 4294901760
        %2311 = vmatpush1.msra.mxu0 %v2310
        %v2312 = vand.u32 %v392, 4294901760
        %2313 = vmatprep.subr.mxu0 %v2312
        %v2314 = vand.u32 %v391, 4294901760
        %2315 = vmatpush1.msra.mxu0 %v2314
        %v2316 = vand.u32 %v388, 4294901760
        %2317 = vmatprep.subr.mxu0 %v2316
        %v2318 = vand.u32 %v387, 4294901760
        %2319 = vmatpush1.msra.mxu0 %v2318
        %v2320 = vand.u32 %v384, 4294901760
        %2321 = vmatprep.subr.mxu0 %v2320
        %v2322 = vand.u32 %v383, 4294901760
        %2323 = vmatpush1.msra.mxu0 %v2322
        %v2324 = vand.u32 %v380, 4294901760
        %2325 = vmatprep.subr.mxu0 %v2324
        %v2326 = vand.u32 %v379, 4294901760
        %2327 = vmatpush1.msra.mxu0 %v2326
        %v2328 = vand.u32 %v376, 4294901760
        %2329 = vmatprep.subr.mxu0 %v2328
        %v2330 = vand.u32 %v375, 4294901760
        %2331 = vmatpush1.msra.mxu0 %v2330
        %v2332 = vand.u32 %v372, 4294901760
        %2333 = vmatprep.subr.mxu0 %v2332
        %v2334 = vand.u32 %v371, 4294901760
        %2335 = vmatpush1.msra.mxu0 %v2334
        %v2336 = vand.u32 %v368, 4294901760
        %2337 = vmatprep.subr.mxu0 %v2336
        %v2338 = vand.u32 %v367, 4294901760
        %2339 = vmatpush1.msra.mxu0 %v2338
        %v2340 = vand.u32 %v364, 4294901760
        %2341 = vmatprep.subr.mxu0 %v2340
        %v2342 = vand.u32 %v363, 4294901760
        %2343 = vmatpush1.msra.mxu0 %v2342
        %v2344 = vand.u32 %v360, 4294901760
        %2345 = vmatprep.subr.mxu0 %v2344
        %v2346 = vand.u32 %v359, 4294901760
        %2347 = vmatpush1.msra.mxu0 %v2346
        %v2348 = vand.u32 %v356, 4294901760
        %2349 = vmatprep.subr.mxu0 %v2348
        %v2350 = vand.u32 %v355, 4294901760
        %2351 = vmatpush1.msra.mxu0 %v2350
        %v2352 = vand.u32 %v352, 4294901760
        %2353 = vmatprep.subr.mxu0 %v2352
        %v2354 = vand.u32 %v351, 4294901760
        %2355 = vmatpush1.msra.mxu0 %v2354
        %2356 = vmatprep.subr.mxu0 0.0
        %2357 = vmatpush2.msra.mxu0 0.0
        %2358 = vmatprep.subr.mxu0 0.0
        %2359 = vmatpush2.msra.mxu0 0.0
        %2360 = vmatprep.subr.mxu0 0.0
        %2361 = vmatpush2.msra.mxu0 0.0
        %2362 = vmatprep.subr.mxu0 0.0
        %2363 = vmatpush2.msra.mxu0 0.0
        %2364 = vmatprep.subr.mxu0 0.0
        %2365 = vmatpush2.msra.mxu0 0.0
        %2366 = vmatprep.subr.mxu0 0.0
        %2367 = vmatpush2.msra.mxu0 0.0
        %2368 = vmatprep.subr.mxu0 0.0
        %2369 = vmatpush2.msra.mxu0 0.0
        %2370 = vmatprep.subr.mxu0 0.0
        %2371 = vmatpush2.msra.mxu0 0.0
        %2372 = vmatprep.subr.mxu0 0.0
        %2373 = vmatpush2.msra.mxu0 0.0
        %2374 = vmatprep.subr.mxu0 0.0
        %2375 = vmatpush2.msra.mxu0 0.0
        %2376 = vmatprep.subr.mxu0 0.0
        %2377 = vmatpush2.msra.mxu0 0.0
        %2378 = vmatprep.subr.mxu0 0.0
        %2379 = vmatpush2.msra.mxu0 0.0
        %2380 = vmatprep.subr.mxu0 0.0
        %2381 = vmatpush2.msra.mxu0 0.0
        %2382 = vmatprep.subr.mxu0 0.0
        %2383 = vmatpush2.msra.mxu0 0.0
        %2384 = vmatprep.subr.mxu0 0.0
        %2385 = vmatpush2.msra.mxu0 0.0
        %2386 = vmatprep.subr.mxu0 0.0
        %2387 = vmatpush2.msra.mxu0 0.0
        %2388 = vmatprep.mubr.f32.mxu0 0.0
        %v2389 = vand.u32 %v341, 4294901760
        %v2390 = vsub.f32 %v341, %v2389
        %v2391 = vand.u32 %v2390, 4294901760
        %2392 = vmatmul.mubr.f32.gmra.mxu0 %v2391
        %v2393 = vpop.f32.mrf.mxu0
        %v2394 = vadd.f32 %v2232, %v2393
        %v2395 = vpop.f32.mrf.mxu0
        %v2396 = vadd.f32 %v2234, %v2395
        %2397 = vmatprep.mubr.f32.mxu0 0.0
        %v2398 = vand.u32 %v342, 4294901760
        %v2399 = vsub.f32 %v342, %v2398
        %v2400 = vand.u32 %v2399, 4294901760
        %2401 = vmatmul.mubr.f32.gmra.mxu0 %v2400
        %v2402 = vpop.f32.mrf.mxu0
        %v2403 = vadd.f32 %v2240, %v2402
        %v2404 = vpop.f32.mrf.mxu0
        %v2405 = vadd.f32 %v2242, %v2404
        %2406 = vmatprep.mubr.f32.mxu0 0.0
        %v2407 = vand.u32 %v343, 4294901760
        %v2408 = vsub.f32 %v343, %v2407
        %v2409 = vand.u32 %v2408, 4294901760
        %2410 = vmatmul.mubr.f32.gmra.mxu0 %v2409
        %v2411 = vpop.f32.mrf.mxu0
        %v2412 = vadd.f32 %v2248, %v2411
        %v2413 = vpop.f32.mrf.mxu0
        %v2414 = vadd.f32 %v2250, %v2413
        %2415 = vmatprep.mubr.f32.mxu0 0.0
        %v2416 = vand.u32 %v344, 4294901760
        %v2417 = vsub.f32 %v344, %v2416
        %v2418 = vand.u32 %v2417, 4294901760
        %2419 = vmatmul.mubr.f32.gmra.mxu0 %v2418
        %v2420 = vpop.f32.mrf.mxu0
        %v2421 = vadd.f32 %v2256, %v2420
        %v2422 = vpop.f32.mrf.mxu0
        %v2423 = vadd.f32 %v2258, %v2422
        %2424 = vmatprep.mubr.f32.mxu0 0.0
        %v2425 = vand.u32 %v345, 4294901760
        %v2426 = vsub.f32 %v345, %v2425
        %v2427 = vand.u32 %v2426, 4294901760
        %2428 = vmatmul.mubr.f32.gmra.mxu0 %v2427
        %v2429 = vpop.f32.mrf.mxu0
        %v2430 = vadd.f32 %v2264, %v2429
        %v2431 = vpop.f32.mrf.mxu0
        %v2432 = vadd.f32 %v2266, %v2431
        %2433 = vmatprep.mubr.f32.mxu0 0.0
        %v2434 = vand.u32 %v346, 4294901760
        %v2435 = vsub.f32 %v346, %v2434
        %v2436 = vand.u32 %v2435, 4294901760
        %2437 = vmatmul.mubr.f32.gmra.mxu0 %v2436
        %v2438 = vpop.f32.mrf.mxu0
        %v2439 = vadd.f32 %v2272, %v2438
        %v2440 = vpop.f32.mrf.mxu0
        %v2441 = vadd.f32 %v2274, %v2440
        %2442 = vmatprep.mubr.f32.mxu0 0.0
        %v2443 = vand.u32 %v347, 4294901760
        %v2444 = vsub.f32 %v347, %v2443
        %v2445 = vand.u32 %v2444, 4294901760
        %2446 = vmatmul.mubr.f32.gmra.mxu0 %v2445
        %v2447 = vpop.f32.mrf.mxu0
        %v2448 = vadd.f32 %v2280, %v2447
        %v2449 = vpop.f32.mrf.mxu0
        %v2450 = vadd.f32 %v2282, %v2449
        %2451 = vmatprep.mubr.f32.mxu0 0.0
        %v2452 = vand.u32 %v348, 4294901760
        %v2453 = vsub.f32 %v348, %v2452
        %v2454 = vand.u32 %v2453, 4294901760
        %2455 = vmatmul.mubr.f32.gmra.mxu0 %v2454
        %v2456 = vpop.f32.mrf.mxu0
        %v2457 = vadd.f32 %v2288, %v2456
        %v2458 = vpop.f32.mrf.mxu0
        %v2459 = vadd.f32 %v2290, %v2458
        %2460 = vdwg.mxu0
        %v2461 = vand.u32 %v412, 4294901760
        %v2462 = vsub.f32 %v412, %v2461
        %v2463 = vand.u32 %v2462, 4294901760
        %2464 = vmatprep.subr.mxu0 %v2463
        %v2465 = vand.u32 %v411, 4294901760
        %v2466 = vsub.f32 %v411, %v2465
        %v2467 = vand.u32 %v2466, 4294901760
        %2468 = vmatpush1.msra.mxu0 %v2467
        %v2469 = vand.u32 %v408, 4294901760
        %v2470 = vsub.f32 %v408, %v2469
        %v2471 = vand.u32 %v2470, 4294901760
        %2472 = vmatprep.subr.mxu0 %v2471
        %v2473 = vand.u32 %v407, 4294901760
        %v2474 = vsub.f32 %v407, %v2473
        %v2475 = vand.u32 %v2474, 4294901760
        %2476 = vmatpush1.msra.mxu0 %v2475
        %v2477 = vand.u32 %v404, 4294901760
        %v2478 = vsub.f32 %v404, %v2477
        %v2479 = vand.u32 %v2478, 4294901760
        %2480 = vmatprep.subr.mxu0 %v2479
        %v2481 = vand.u32 %v403, 4294901760
        %v2482 = vsub.f32 %v403, %v2481
        %v2483 = vand.u32 %v2482, 4294901760
        %2484 = vmatpush1.msra.mxu0 %v2483
        %v2485 = vand.u32 %v400, 4294901760
        %v2486 = vsub.f32 %v400, %v2485
        %v2487 = vand.u32 %v2486, 4294901760
        %2488 = vmatprep.subr.mxu0 %v2487
        %v2489 = vand.u32 %v399, 4294901760
        %v2490 = vsub.f32 %v399, %v2489
        %v2491 = vand.u32 %v2490, 4294901760
        %2492 = vmatpush1.msra.mxu0 %v2491
        %v2493 = vand.u32 %v396, 4294901760
        %v2494 = vsub.f32 %v396, %v2493
        %v2495 = vand.u32 %v2494, 4294901760
        %2496 = vmatprep.subr.mxu0 %v2495
        %v2497 = vand.u32 %v395, 4294901760
        %v2498 = vsub.f32 %v395, %v2497
        %v2499 = vand.u32 %v2498, 4294901760
        %2500 = vmatpush1.msra.mxu0 %v2499
        %v2501 = vand.u32 %v392, 4294901760
        %v2502 = vsub.f32 %v392, %v2501
        %v2503 = vand.u32 %v2502, 4294901760
        %2504 = vmatprep.subr.mxu0 %v2503
        %v2505 = vand.u32 %v391, 4294901760
        %v2506 = vsub.f32 %v391, %v2505
        %v2507 = vand.u32 %v2506, 4294901760
        %2508 = vmatpush1.msra.mxu0 %v2507
        %v2509 = vand.u32 %v388, 4294901760
        %v2510 = vsub.f32 %v388, %v2509
        %v2511 = vand.u32 %v2510, 4294901760
        %2512 = vmatprep.subr.mxu0 %v2511
        %v2513 = vand.u32 %v387, 4294901760
        %v2514 = vsub.f32 %v387, %v2513
        %v2515 = vand.u32 %v2514, 4294901760
        %2516 = vmatpush1.msra.mxu0 %v2515
        %v2517 = vand.u32 %v384, 4294901760
        %v2518 = vsub.f32 %v384, %v2517
        %v2519 = vand.u32 %v2518, 4294901760
        %2520 = vmatprep.subr.mxu0 %v2519
        %v2521 = vand.u32 %v383, 4294901760
        %v2522 = vsub.f32 %v383, %v2521
        %v2523 = vand.u32 %v2522, 4294901760
        %2524 = vmatpush1.msra.mxu0 %v2523
        %v2525 = vand.u32 %v380, 4294901760
        %v2526 = vsub.f32 %v380, %v2525
        %v2527 = vand.u32 %v2526, 4294901760
        %2528 = vmatprep.subr.mxu0 %v2527
        %v2529 = vand.u32 %v379, 4294901760
        %v2530 = vsub.f32 %v379, %v2529
        %v2531 = vand.u32 %v2530, 4294901760
        %2532 = vmatpush1.msra.mxu0 %v2531
        %v2533 = vand.u32 %v376, 4294901760
        %v2534 = vsub.f32 %v376, %v2533
        %v2535 = vand.u32 %v2534, 4294901760
        %2536 = vmatprep.subr.mxu0 %v2535
        %v2537 = vand.u32 %v375, 4294901760
        %v2538 = vsub.f32 %v375, %v2537
        %v2539 = vand.u32 %v2538, 4294901760
        %2540 = vmatpush1.msra.mxu0 %v2539
        %v2541 = vand.u32 %v372, 4294901760
        %v2542 = vsub.f32 %v372, %v2541
        %v2543 = vand.u32 %v2542, 4294901760
        %2544 = vmatprep.subr.mxu0 %v2543
        %v2545 = vand.u32 %v371, 4294901760
        %v2546 = vsub.f32 %v371, %v2545
        %v2547 = vand.u32 %v2546, 4294901760
        %2548 = vmatpush1.msra.mxu0 %v2547
        %v2549 = vand.u32 %v368, 4294901760
        %v2550 = vsub.f32 %v368, %v2549
        %v2551 = vand.u32 %v2550, 4294901760
        %2552 = vmatprep.subr.mxu0 %v2551
        %v2553 = vand.u32 %v367, 4294901760
        %v2554 = vsub.f32 %v367, %v2553
        %v2555 = vand.u32 %v2554, 4294901760
        %2556 = vmatpush1.msra.mxu0 %v2555
        %v2557 = vand.u32 %v364, 4294901760
        %v2558 = vsub.f32 %v364, %v2557
        %v2559 = vand.u32 %v2558, 4294901760
        %2560 = vmatprep.subr.mxu0 %v2559
        %v2561 = vand.u32 %v363, 4294901760
        %v2562 = vsub.f32 %v363, %v2561
        %v2563 = vand.u32 %v2562, 4294901760
        %2564 = vmatpush1.msra.mxu0 %v2563
        %v2565 = vand.u32 %v360, 4294901760
        %v2566 = vsub.f32 %v360, %v2565
        %v2567 = vand.u32 %v2566, 4294901760
        %2568 = vmatprep.subr.mxu0 %v2567
        %v2569 = vand.u32 %v359, 4294901760
        %v2570 = vsub.f32 %v359, %v2569
        %v2571 = vand.u32 %v2570, 4294901760
        %2572 = vmatpush1.msra.mxu0 %v2571
        %v2573 = vand.u32 %v356, 4294901760
        %v2574 = vsub.f32 %v356, %v2573
        %v2575 = vand.u32 %v2574, 4294901760
        %2576 = vmatprep.subr.mxu0 %v2575
        %v2577 = vand.u32 %v355, 4294901760
        %v2578 = vsub.f32 %v355, %v2577
        %v2579 = vand.u32 %v2578, 4294901760
        %2580 = vmatpush1.msra.mxu0 %v2579
        %v2581 = vand.u32 %v352, 4294901760
        %v2582 = vsub.f32 %v352, %v2581
        %v2583 = vand.u32 %v2582, 4294901760
        %2584 = vmatprep.subr.mxu0 %v2583
        %v2585 = vand.u32 %v351, 4294901760
        %v2586 = vsub.f32 %v351, %v2585
        %v2587 = vand.u32 %v2586, 4294901760
        %2588 = vmatpush1.msra.mxu0 %v2587
        %2589 = vmatprep.subr.mxu0 0.0
        %2590 = vmatpush2.msra.mxu0 0.0
        %2591 = vmatprep.subr.mxu0 0.0
        %2592 = vmatpush2.msra.mxu0 0.0
        %2593 = vmatprep.subr.mxu0 0.0
        %2594 = vmatpush2.msra.mxu0 0.0
        %2595 = vmatprep.subr.mxu0 0.0
        %2596 = vmatpush2.msra.mxu0 0.0
        %2597 = vmatprep.subr.mxu0 0.0
        %2598 = vmatpush2.msra.mxu0 0.0
        %2599 = vmatprep.subr.mxu0 0.0
        %2600 = vmatpush2.msra.mxu0 0.0
        %2601 = vmatprep.subr.mxu0 0.0
        %2602 = vmatpush2.msra.mxu0 0.0
        %2603 = vmatprep.subr.mxu0 0.0
        %2604 = vmatpush2.msra.mxu0 0.0
        %2605 = vmatprep.subr.mxu0 0.0
        %2606 = vmatpush2.msra.mxu0 0.0
        %2607 = vmatprep.subr.mxu0 0.0
        %2608 = vmatpush2.msra.mxu0 0.0
        %2609 = vmatprep.subr.mxu0 0.0
        %2610 = vmatpush2.msra.mxu0 0.0
        %2611 = vmatprep.subr.mxu0 0.0
        %2612 = vmatpush2.msra.mxu0 0.0
        %2613 = vmatprep.subr.mxu0 0.0
        %2614 = vmatpush2.msra.mxu0 0.0
        %2615 = vmatprep.subr.mxu0 0.0
        %2616 = vmatpush2.msra.mxu0 0.0
        %2617 = vmatprep.subr.mxu0 0.0
        %2618 = vmatpush2.msra.mxu0 0.0
        %2619 = vmatprep.subr.mxu0 0.0
        %2620 = vmatpush2.msra.mxu0 0.0
        %2621 = vmatprep.mubr.f32.mxu0 0.0
        %v2622 = vand.u32 %v341, 4294901760
        %2623 = vmatmul.mubr.f32.gmra.mxu0 %v2622
        %v2624 = vpop.f32.mrf.mxu0
        %v2625 = vadd.f32 %v2394, %v2624
        %v2626 = vpop.f32.mrf.mxu0
        %v2627 = vadd.f32 %v2396, %v2626
        %2628 = vmatprep.mubr.f32.mxu0 0.0
        %v2629 = vand.u32 %v342, 4294901760
        %2630 = vmatmul.mubr.f32.gmra.mxu0 %v2629
        %v2631 = vpop.f32.mrf.mxu0
        %v2632 = vadd.f32 %v2403, %v2631
        %v2633 = vpop.f32.mrf.mxu0
        %v2634 = vadd.f32 %v2405, %v2633
        %2635 = vmatprep.mubr.f32.mxu0 0.0
        %v2636 = vand.u32 %v343, 4294901760
        %2637 = vmatmul.mubr.f32.gmra.mxu0 %v2636
        %v2638 = vpop.f32.mrf.mxu0
        %v2639 = vadd.f32 %v2412, %v2638
        %v2640 = vpop.f32.mrf.mxu0
        %v2641 = vadd.f32 %v2414, %v2640
        %2642 = vmatprep.mubr.f32.mxu0 0.0
        %v2643 = vand.u32 %v344, 4294901760
        %2644 = vmatmul.mubr.f32.gmra.mxu0 %v2643
        %v2645 = vpop.f32.mrf.mxu0
        %v2646 = vadd.f32 %v2421, %v2645
        %v2647 = vpop.f32.mrf.mxu0
        %v2648 = vadd.f32 %v2423, %v2647
        %2649 = vmatprep.mubr.f32.mxu0 0.0
        %v2650 = vand.u32 %v345, 4294901760
        %2651 = vmatmul.mubr.f32.gmra.mxu0 %v2650
        %v2652 = vpop.f32.mrf.mxu0
        %v2653 = vadd.f32 %v2430, %v2652
        %v2654 = vpop.f32.mrf.mxu0
        %v2655 = vadd.f32 %v2432, %v2654
        %2656 = vmatprep.mubr.f32.mxu0 0.0
        %v2657 = vand.u32 %v346, 4294901760
        %2658 = vmatmul.mubr.f32.gmra.mxu0 %v2657
        %v2659 = vpop.f32.mrf.mxu0
        %v2660 = vadd.f32 %v2439, %v2659
        %v2661 = vpop.f32.mrf.mxu0
        %v2662 = vadd.f32 %v2441, %v2661
        %2663 = vmatprep.mubr.f32.mxu0 0.0
        %v2664 = vand.u32 %v347, 4294901760
        %2665 = vmatmul.mubr.f32.gmra.mxu0 %v2664
        %v2666 = vpop.f32.mrf.mxu0
        %v2667 = vadd.f32 %v2448, %v2666
        %v2668 = vpop.f32.mrf.mxu0
        %v2669 = vadd.f32 %v2450, %v2668
        %2670 = vmatprep.mubr.f32.mxu0 0.0
        %v2671 = vand.u32 %v348, 4294901760
        %2672 = vmatmul.mubr.f32.gmra.mxu0 %v2671
        %v2673 = vpop.f32.mrf.mxu0
        %v2674 = vadd.f32 %v2457, %v2673
        %v2675 = vpop.f32.mrf.mxu0
        %v2676 = vadd.f32 %v2459, %v2675
        %2677 = vdwg.mxu0
        %v2678 = vand.u32 %v412, 4294901760
        %2679 = vmatprep.subr.mxu0 %v2678
        %v2680 = vand.u32 %v411, 4294901760
        %2681 = vmatpush1.msra.mxu0 %v2680
        %v2682 = vand.u32 %v408, 4294901760
        %2683 = vmatprep.subr.mxu0 %v2682
        %v2684 = vand.u32 %v407, 4294901760
        %2685 = vmatpush1.msra.mxu0 %v2684
        %v2686 = vand.u32 %v404, 4294901760
        %2687 = vmatprep.subr.mxu0 %v2686
        %v2688 = vand.u32 %v403, 4294901760
        %2689 = vmatpush1.msra.mxu0 %v2688
        %v2690 = vand.u32 %v400, 4294901760
        %2691 = vmatprep.subr.mxu0 %v2690
        %v2692 = vand.u32 %v399, 4294901760
        %2693 = vmatpush1.msra.mxu0 %v2692
        %v2694 = vand.u32 %v396, 4294901760
        %2695 = vmatprep.subr.mxu0 %v2694
        %v2696 = vand.u32 %v395, 4294901760
        %2697 = vmatpush1.msra.mxu0 %v2696
        %v2698 = vand.u32 %v392, 4294901760
        %2699 = vmatprep.subr.mxu0 %v2698
        %v2700 = vand.u32 %v391, 4294901760
        %2701 = vmatpush1.msra.mxu0 %v2700
        %v2702 = vand.u32 %v388, 4294901760
        %2703 = vmatprep.subr.mxu0 %v2702
        %v2704 = vand.u32 %v387, 4294901760
        %2705 = vmatpush1.msra.mxu0 %v2704
        %v2706 = vand.u32 %v384, 4294901760
        %2707 = vmatprep.subr.mxu0 %v2706
        %v2708 = vand.u32 %v383, 4294901760
        %2709 = vmatpush1.msra.mxu0 %v2708
        %v2710 = vand.u32 %v380, 4294901760
        %2711 = vmatprep.subr.mxu0 %v2710
        %v2712 = vand.u32 %v379, 4294901760
        %2713 = vmatpush1.msra.mxu0 %v2712
        %v2714 = vand.u32 %v376, 4294901760
        %2715 = vmatprep.subr.mxu0 %v2714
        %v2716 = vand.u32 %v375, 4294901760
        %2717 = vmatpush1.msra.mxu0 %v2716
        %v2718 = vand.u32 %v372, 4294901760
        %2719 = vmatprep.subr.mxu0 %v2718
        %v2720 = vand.u32 %v371, 4294901760
        %2721 = vmatpush1.msra.mxu0 %v2720
        %v2722 = vand.u32 %v368, 4294901760
        %2723 = vmatprep.subr.mxu0 %v2722
        %v2724 = vand.u32 %v367, 4294901760
        %2725 = vmatpush1.msra.mxu0 %v2724
        %v2726 = vand.u32 %v364, 4294901760
        %2727 = vmatprep.subr.mxu0 %v2726
        %v2728 = vand.u32 %v363, 4294901760
        %2729 = vmatpush1.msra.mxu0 %v2728
        %v2730 = vand.u32 %v360, 4294901760
        %2731 = vmatprep.subr.mxu0 %v2730
        %v2732 = vand.u32 %v359, 4294901760
        %2733 = vmatpush1.msra.mxu0 %v2732
        %v2734 = vand.u32 %v356, 4294901760
        %2735 = vmatprep.subr.mxu0 %v2734
        %v2736 = vand.u32 %v355, 4294901760
        %2737 = vmatpush1.msra.mxu0 %v2736
        %v2738 = vand.u32 %v352, 4294901760
        %2739 = vmatprep.subr.mxu0 %v2738
        %v2740 = vand.u32 %v351, 4294901760
        %2741 = vmatpush1.msra.mxu0 %v2740
        %2742 = vmatprep.subr.mxu0 0.0
        %2743 = vmatpush2.msra.mxu0 0.0
        %2744 = vmatprep.subr.mxu0 0.0
        %2745 = vmatpush2.msra.mxu0 0.0
        %2746 = vmatprep.subr.mxu0 0.0
        %2747 = vmatpush2.msra.mxu0 0.0
        %2748 = vmatprep.subr.mxu0 0.0
        %2749 = vmatpush2.msra.mxu0 0.0
        %2750 = vmatprep.subr.mxu0 0.0
        %2751 = vmatpush2.msra.mxu0 0.0
        %2752 = vmatprep.subr.mxu0 0.0
        %2753 = vmatpush2.msra.mxu0 0.0
        %2754 = vmatprep.subr.mxu0 0.0
        %2755 = vmatpush2.msra.mxu0 0.0
        %2756 = vmatprep.subr.mxu0 0.0
        %2757 = vmatpush2.msra.mxu0 0.0
        %2758 = vmatprep.subr.mxu0 0.0
        %2759 = vmatpush2.msra.mxu0 0.0
        %2760 = vmatprep.subr.mxu0 0.0
        %2761 = vmatpush2.msra.mxu0 0.0
        %2762 = vmatprep.subr.mxu0 0.0
        %2763 = vmatpush2.msra.mxu0 0.0
        %2764 = vmatprep.subr.mxu0 0.0
        %2765 = vmatpush2.msra.mxu0 0.0
        %2766 = vmatprep.subr.mxu0 0.0
        %2767 = vmatpush2.msra.mxu0 0.0
        %2768 = vmatprep.subr.mxu0 0.0
        %2769 = vmatpush2.msra.mxu0 0.0
        %2770 = vmatprep.subr.mxu0 0.0
        %2771 = vmatpush2.msra.mxu0 0.0
        %2772 = vmatprep.subr.mxu0 0.0
        %2773 = vmatpush2.msra.mxu0 0.0
        %2774 = vmatprep.mubr.f32.mxu0 0.0
        %v2775 = vand.u32 %v341, 4294901760
        %2776 = vmatmul.mubr.f32.gmra.mxu0 %v2775
        %v2777 = vpop.f32.mrf.mxu0
        %v2778 = vadd.f32 %v2625, %v2777
        %v2779 = vpop.f32.mrf.mxu0
        %v2780 = vadd.f32 %v2627, %v2779
        %2781 = vmatprep.mubr.f32.mxu0 0.0
        %v2782 = vand.u32 %v342, 4294901760
        %2783 = vmatmul.mubr.f32.gmra.mxu0 %v2782
        %v2784 = vpop.f32.mrf.mxu0
        %v2785 = vadd.f32 %v2632, %v2784
        %v2786 = vpop.f32.mrf.mxu0
        %v2787 = vadd.f32 %v2634, %v2786
        %2788 = vmatprep.mubr.f32.mxu0 0.0
        %v2789 = vand.u32 %v343, 4294901760
        %2790 = vmatmul.mubr.f32.gmra.mxu0 %v2789
        %v2791 = vpop.f32.mrf.mxu0
        %v2792 = vadd.f32 %v2639, %v2791
        %v2793 = vpop.f32.mrf.mxu0
        %v2794 = vadd.f32 %v2641, %v2793
        %2795 = vmatprep.mubr.f32.mxu0 0.0
        %v2796 = vand.u32 %v344, 4294901760
        %2797 = vmatmul.mubr.f32.gmra.mxu0 %v2796
        %v2798 = vpop.f32.mrf.mxu0
        %v2799 = vadd.f32 %v2646, %v2798
        %v2800 = vpop.f32.mrf.mxu0
        %v2801 = vadd.f32 %v2648, %v2800
        %2802 = vmatprep.mubr.f32.mxu0 0.0
        %v2803 = vand.u32 %v345, 4294901760
        %2804 = vmatmul.mubr.f32.gmra.mxu0 %v2803
        %v2805 = vpop.f32.mrf.mxu0
        %v2806 = vadd.f32 %v2653, %v2805
        %v2807 = vpop.f32.mrf.mxu0
        %v2808 = vadd.f32 %v2655, %v2807
        %2809 = vmatprep.mubr.f32.mxu0 0.0
        %v2810 = vand.u32 %v346, 4294901760
        %2811 = vmatmul.mubr.f32.gmra.mxu0 %v2810
        %v2812 = vpop.f32.mrf.mxu0
        %v2813 = vadd.f32 %v2660, %v2812
        %v2814 = vpop.f32.mrf.mxu0
        %v2815 = vadd.f32 %v2662, %v2814
        %2816 = vmatprep.mubr.f32.mxu0 0.0
        %v2817 = vand.u32 %v347, 4294901760
        %2818 = vmatmul.mubr.f32.gmra.mxu0 %v2817
        %v2819 = vpop.f32.mrf.mxu0
        %v2820 = vadd.f32 %v2667, %v2819
        %v2821 = vpop.f32.mrf.mxu0
        %v2822 = vadd.f32 %v2669, %v2821
        %2823 = vmatprep.mubr.f32.mxu0 0.0
        %v2824 = vand.u32 %v348, 4294901760
        %2825 = vmatmul.mubr.f32.gmra.mxu0 %v2824
        %v2826 = vpop.f32.mrf.mxu0
        %v2827 = vadd.f32 %v2674, %v2826
        %v2828 = vpop.f32.mrf.mxu0
        %v2829 = vadd.f32 %v2676, %v2828
        %2830 = vdwg.mxu0
        %v2831 = vmul.f32 %v1580, 0.5
        %v2832 = vmul.f32 %v1582, 0.5
        %v2833 = vmul.f32 %v2778, 0.5
        %v2834 = vmul.f32 %v2780, 0.5
        %v2835 = vmul.f32 %v1587, 0.5
        %v2836 = vmul.f32 %v1589, 0.5
        %v2837 = vmul.f32 %v2785, 0.5
        %v2838 = vmul.f32 %v2787, 0.5
        %v2839 = vmul.f32 %v1594, 0.5
        %v2840 = vmul.f32 %v1596, 0.5
        %v2841 = vmul.f32 %v2792, 0.5
        %v2842 = vmul.f32 %v2794, 0.5
        %v2843 = vmul.f32 %v1601, 0.5
        %v2844 = vmul.f32 %v1603, 0.5
        %v2845 = vmul.f32 %v2799, 0.5
        %v2846 = vmul.f32 %v2801, 0.5
        %v2847 = vmul.f32 %v1608, 0.5
        %v2848 = vmul.f32 %v1610, 0.5
        %v2849 = vmul.f32 %v2806, 0.5
        %v2850 = vmul.f32 %v2808, 0.5
        %v2851 = vmul.f32 %v1615, 0.5
        %v2852 = vmul.f32 %v1617, 0.5
        %v2853 = vmul.f32 %v2813, 0.5
        %v2854 = vmul.f32 %v2815, 0.5
        %v2855 = vmul.f32 %v1622, 0.5
        %v2856 = vmul.f32 %v1624, 0.5
        %v2857 = vmul.f32 %v2820, 0.5
        %v2858 = vmul.f32 %v2822, 0.5
        %v2859 = vmul.f32 %v1629, 0.5
        %v2860 = vmul.f32 %v1631, 0.5
        %v2861 = vmul.f32 %v2827, 0.5
        %v2862 = vmul.f32 %v2829, 0.5
        %v2863 = vmul.f32 %v1580, 0.70710677
        %v2864 = vmul.f32 %v1582, 0.70710677
        %v2865 = vmul.f32 %v2778, 0.70710677
        %v2866 = vmul.f32 %v2780, 0.70710677
        %v2867 = vmul.f32 %v1587, 0.70710677
        %v2868 = vmul.f32 %v1589, 0.70710677
        %v2869 = vmul.f32 %v2785, 0.70710677
        %v2870 = vmul.f32 %v2787, 0.70710677
        %v2871 = vmul.f32 %v1594, 0.70710677
        %v2872 = vmul.f32 %v1596, 0.70710677
        %v2873 = vmul.f32 %v2792, 0.70710677
        %v2874 = vmul.f32 %v2794, 0.70710677
        %v2875 = vmul.f32 %v1601, 0.70710677
        %v2876 = vmul.f32 %v1603, 0.70710677
        %v2877 = vmul.f32 %v2799, 0.70710677
        %v2878 = vmul.f32 %v2801, 0.70710677
        %v2879 = vmul.f32 %v1608, 0.70710677
        %v2880 = vmul.f32 %v1610, 0.70710677
        %v2881 = vmul.f32 %v2806, 0.70710677
        %v2882 = vmul.f32 %v2808, 0.70710677
        %v2883 = vmul.f32 %v1615, 0.70710677
        %v2884 = vmul.f32 %v1617, 0.70710677
        %v2885 = vmul.f32 %v2813, 0.70710677
        %v2886 = vmul.f32 %v2815, 0.70710677
        %v2887 = vmul.f32 %v1622, 0.70710677
        %v2888 = vmul.f32 %v1624, 0.70710677
        %v2889 = vmul.f32 %v2820, 0.70710677
        %v2890 = vmul.f32 %v2822, 0.70710677
        %v2891 = vmul.f32 %v1629, 0.70710677
        %v2892 = vmul.f32 %v1631, 0.70710677
        %v2893 = vmul.f32 %v2827, 0.70710677
        %v2894 = vmul.f32 %v2829, 0.70710677
        %v2895 = verf.f32.pop %v2863
        %v2896 = verf.f32.pop %v2864
        %v2897 = verf.f32.pop %v2865
        %v2898 = verf.f32.pop %v2866
        %v2899 = verf.f32.pop %v2867
        %v2900 = verf.f32.pop %v2868
        %v2901 = verf.f32.pop %v2869
        %v2902 = verf.f32.pop %v2870
        %v2903 = verf.f32.pop %v2871
        %v2904 = verf.f32.pop %v2872
        %v2905 = verf.f32.pop %v2873
        %v2906 = verf.f32.pop %v2874
        %v2907 = verf.f32.pop %v2875
        %v2908 = verf.f32.pop %v2876
        %v2909 = verf.f32.pop %v2877
        %v2910 = verf.f32.pop %v2878
        %v2911 = verf.f32.pop %v2879
        %v2912 = verf.f32.pop %v2880
        %v2913 = verf.f32.pop %v2881
        %v2914 = verf.f32.pop %v2882
        %v2915 = verf.f32.pop %v2883
        %v2916 = verf.f32.pop %v2884
        %v2917 = verf.f32.pop %v2885
        %v2918 = verf.f32.pop %v2886
        %v2919 = verf.f32.pop %v2887
        %v2920 = verf.f32.pop %v2888
        %v2921 = verf.f32.pop %v2889
        %v2922 = verf.f32.pop %v2890
        %v2923 = verf.f32.pop %v2891
        %v2924 = verf.f32.pop %v2892
        %v2925 = verf.f32.pop %v2893
        %v2926 = verf.f32.pop %v2894
        %v2927 = vadd.f32 %v2895, 1.0
        %v2928 = vadd.f32 %v2896, 1.0
        %v2929 = vadd.f32 %v2897, 1.0
        %v2930 = vadd.f32 %v2898, 1.0
        %v2931 = vadd.f32 %v2899, 1.0
        %v2932 = vadd.f32 %v2900, 1.0
        %v2933 = vadd.f32 %v2901, 1.0
        %v2934 = vadd.f32 %v2902, 1.0
        %v2935 = vadd.f32 %v2903, 1.0
        %v2936 = vadd.f32 %v2904, 1.0
        %v2937 = vadd.f32 %v2905, 1.0
        %v2938 = vadd.f32 %v2906, 1.0
        %v2939 = vadd.f32 %v2907, 1.0
        %v2940 = vadd.f32 %v2908, 1.0
        %v2941 = vadd.f32 %v2909, 1.0
        %v2942 = vadd.f32 %v2910, 1.0
        %v2943 = vadd.f32 %v2911, 1.0
        %v2944 = vadd.f32 %v2912, 1.0
        %v2945 = vadd.f32 %v2913, 1.0
        %v2946 = vadd.f32 %v2914, 1.0
        %v2947 = vadd.f32 %v2915, 1.0
        %v2948 = vadd.f32 %v2916, 1.0
        %v2949 = vadd.f32 %v2917, 1.0
        %v2950 = vadd.f32 %v2918, 1.0
        %v2951 = vadd.f32 %v2919, 1.0
        %v2952 = vadd.f32 %v2920, 1.0
        %v2953 = vadd.f32 %v2921, 1.0
        %v2954 = vadd.f32 %v2922, 1.0
        %v2955 = vadd.f32 %v2923, 1.0
        %v2956 = vadd.f32 %v2924, 1.0
        %v2957 = vadd.f32 %v2925, 1.0
        %v2958 = vadd.f32 %v2926, 1.0
        %v2959 = vmul.f32 %v2831, %v2927
        %v2960 = vmul.f32 %v2832, %v2928
        %v2961 = vmul.f32 %v2833, %v2929
        %v2962 = vmul.f32 %v2834, %v2930
        %v2963 = vmul.f32 %v2835, %v2931
        %v2964 = vmul.f32 %v2836, %v2932
        %v2965 = vmul.f32 %v2837, %v2933
        %v2966 = vmul.f32 %v2838, %v2934
        %v2967 = vmul.f32 %v2839, %v2935
        %v2968 = vmul.f32 %v2840, %v2936
        %v2969 = vmul.f32 %v2841, %v2937
        %v2970 = vmul.f32 %v2842, %v2938
        %v2971 = vmul.f32 %v2843, %v2939
        %v2972 = vmul.f32 %v2844, %v2940
        %v2973 = vmul.f32 %v2845, %v2941
        %v2974 = vmul.f32 %v2846, %v2942
        %v2975 = vmul.f32 %v2847, %v2943
        %v2976 = vmul.f32 %v2848, %v2944
        %v2977 = vmul.f32 %v2849, %v2945
        %v2978 = vmul.f32 %v2850, %v2946
        %v2979 = vmul.f32 %v2851, %v2947
        %v2980 = vmul.f32 %v2852, %v2948
        %v2981 = vmul.f32 %v2853, %v2949
        %v2982 = vmul.f32 %v2854, %v2950
        %v2983 = vmul.f32 %v2855, %v2951
        %v2984 = vmul.f32 %v2856, %v2952
        %v2985 = vmul.f32 %v2857, %v2953
        %v2986 = vmul.f32 %v2858, %v2954
        %v2987 = vmul.f32 %v2859, %v2955
        %v2988 = vmul.f32 %v2860, %v2956
        %v2989 = vmul.f32 %v2861, %v2957
        %v2990 = vmul.f32 %v2862, %v2958
        %v2991 = vld [vmem:[#allocation8] sm:$0xff]
        %v2992 = vld [vmem:[#allocation8 + $0x8] sm:$0xff]
        %v2993 = vld [vmem:[#allocation8 + $0x10] sm:$0xff]
        %v2994 = vld [vmem:[#allocation8 + $0x18] sm:$0xff]
        %v2995 = vld [vmem:[#allocation8 + $0x20] sm:$0xff]
        %v2996 = vld [vmem:[#allocation8 + $0x28] sm:$0xff]
        %v2997 = vld [vmem:[#allocation8 + $0x30] sm:$0xff]
        %v2998 = vld [vmem:[#allocation8 + $0x38] sm:$0xff]
        %v2999 = vld [vmem:[#allocation8 + $0x40] sm:$0xff]
        %v3000 = vld [vmem:[#allocation8 + $0x48] sm:$0xff]
        %v3001 = vld [vmem:[#allocation8 + $0x50] sm:$0xff]
        %v3002 = vld [vmem:[#allocation8 + $0x58] sm:$0xff]
        %v3003 = vld [vmem:[#allocation8 + $0x60] sm:$0xff]
        %v3004 = vld [vmem:[#allocation8 + $0x68] sm:$0xff]
        %v3005 = vld [vmem:[#allocation8 + $0x70] sm:$0xff]
        %v3006 = vld [vmem:[#allocation8 + $0x78] sm:$0xff]
        %v3007 = vld [vmem:[#allocation8 + $0x80] sm:$0xff]
        %v3008 = vld [vmem:[#allocation8 + $0x88] sm:$0xff]
        %v3009 = vld [vmem:[#allocation8 + $0x90] sm:$0xff]
        %v3010 = vld [vmem:[#allocation8 + $0x98] sm:$0xff]
        %v3011 = vld [vmem:[#allocation8 + $0xa0] sm:$0xff]
        %v3012 = vld [vmem:[#allocation8 + $0xa8] sm:$0xff]
        %v3013 = vld [vmem:[#allocation8 + $0xb0] sm:$0xff]
        %v3014 = vld [vmem:[#allocation8 + $0xb8] sm:$0xff]
        %v3015 = vld [vmem:[#allocation8 + $0xc0] sm:$0xff]
        %v3016 = vld [vmem:[#allocation8 + $0xc8] sm:$0xff]
        %v3017 = vld [vmem:[#allocation8 + $0xd0] sm:$0xff]
        %v3018 = vld [vmem:[#allocation8 + $0xd8] sm:$0xff]
        %v3019 = vld [vmem:[#allocation8 + $0xe0] sm:$0xff]
        %v3020 = vld [vmem:[#allocation8 + $0xe8] sm:$0xff]
        %v3021 = vld [vmem:[#allocation8 + $0xf0] sm:$0xff]
        %v3022 = vld [vmem:[#allocation8 + $0xf8] sm:$0xff]
        %v3023 = vld [vmem:[#allocation8 + $0x100] sm:$0xff]
        %v3024 = vld [vmem:[#allocation8 + $0x108] sm:$0xff]
        %v3025 = vld [vmem:[#allocation8 + $0x110] sm:$0xff]
        %v3026 = vld [vmem:[#allocation8 + $0x118] sm:$0xff]
        %v3027 = vld [vmem:[#allocation8 + $0x120] sm:$0xff]
        %v3028 = vld [vmem:[#allocation8 + $0x128] sm:$0xff]
        %v3029 = vld [vmem:[#allocation8 + $0x130] sm:$0xff]
        %v3030 = vld [vmem:[#allocation8 + $0x138] sm:$0xff]
        %v3031 = vld [vmem:[#allocation8 + $0x140] sm:$0xff]
        %v3032 = vld [vmem:[#allocation8 + $0x148] sm:$0xff]
        %v3033 = vld [vmem:[#allocation8 + $0x150] sm:$0xff]
        %v3034 = vld [vmem:[#allocation8 + $0x158] sm:$0xff]
        %v3035 = vld [vmem:[#allocation8 + $0x160] sm:$0xff]
        %v3036 = vld [vmem:[#allocation8 + $0x168] sm:$0xff]
        %v3037 = vld [vmem:[#allocation8 + $0x170] sm:$0xff]
        %v3038 = vld [vmem:[#allocation8 + $0x178] sm:$0xff]
        %v3039 = vld [vmem:[#allocation8 + $0x180] sm:$0xff]
        %v3040 = vld [vmem:[#allocation8 + $0x188] sm:$0xff]
        %v3041 = vld [vmem:[#allocation8 + $0x190] sm:$0xff]
        %v3042 = vld [vmem:[#allocation8 + $0x198] sm:$0xff]
        %v3043 = vld [vmem:[#allocation8 + $0x1a0] sm:$0xff]
        %v3044 = vld [vmem:[#allocation8 + $0x1a8] sm:$0xff]
        %v3045 = vld [vmem:[#allocation8 + $0x1b0] sm:$0xff]
        %v3046 = vld [vmem:[#allocation8 + $0x1b8] sm:$0xff]
        %v3047 = vld [vmem:[#allocation8 + $0x1c0] sm:$0xff]
        %v3048 = vld [vmem:[#allocation8 + $0x1c8] sm:$0xff]
        %v3049 = vld [vmem:[#allocation8 + $0x1d0] sm:$0xff]
        %v3050 = vld [vmem:[#allocation8 + $0x1d8] sm:$0xff]
        %v3051 = vld [vmem:[#allocation8 + $0x1e0] sm:$0xff]
        %v3052 = vld [vmem:[#allocation8 + $0x1e8] sm:$0xff]
        %v3053 = vld [vmem:[#allocation8 + $0x1f0] sm:$0xff]
        %v3054 = vld [vmem:[#allocation8 + $0x1f8] sm:$0xff]
        %v3055 = vld [vmem:[%s4] sm:$0x1]
        %v3057 = vlaneseq
        %v3058 = vshrl.u32 %v3057, 7
        %v3059 = vsub.s32 0, %v3058
        %v3060 = vrot.slane %v3055, %v3059
        %3062 = vmatprep.subr.mxu0 0.0
        %v3063 = vand.u32 %v3006, 4294901760
        %3064 = vmatpush1.msra.mxu0 %v3063
        %3065 = vmatprep.subr.mxu0 0.0
        %v3066 = vand.u32 %v3005, 4294901760
        %3067 = vmatpush1.msra.mxu0 %v3066
        %3068 = vmatprep.subr.mxu0 0.0
        %v3069 = vand.u32 %v3004, 4294901760
        %3070 = vmatpush1.msra.mxu0 %v3069
        %3071 = vmatprep.subr.mxu0 0.0
        %v3072 = vand.u32 %v3003, 4294901760
        %3073 = vmatpush1.msra.mxu0 %v3072
        %3074 = vmatprep.subr.mxu0 0.0
        %v3075 = vand.u32 %v3002, 4294901760
        %3076 = vmatpush1.msra.mxu0 %v3075
        %3077 = vmatprep.subr.mxu0 0.0
        %v3078 = vand.u32 %v3001, 4294901760
        %3079 = vmatpush1.msra.mxu0 %v3078
        %3080 = vmatprep.subr.mxu0 0.0
        %v3081 = vand.u32 %v3000, 4294901760
        %3082 = vmatpush1.msra.mxu0 %v3081
        %3083 = vmatprep.subr.mxu0 0.0
        %v3084 = vand.u32 %v2999, 4294901760
        %3085 = vmatpush1.msra.mxu0 %v3084
        %3086 = vmatprep.subr.mxu0 0.0
        %v3087 = vand.u32 %v2998, 4294901760
        %3088 = vmatpush1.msra.mxu0 %v3087
        %3089 = vmatprep.subr.mxu0 0.0
        %v3090 = vand.u32 %v2997, 4294901760
        %3091 = vmatpush1.msra.mxu0 %v3090
        %3092 = vmatprep.subr.mxu0 0.0
        %v3093 = vand.u32 %v2996, 4294901760
        %3094 = vmatpush1.msra.mxu0 %v3093
        %3095 = vmatprep.subr.mxu0 0.0
        %v3096 = vand.u32 %v2995, 4294901760
        %3097 = vmatpush1.msra.mxu0 %v3096
        %3098 = vmatprep.subr.mxu0 0.0
        %v3099 = vand.u32 %v2994, 4294901760
        %3100 = vmatpush1.msra.mxu0 %v3099
        %3101 = vmatprep.subr.mxu0 0.0
        %v3102 = vand.u32 %v2993, 4294901760
        %3103 = vmatpush1.msra.mxu0 %v3102
        %3104 = vmatprep.subr.mxu0 0.0
        %v3105 = vand.u32 %v2992, 4294901760
        %3106 = vmatpush1.msra.mxu0 %v3105
        %3107 = vmatprep.subr.mxu0 0.0
        %v3108 = vand.u32 %v2991, 4294901760
        %3109 = vmatpush1.msra.mxu0 %v3108
        %3110 = vmatprep.subr.mxu0 0.0
        %v3111 = vand.u32 %v3022, 4294901760
        %3112 = vmatpush2.msra.mxu0 %v3111
        %3113 = vmatprep.subr.mxu0 0.0
        %v3114 = vand.u32 %v3021, 4294901760
        %3115 = vmatpush2.msra.mxu0 %v3114
        %3116 = vmatprep.subr.mxu0 0.0
        %v3117 = vand.u32 %v3020, 4294901760
        %3118 = vmatpush2.msra.mxu0 %v3117
        %3119 = vmatprep.subr.mxu0 0.0
        %v3120 = vand.u32 %v3019, 4294901760
        %3121 = vmatpush2.msra.mxu0 %v3120
        %3122 = vmatprep.subr.mxu0 0.0
        %v3123 = vand.u32 %v3018, 4294901760
        %3124 = vmatpush2.msra.mxu0 %v3123
        %3125 = vmatprep.subr.mxu0 0.0
        %v3126 = vand.u32 %v3017, 4294901760
        %3127 = vmatpush2.msra.mxu0 %v3126
        %3128 = vmatprep.subr.mxu0 0.0
        %v3129 = vand.u32 %v3016, 4294901760
        %3130 = vmatpush2.msra.mxu0 %v3129
        %3131 = vmatprep.subr.mxu0 0.0
        %v3132 = vand.u32 %v3015, 4294901760
        %3133 = vmatpush2.msra.mxu0 %v3132
        %3134 = vmatprep.subr.mxu0 0.0
        %v3135 = vand.u32 %v3014, 4294901760
        %3136 = vmatpush2.msra.mxu0 %v3135
        %3137 = vmatprep.subr.mxu0 0.0
        %v3138 = vand.u32 %v3013, 4294901760
        %3139 = vmatpush2.msra.mxu0 %v3138
        %3140 = vmatprep.subr.mxu0 0.0
        %v3141 = vand.u32 %v3012, 4294901760
        %3142 = vmatpush2.msra.mxu0 %v3141
        %3143 = vmatprep.subr.mxu0 0.0
        %v3144 = vand.u32 %v3011, 4294901760
        %3145 = vmatpush2.msra.mxu0 %v3144
        %3146 = vmatprep.subr.mxu0 0.0
        %v3147 = vand.u32 %v3010, 4294901760
        %3148 = vmatpush2.msra.mxu0 %v3147
        %3149 = vmatprep.subr.mxu0 0.0
        %v3150 = vand.u32 %v3009, 4294901760
        %3151 = vmatpush2.msra.mxu0 %v3150
        %3152 = vmatprep.subr.mxu0 0.0
        %v3153 = vand.u32 %v3008, 4294901760
        %3154 = vmatpush2.msra.mxu0 %v3153
        %3155 = vmatprep.subr.mxu0 0.0
        %v3156 = vand.u32 %v3007, 4294901760
        %3157 = vmatpush2.msra.mxu0 %v3156
        %v3158 = vand.u32 %v2960, 4294901760
        %v3159 = vsub.f32 %v2960, %v3158
        %v3160 = vand.u32 %v3159, 4294901760
        %v3161 = vsub.f32 %v3159, %v3160
        %v3162 = vand.u32 %v3161, 4294901760
        %3163 = vmatprep.mubr.f32.mxu0 %v3162
        %v3164 = vand.u32 %v2959, 4294901760
        %v3165 = vsub.f32 %v2959, %v3164
        %v3166 = vand.u32 %v3165, 4294901760
        %v3167 = vsub.f32 %v3165, %v3166
        %v3168 = vand.u32 %v3167, 4294901760
        %3169 = vmatmul.mubr.f32.gmra.mxu0 %v3168
        %v3170 = vpop.f32.mrf.mxu0
        %v3171 = vadd.f32 %v3060, %v3170
        %v3172 = vpop.f32.mrf.mxu0
        %v3173 = vand.u32 %v2964, 4294901760
        %v3174 = vsub.f32 %v2964, %v3173
        %v3175 = vand.u32 %v3174, 4294901760
        %v3176 = vsub.f32 %v3174, %v3175
        %v3177 = vand.u32 %v3176, 4294901760
        %3178 = vmatprep.mubr.f32.mxu0 %v3177
        %v3179 = vand.u32 %v2963, 4294901760
        %v3180 = vsub.f32 %v2963, %v3179
        %v3181 = vand.u32 %v3180, 4294901760
        %v3182 = vsub.f32 %v3180, %v3181
        %v3183 = vand.u32 %v3182, 4294901760
        %3184 = vmatmul.mubr.f32.gmra.mxu0 %v3183
        %v3185 = vpop.f32.mrf.mxu0
        %v3186 = vadd.f32 %v3060, %v3185
        %v3187 = vpop.f32.mrf.mxu0
        %v3188 = vand.u32 %v2968, 4294901760
        %v3189 = vsub.f32 %v2968, %v3188
        %v3190 = vand.u32 %v3189, 4294901760
        %v3191 = vsub.f32 %v3189, %v3190
        %v3192 = vand.u32 %v3191, 4294901760
        %3193 = vmatprep.mubr.f32.mxu0 %v3192
        %v3194 = vand.u32 %v2967, 4294901760
        %v3195 = vsub.f32 %v2967, %v3194
        %v3196 = vand.u32 %v3195, 4294901760
        %v3197 = vsub.f32 %v3195, %v3196
        %v3198 = vand.u32 %v3197, 4294901760
        %3199 = vmatmul.mubr.f32.gmra.mxu0 %v3198
        %v3200 = vpop.f32.mrf.mxu0
        %v3201 = vadd.f32 %v3060, %v3200
        %v3202 = vpop.f32.mrf.mxu0
        %v3203 = vand.u32 %v2972, 4294901760
        %v3204 = vsub.f32 %v2972, %v3203
        %v3205 = vand.u32 %v3204, 4294901760
        %v3206 = vsub.f32 %v3204, %v3205
        %v3207 = vand.u32 %v3206, 4294901760
        %3208 = vmatprep.mubr.f32.mxu0 %v3207
        %v3209 = vand.u32 %v2971, 4294901760
        %v3210 = vsub.f32 %v2971, %v3209
        %v3211 = vand.u32 %v3210, 4294901760
        %v3212 = vsub.f32 %v3210, %v3211
        %v3213 = vand.u32 %v3212, 4294901760
        %3214 = vmatmul.mubr.f32.gmra.mxu0 %v3213
        %v3215 = vpop.f32.mrf.mxu0
        %v3216 = vadd.f32 %v3060, %v3215
        %v3217 = vpop.f32.mrf.mxu0
        %v3218 = vand.u32 %v2976, 4294901760
        %v3219 = vsub.f32 %v2976, %v3218
        %v3220 = vand.u32 %v3219, 4294901760
        %v3221 = vsub.f32 %v3219, %v3220
        %v3222 = vand.u32 %v3221, 4294901760
        %3223 = vmatprep.mubr.f32.mxu0 %v3222
        %v3224 = vand.u32 %v2975, 4294901760
        %v3225 = vsub.f32 %v2975, %v3224
        %v3226 = vand.u32 %v3225, 4294901760
        %v3227 = vsub.f32 %v3225, %v3226
        %v3228 = vand.u32 %v3227, 4294901760
        %3229 = vmatmul.mubr.f32.gmra.mxu0 %v3228
        %v3230 = vpop.f32.mrf.mxu0
        %v3231 = vadd.f32 %v3060, %v3230
        %v3232 = vpop.f32.mrf.mxu0
        %v3233 = vand.u32 %v2980, 4294901760
        %v3234 = vsub.f32 %v2980, %v3233
        %v3235 = vand.u32 %v3234, 4294901760
        %v3236 = vsub.f32 %v3234, %v3235
        %v3237 = vand.u32 %v3236, 4294901760
        %3238 = vmatprep.mubr.f32.mxu0 %v3237
        %v3239 = vand.u32 %v2979, 4294901760
        %v3240 = vsub.f32 %v2979, %v3239
        %v3241 = vand.u32 %v3240, 4294901760
        %v3242 = vsub.f32 %v3240, %v3241
        %v3243 = vand.u32 %v3242, 4294901760
        %3244 = vmatmul.mubr.f32.gmra.mxu0 %v3243
        %v3245 = vpop.f32.mrf.mxu0
        %v3246 = vadd.f32 %v3060, %v3245
        %v3247 = vpop.f32.mrf.mxu0
        %v3248 = vand.u32 %v2984, 4294901760
        %v3249 = vsub.f32 %v2984, %v3248
        %v3250 = vand.u32 %v3249, 4294901760
        %v3251 = vsub.f32 %v3249, %v3250
        %v3252 = vand.u32 %v3251, 4294901760
        %3253 = vmatprep.mubr.f32.mxu0 %v3252
        %v3254 = vand.u32 %v2983, 4294901760
        %v3255 = vsub.f32 %v2983, %v3254
        %v3256 = vand.u32 %v3255, 4294901760
        %v3257 = vsub.f32 %v3255, %v3256
        %v3258 = vand.u32 %v3257, 4294901760
        %3259 = vmatmul.mubr.f32.gmra.mxu0 %v3258
        %v3260 = vpop.f32.mrf.mxu0
        %v3261 = vadd.f32 %v3060, %v3260
        %v3262 = vpop.f32.mrf.mxu0
        %v3263 = vand.u32 %v2988, 4294901760
        %v3264 = vsub.f32 %v2988, %v3263
        %v3265 = vand.u32 %v3264, 4294901760
        %v3266 = vsub.f32 %v3264, %v3265
        %v3267 = vand.u32 %v3266, 4294901760
        %3268 = vmatprep.mubr.f32.mxu0 %v3267
        %v3269 = vand.u32 %v2987, 4294901760
        %v3270 = vsub.f32 %v2987, %v3269
        %v3271 = vand.u32 %v3270, 4294901760
        %v3272 = vsub.f32 %v3270, %v3271
        %v3273 = vand.u32 %v3272, 4294901760
        %3274 = vmatmul.mubr.f32.gmra.mxu0 %v3273
        %v3275 = vpop.f32.mrf.mxu0
        %v3276 = vadd.f32 %v3060, %v3275
        %v3277 = vpop.f32.mrf.mxu0
        %3278 = vdwg.mxu0
        %3279 = vmatprep.subr.mxu0 0.0
        %v3280 = vand.u32 %v3006, 4294901760
        %v3281 = vsub.f32 %v3006, %v3280
        %v3282 = vand.u32 %v3281, 4294901760
        %v3283 = vsub.f32 %v3281, %v3282
        %v3284 = vand.u32 %v3283, 4294901760
        %3285 = vmatpush1.msra.mxu0 %v3284
        %3286 = vmatprep.subr.mxu0 0.0
        %v3287 = vand.u32 %v3005, 4294901760
        %v3288 = vsub.f32 %v3005, %v3287
        %v3289 = vand.u32 %v3288, 4294901760
        %v3290 = vsub.f32 %v3288, %v3289
        %v3291 = vand.u32 %v3290, 4294901760
        %3292 = vmatpush1.msra.mxu0 %v3291
        %3293 = vmatprep.subr.mxu0 0.0
        %v3294 = vand.u32 %v3004, 4294901760
        %v3295 = vsub.f32 %v3004, %v3294
        %v3296 = vand.u32 %v3295, 4294901760
        %v3297 = vsub.f32 %v3295, %v3296
        %v3298 = vand.u32 %v3297, 4294901760
        %3299 = vmatpush1.msra.mxu0 %v3298
        %3300 = vmatprep.subr.mxu0 0.0
        %v3301 = vand.u32 %v3003, 4294901760
        %v3302 = vsub.f32 %v3003, %v3301
        %v3303 = vand.u32 %v3302, 4294901760
        %v3304 = vsub.f32 %v3302, %v3303
        %v3305 = vand.u32 %v3304, 4294901760
        %3306 = vmatpush1.msra.mxu0 %v3305
        %3307 = vmatprep.subr.mxu0 0.0
        %v3308 = vand.u32 %v3002, 4294901760
        %v3309 = vsub.f32 %v3002, %v3308
        %v3310 = vand.u32 %v3309, 4294901760
        %v3311 = vsub.f32 %v3309, %v3310
        %v3312 = vand.u32 %v3311, 4294901760
        %3313 = vmatpush1.msra.mxu0 %v3312
        %3314 = vmatprep.subr.mxu0 0.0
        %v3315 = vand.u32 %v3001, 4294901760
        %v3316 = vsub.f32 %v3001, %v3315
        %v3317 = vand.u32 %v3316, 4294901760
        %v3318 = vsub.f32 %v3316, %v3317
        %v3319 = vand.u32 %v3318, 4294901760
        %3320 = vmatpush1.msra.mxu0 %v3319
        %3321 = vmatprep.subr.mxu0 0.0
        %v3322 = vand.u32 %v3000, 4294901760
        %v3323 = vsub.f32 %v3000, %v3322
        %v3324 = vand.u32 %v3323, 4294901760
        %v3325 = vsub.f32 %v3323, %v3324
        %v3326 = vand.u32 %v3325, 4294901760
        %3327 = vmatpush1.msra.mxu0 %v3326
        %3328 = vmatprep.subr.mxu0 0.0
        %v3329 = vand.u32 %v2999, 4294901760
        %v3330 = vsub.f32 %v2999, %v3329
        %v3331 = vand.u32 %v3330, 4294901760
        %v3332 = vsub.f32 %v3330, %v3331
        %v3333 = vand.u32 %v3332, 4294901760
        %3334 = vmatpush1.msra.mxu0 %v3333
        %3335 = vmatprep.subr.mxu0 0.0
        %v3336 = vand.u32 %v2998, 4294901760
        %v3337 = vsub.f32 %v2998, %v3336
        %v3338 = vand.u32 %v3337, 4294901760
        %v3339 = vsub.f32 %v3337, %v3338
        %v3340 = vand.u32 %v3339, 4294901760
        %3341 = vmatpush1.msra.mxu0 %v3340
        %3342 = vmatprep.subr.mxu0 0.0
        %v3343 = vand.u32 %v2997, 4294901760
        %v3344 = vsub.f32 %v2997, %v3343
        %v3345 = vand.u32 %v3344, 4294901760
        %v3346 = vsub.f32 %v3344, %v3345
        %v3347 = vand.u32 %v3346, 4294901760
        %3348 = vmatpush1.msra.mxu0 %v3347
        %3349 = vmatprep.subr.mxu0 0.0
        %v3350 = vand.u32 %v2996, 4294901760
        %v3351 = vsub.f32 %v2996, %v3350
        %v3352 = vand.u32 %v3351, 4294901760
        %v3353 = vsub.f32 %v3351, %v3352
        %v3354 = vand.u32 %v3353, 4294901760
        %3355 = vmatpush1.msra.mxu0 %v3354
        %3356 = vmatprep.subr.mxu0 0.0
        %v3357 = vand.u32 %v2995, 4294901760
        %v3358 = vsub.f32 %v2995, %v3357
        %v3359 = vand.u32 %v3358, 4294901760
        %v3360 = vsub.f32 %v3358, %v3359
        %v3361 = vand.u32 %v3360, 4294901760
        %3362 = vmatpush1.msra.mxu0 %v3361
        %3363 = vmatprep.subr.mxu0 0.0
        %v3364 = vand.u32 %v2994, 4294901760
        %v3365 = vsub.f32 %v2994, %v3364
        %v3366 = vand.u32 %v3365, 4294901760
        %v3367 = vsub.f32 %v3365, %v3366
        %v3368 = vand.u32 %v3367, 4294901760
        %3369 = vmatpush1.msra.mxu0 %v3368
        %3370 = vmatprep.subr.mxu0 0.0
        %v3371 = vand.u32 %v2993, 4294901760
        %v3372 = vsub.f32 %v2993, %v3371
        %v3373 = vand.u32 %v3372, 4294901760
        %v3374 = vsub.f32 %v3372, %v3373
        %v3375 = vand.u32 %v3374, 4294901760
        %3376 = vmatpush1.msra.mxu0 %v3375
        %3377 = vmatprep.subr.mxu0 0.0
        %v3378 = vand.u32 %v2992, 4294901760
        %v3379 = vsub.f32 %v2992, %v3378
        %v3380 = vand.u32 %v3379, 4294901760
        %v3381 = vsub.f32 %v3379, %v3380
        %v3382 = vand.u32 %v3381, 4294901760
        %3383 = vmatpush1.msra.mxu0 %v3382
        %3384 = vmatprep.subr.mxu0 0.0
        %v3385 = vand.u32 %v2991, 4294901760
        %v3386 = vsub.f32 %v2991, %v3385
        %v3387 = vand.u32 %v3386, 4294901760
        %v3388 = vsub.f32 %v3386, %v3387
        %v3389 = vand.u32 %v3388, 4294901760
        %3390 = vmatpush1.msra.mxu0 %v3389
        %3391 = vmatprep.subr.mxu0 0.0
        %v3392 = vand.u32 %v3022, 4294901760
        %v3393 = vsub.f32 %v3022, %v3392
        %v3394 = vand.u32 %v3393, 4294901760
        %v3395 = vsub.f32 %v3393, %v3394
        %v3396 = vand.u32 %v3395, 4294901760
        %3397 = vmatpush2.msra.mxu0 %v3396
        %3398 = vmatprep.subr.mxu0 0.0
        %v3399 = vand.u32 %v3021, 4294901760
        %v3400 = vsub.f32 %v3021, %v3399
        %v3401 = vand.u32 %v3400, 4294901760
        %v3402 = vsub.f32 %v3400, %v3401
        %v3403 = vand.u32 %v3402, 4294901760
        %3404 = vmatpush2.msra.mxu0 %v3403
        %3405 = vmatprep.subr.mxu0 0.0
        %v3406 = vand.u32 %v3020, 4294901760
        %v3407 = vsub.f32 %v3020, %v3406
        %v3408 = vand.u32 %v3407, 4294901760
        %v3409 = vsub.f32 %v3407, %v3408
        %v3410 = vand.u32 %v3409, 4294901760
        %3411 = vmatpush2.msra.mxu0 %v3410
        %3412 = vmatprep.subr.mxu0 0.0
        %v3413 = vand.u32 %v3019, 4294901760
        %v3414 = vsub.f32 %v3019, %v3413
        %v3415 = vand.u32 %v3414, 4294901760
        %v3416 = vsub.f32 %v3414, %v3415
        %v3417 = vand.u32 %v3416, 4294901760
        %3418 = vmatpush2.msra.mxu0 %v3417
        %3419 = vmatprep.subr.mxu0 0.0
        %v3420 = vand.u32 %v3018, 4294901760
        %v3421 = vsub.f32 %v3018, %v3420
        %v3422 = vand.u32 %v3421, 4294901760
        %v3423 = vsub.f32 %v3421, %v3422
        %v3424 = vand.u32 %v3423, 4294901760
        %3425 = vmatpush2.msra.mxu0 %v3424
        %3426 = vmatprep.subr.mxu0 0.0
        %v3427 = vand.u32 %v3017, 4294901760
        %v3428 = vsub.f32 %v3017, %v3427
        %v3429 = vand.u32 %v3428, 4294901760
        %v3430 = vsub.f32 %v3428, %v3429
        %v3431 = vand.u32 %v3430, 4294901760
        %3432 = vmatpush2.msra.mxu0 %v3431
        %3433 = vmatprep.subr.mxu0 0.0
        %v3434 = vand.u32 %v3016, 4294901760
        %v3435 = vsub.f32 %v3016, %v3434
        %v3436 = vand.u32 %v3435, 4294901760
        %v3437 = vsub.f32 %v3435, %v3436
        %v3438 = vand.u32 %v3437, 4294901760
        %3439 = vmatpush2.msra.mxu0 %v3438
        %3440 = vmatprep.subr.mxu0 0.0
        %v3441 = vand.u32 %v3015, 4294901760
        %v3442 = vsub.f32 %v3015, %v3441
        %v3443 = vand.u32 %v3442, 4294901760
        %v3444 = vsub.f32 %v3442, %v3443
        %v3445 = vand.u32 %v3444, 4294901760
        %3446 = vmatpush2.msra.mxu0 %v3445
        %3447 = vmatprep.subr.mxu0 0.0
        %v3448 = vand.u32 %v3014, 4294901760
        %v3449 = vsub.f32 %v3014, %v3448
        %v3450 = vand.u32 %v3449, 4294901760
        %v3451 = vsub.f32 %v3449, %v3450
        %v3452 = vand.u32 %v3451, 4294901760
        %3453 = vmatpush2.msra.mxu0 %v3452
        %3454 = vmatprep.subr.mxu0 0.0
        %v3455 = vand.u32 %v3013, 4294901760
        %v3456 = vsub.f32 %v3013, %v3455
        %v3457 = vand.u32 %v3456, 4294901760
        %v3458 = vsub.f32 %v3456, %v3457
        %v3459 = vand.u32 %v3458, 4294901760
        %3460 = vmatpush2.msra.mxu0 %v3459
        %3461 = vmatprep.subr.mxu0 0.0
        %v3462 = vand.u32 %v3012, 4294901760
        %v3463 = vsub.f32 %v3012, %v3462
        %v3464 = vand.u32 %v3463, 4294901760
        %v3465 = vsub.f32 %v3463, %v3464
        %v3466 = vand.u32 %v3465, 4294901760
        %3467 = vmatpush2.msra.mxu0 %v3466
        %3468 = vmatprep.subr.mxu0 0.0
        %v3469 = vand.u32 %v3011, 4294901760
        %v3470 = vsub.f32 %v3011, %v3469
        %v3471 = vand.u32 %v3470, 4294901760
        %v3472 = vsub.f32 %v3470, %v3471
        %v3473 = vand.u32 %v3472, 4294901760
        %3474 = vmatpush2.msra.mxu0 %v3473
        %3475 = vmatprep.subr.mxu0 0.0
        %v3476 = vand.u32 %v3010, 4294901760
        %v3477 = vsub.f32 %v3010, %v3476
        %v3478 = vand.u32 %v3477, 4294901760
        %v3479 = vsub.f32 %v3477, %v3478
        %v3480 = vand.u32 %v3479, 4294901760
        %3481 = vmatpush2.msra.mxu0 %v3480
        %3482 = vmatprep.subr.mxu0 0.0
        %v3483 = vand.u32 %v3009, 4294901760
        %v3484 = vsub.f32 %v3009, %v3483
        %v3485 = vand.u32 %v3484, 4294901760
        %v3486 = vsub.f32 %v3484, %v3485
        %v3487 = vand.u32 %v3486, 4294901760
        %3488 = vmatpush2.msra.mxu0 %v3487
        %3489 = vmatprep.subr.mxu0 0.0
        %v3490 = vand.u32 %v3008, 4294901760
        %v3491 = vsub.f32 %v3008, %v3490
        %v3492 = vand.u32 %v3491, 4294901760
        %v3493 = vsub.f32 %v3491, %v3492
        %v3494 = vand.u32 %v3493, 4294901760
        %3495 = vmatpush2.msra.mxu0 %v3494
        %3496 = vmatprep.subr.mxu0 0.0
        %v3497 = vand.u32 %v3007, 4294901760
        %v3498 = vsub.f32 %v3007, %v3497
        %v3499 = vand.u32 %v3498, 4294901760
        %v3500 = vsub.f32 %v3498, %v3499
        %v3501 = vand.u32 %v3500, 4294901760
        %3502 = vmatpush2.msra.mxu0 %v3501
        %v3503 = vand.u32 %v2960, 4294901760
        %3504 = vmatprep.mubr.f32.mxu0 %v3503
        %v3505 = vand.u32 %v2959, 4294901760
        %3506 = vmatmul.mubr.f32.gmra.mxu0 %v3505
        %v3507 = vpop.f32.mrf.mxu0
        %v3508 = vadd.f32 %v3171, %v3507
        %v3509 = vpop.f32.mrf.mxu0
        %v3510 = vand.u32 %v2964, 4294901760
        %3511 = vmatprep.mubr.f32.mxu0 %v3510
        %v3512 = vand.u32 %v2963, 4294901760
        %3513 = vmatmul.mubr.f32.gmra.mxu0 %v3512
        %v3514 = vpop.f32.mrf.mxu0
        %v3515 = vadd.f32 %v3186, %v3514
        %v3516 = vpop.f32.mrf.mxu0
        %v3517 = vand.u32 %v2968, 4294901760
        %3518 = vmatprep.mubr.f32.mxu0 %v3517
        %v3519 = vand.u32 %v2967, 4294901760
        %3520 = vmatmul.mubr.f32.gmra.mxu0 %v3519
        %v3521 = vpop.f32.mrf.mxu0
        %v3522 = vadd.f32 %v3201, %v3521
        %v3523 = vpop.f32.mrf.mxu0
        %v3524 = vand.u32 %v2972, 4294901760
        %3525 = vmatprep.mubr.f32.mxu0 %v3524
        %v3526 = vand.u32 %v2971, 4294901760
        %3527 = vmatmul.mubr.f32.gmra.mxu0 %v3526
        %v3528 = vpop.f32.mrf.mxu0
        %v3529 = vadd.f32 %v3216, %v3528
        %v3530 = vpop.f32.mrf.mxu0
        %v3531 = vand.u32 %v2976, 4294901760
        %3532 = vmatprep.mubr.f32.mxu0 %v3531
        %v3533 = vand.u32 %v2975, 4294901760
        %3534 = vmatmul.mubr.f32.gmra.mxu0 %v3533
        %v3535 = vpop.f32.mrf.mxu0
        %v3536 = vadd.f32 %v3231, %v3535
        %v3537 = vpop.f32.mrf.mxu0
        %v3538 = vand.u32 %v2980, 4294901760
        %3539 = vmatprep.mubr.f32.mxu0 %v3538
        %v3540 = vand.u32 %v2979, 4294901760
        %3541 = vmatmul.mubr.f32.gmra.mxu0 %v3540
        %v3542 = vpop.f32.mrf.mxu0
        %v3543 = vadd.f32 %v3246, %v3542
        %v3544 = vpop.f32.mrf.mxu0
        %v3545 = vand.u32 %v2984, 4294901760
        %3546 = vmatprep.mubr.f32.mxu0 %v3545
        %v3547 = vand.u32 %v2983, 4294901760
        %3548 = vmatmul.mubr.f32.gmra.mxu0 %v3547
        %v3549 = vpop.f32.mrf.mxu0
        %v3550 = vadd.f32 %v3261, %v3549
        %v3551 = vpop.f32.mrf.mxu0
        %v3552 = vand.u32 %v2988, 4294901760
        %3553 = vmatprep.mubr.f32.mxu0 %v3552
        %v3554 = vand.u32 %v2987, 4294901760
        %3555 = vmatmul.mubr.f32.gmra.mxu0 %v3554
        %v3556 = vpop.f32.mrf.mxu0
        %v3557 = vadd.f32 %v3276, %v3556
        %v3558 = vpop.f32.mrf.mxu0
        %3559 = vdwg.mxu0
        %3560 = vmatprep.subr.mxu0 0.0
        %v3561 = vand.u32 %v3006, 4294901760
        %v3562 = vsub.f32 %v3006, %v3561
        %3563 = vmatpush1.msra.mxu0 %v3562
        %3564 = vmatprep.subr.mxu0 0.0
        %v3565 = vand.u32 %v3005, 4294901760
        %v3566 = vsub.f32 %v3005, %v3565
        %3567 = vmatpush1.msra.mxu0 %v3566
        %3568 = vmatprep.subr.mxu0 0.0
        %v3569 = vand.u32 %v3004, 4294901760
        %v3570 = vsub.f32 %v3004, %v3569
        %3571 = vmatpush1.msra.mxu0 %v3570
        %3572 = vmatprep.subr.mxu0 0.0
        %v3573 = vand.u32 %v3003, 4294901760
        %v3574 = vsub.f32 %v3003, %v3573
        %3575 = vmatpush1.msra.mxu0 %v3574
        %3576 = vmatprep.subr.mxu0 0.0
        %v3577 = vand.u32 %v3002, 4294901760
        %v3578 = vsub.f32 %v3002, %v3577
        %3579 = vmatpush1.msra.mxu0 %v3578
        %3580 = vmatprep.subr.mxu0 0.0
        %v3581 = vand.u32 %v3001, 4294901760
        %v3582 = vsub.f32 %v3001, %v3581
        %3583 = vmatpush1.msra.mxu0 %v3582
        %3584 = vmatprep.subr.mxu0 0.0
        %v3585 = vand.u32 %v3000, 4294901760
        %v3586 = vsub.f32 %v3000, %v3585
        %3587 = vmatpush1.msra.mxu0 %v3586
        %3588 = vmatprep.subr.mxu0 0.0
        %v3589 = vand.u32 %v2999, 4294901760
        %v3590 = vsub.f32 %v2999, %v3589
        %3591 = vmatpush1.msra.mxu0 %v3590
        %3592 = vmatprep.subr.mxu0 0.0
        %v3593 = vand.u32 %v2998, 4294901760
        %v3594 = vsub.f32 %v2998, %v3593
        %3595 = vmatpush1.msra.mxu0 %v3594
        %3596 = vmatprep.subr.mxu0 0.0
        %v3597 = vand.u32 %v2997, 4294901760
        %v3598 = vsub.f32 %v2997, %v3597
        %3599 = vmatpush1.msra.mxu0 %v3598
        %3600 = vmatprep.subr.mxu0 0.0
        %v3601 = vand.u32 %v2996, 4294901760
        %v3602 = vsub.f32 %v2996, %v3601
        %3603 = vmatpush1.msra.mxu0 %v3602
        %3604 = vmatprep.subr.mxu0 0.0
        %v3605 = vand.u32 %v2995, 4294901760
        %v3606 = vsub.f32 %v2995, %v3605
        %3607 = vmatpush1.msra.mxu0 %v3606
        %3608 = vmatprep.subr.mxu0 0.0
        %v3609 = vand.u32 %v2994, 4294901760
        %v3610 = vsub.f32 %v2994, %v3609
        %3611 = vmatpush1.msra.mxu0 %v3610
        %3612 = vmatprep.subr.mxu0 0.0
        %v3613 = vand.u32 %v2993, 4294901760
        %v3614 = vsub.f32 %v2993, %v3613
        %3615 = vmatpush1.msra.mxu0 %v3614
        %3616 = vmatprep.subr.mxu0 0.0
        %v3617 = vand.u32 %v2992, 4294901760
        %v3618 = vsub.f32 %v2992, %v3617
        %3619 = vmatpush1.msra.mxu0 %v3618
        %3620 = vmatprep.subr.mxu0 0.0
        %v3621 = vand.u32 %v2991, 4294901760
        %v3622 = vsub.f32 %v2991, %v3621
        %3623 = vmatpush1.msra.mxu0 %v3622
        %3624 = vmatprep.subr.mxu0 0.0
        %v3625 = vand.u32 %v3022, 4294901760
        %v3626 = vsub.f32 %v3022, %v3625
        %3627 = vmatpush2.msra.mxu0 %v3626
        %3628 = vmatprep.subr.mxu0 0.0
        %v3629 = vand.u32 %v3021, 4294901760
        %v3630 = vsub.f32 %v3021, %v3629
        %3631 = vmatpush2.msra.mxu0 %v3630
        %3632 = vmatprep.subr.mxu0 0.0
        %v3633 = vand.u32 %v3020, 4294901760
        %v3634 = vsub.f32 %v3020, %v3633
        %3635 = vmatpush2.msra.mxu0 %v3634
        %3636 = vmatprep.subr.mxu0 0.0
        %v3637 = vand.u32 %v3019, 4294901760
        %v3638 = vsub.f32 %v3019, %v3637
        %3639 = vmatpush2.msra.mxu0 %v3638
        %3640 = vmatprep.subr.mxu0 0.0
        %v3641 = vand.u32 %v3018, 4294901760
        %v3642 = vsub.f32 %v3018, %v3641
        %3643 = vmatpush2.msra.mxu0 %v3642
        %3644 = vmatprep.subr.mxu0 0.0
        %v3645 = vand.u32 %v3017, 4294901760
        %v3646 = vsub.f32 %v3017, %v3645
        %3647 = vmatpush2.msra.mxu0 %v3646
        %3648 = vmatprep.subr.mxu0 0.0
        %v3649 = vand.u32 %v3016, 4294901760
        %v3650 = vsub.f32 %v3016, %v3649
        %3651 = vmatpush2.msra.mxu0 %v3650
        %3652 = vmatprep.subr.mxu0 0.0
        %v3653 = vand.u32 %v3015, 4294901760
        %v3654 = vsub.f32 %v3015, %v3653
        %3655 = vmatpush2.msra.mxu0 %v3654
        %3656 = vmatprep.subr.mxu0 0.0
        %v3657 = vand.u32 %v3014, 4294901760
        %v3658 = vsub.f32 %v3014, %v3657
        %3659 = vmatpush2.msra.mxu0 %v3658
        %3660 = vmatprep.subr.mxu0 0.0
        %v3661 = vand.u32 %v3013, 4294901760
        %v3662 = vsub.f32 %v3013, %v3661
        %3663 = vmatpush2.msra.mxu0 %v3662
        %3664 = vmatprep.subr.mxu0 0.0
        %v3665 = vand.u32 %v3012, 4294901760
        %v3666 = vsub.f32 %v3012, %v3665
        %3667 = vmatpush2.msra.mxu0 %v3666
        %3668 = vmatprep.subr.mxu0 0.0
        %v3669 = vand.u32 %v3011, 4294901760
        %v3670 = vsub.f32 %v3011, %v3669
        %3671 = vmatpush2.msra.mxu0 %v3670
        %3672 = vmatprep.subr.mxu0 0.0
        %v3673 = vand.u32 %v3010, 4294901760
        %v3674 = vsub.f32 %v3010, %v3673
        %3675 = vmatpush2.msra.mxu0 %v3674
        %3676 = vmatprep.subr.mxu0 0.0
        %v3677 = vand.u32 %v3009, 4294901760
        %v3678 = vsub.f32 %v3009, %v3677
        %3679 = vmatpush2.msra.mxu0 %v3678
        %3680 = vmatprep.subr.mxu0 0.0
        %v3681 = vand.u32 %v3008, 4294901760
        %v3682 = vsub.f32 %v3008, %v3681
        %3683 = vmatpush2.msra.mxu0 %v3682
        %3684 = vmatprep.subr.mxu0 0.0
        %v3685 = vand.u32 %v3007, 4294901760
        %v3686 = vsub.f32 %v3007, %v3685
        %3687 = vmatpush2.msra.mxu0 %v3686
        %v3688 = vand.u32 %v2960, 4294901760
        %v3689 = vsub.f32 %v2960, %v3688
        %3690 = vmatprep.mubr.f32.mxu0 %v3689
        %v3691 = vand.u32 %v2959, 4294901760
        %v3692 = vsub.f32 %v2959, %v3691
        %3693 = vmatmul.mubr.f32.gmra.mxu0 %v3692
        %v3694 = vpop.f32.mrf.mxu0
        %v3695 = vadd.f32 %v3508, %v3694
        %v3696 = vpop.f32.mrf.mxu0
        %v3697 = vand.u32 %v2964, 4294901760
        %v3698 = vsub.f32 %v2964, %v3697
        %3699 = vmatprep.mubr.f32.mxu0 %v3698
        %v3700 = vand.u32 %v2963, 4294901760
        %v3701 = vsub.f32 %v2963, %v3700
        %3702 = vmatmul.mubr.f32.gmra.mxu0 %v3701
        %v3703 = vpop.f32.mrf.mxu0
        %v3704 = vadd.f32 %v3515, %v3703
        %v3705 = vpop.f32.mrf.mxu0
        %v3706 = vand.u32 %v2968, 4294901760
        %v3707 = vsub.f32 %v2968, %v3706
        %3708 = vmatprep.mubr.f32.mxu0 %v3707
        %v3709 = vand.u32 %v2967, 4294901760
        %v3710 = vsub.f32 %v2967, %v3709
        %3711 = vmatmul.mubr.f32.gmra.mxu0 %v3710
        %v3712 = vpop.f32.mrf.mxu0
        %v3713 = vadd.f32 %v3522, %v3712
        %v3714 = vpop.f32.mrf.mxu0
        %v3715 = vand.u32 %v2972, 4294901760
        %v3716 = vsub.f32 %v2972, %v3715
        %3717 = vmatprep.mubr.f32.mxu0 %v3716
        %v3718 = vand.u32 %v2971, 4294901760
        %v3719 = vsub.f32 %v2971, %v3718
        %3720 = vmatmul.mubr.f32.gmra.mxu0 %v3719
        %v3721 = vpop.f32.mrf.mxu0
        %v3722 = vadd.f32 %v3529, %v3721
        %v3723 = vpop.f32.mrf.mxu0
        %v3724 = vand.u32 %v2976, 4294901760
        %v3725 = vsub.f32 %v2976, %v3724
        %3726 = vmatprep.mubr.f32.mxu0 %v3725
        %v3727 = vand.u32 %v2975, 4294901760
        %v3728 = vsub.f32 %v2975, %v3727
        %3729 = vmatmul.mubr.f32.gmra.mxu0 %v3728
        %v3730 = vpop.f32.mrf.mxu0
        %v3731 = vadd.f32 %v3536, %v3730
        %v3732 = vpop.f32.mrf.mxu0
        %v3733 = vand.u32 %v2980, 4294901760
        %v3734 = vsub.f32 %v2980, %v3733
        %3735 = vmatprep.mubr.f32.mxu0 %v3734
        %v3736 = vand.u32 %v2979, 4294901760
        %v3737 = vsub.f32 %v2979, %v3736
        %3738 = vmatmul.mubr.f32.gmra.mxu0 %v3737
        %v3739 = vpop.f32.mrf.mxu0
        %v3740 = vadd.f32 %v3543, %v3739
        %v3741 = vpop.f32.mrf.mxu0
        %v3742 = vand.u32 %v2984, 4294901760
        %v3743 = vsub.f32 %v2984, %v3742
        %3744 = vmatprep.mubr.f32.mxu0 %v3743
        %v3745 = vand.u32 %v2983, 4294901760
        %v3746 = vsub.f32 %v2983, %v3745
        %3747 = vmatmul.mubr.f32.gmra.mxu0 %v3746
        %v3748 = vpop.f32.mrf.mxu0
        %v3749 = vadd.f32 %v3550, %v3748
        %v3750 = vpop.f32.mrf.mxu0
        %v3751 = vand.u32 %v2988, 4294901760
        %v3752 = vsub.f32 %v2988, %v3751
        %3753 = vmatprep.mubr.f32.mxu0 %v3752
        %v3754 = vand.u32 %v2987, 4294901760
        %v3755 = vsub.f32 %v2987, %v3754
        %3756 = vmatmul.mubr.f32.gmra.mxu0 %v3755
        %v3757 = vpop.f32.mrf.mxu0
        %v3758 = vadd.f32 %v3557, %v3757
        %v3759 = vpop.f32.mrf.mxu0
        %3760 = vdwg.mxu0
        %3761 = vmatprep.subr.mxu0 0.0
        %v3762 = vand.u32 %v3006, 4294901760
        %3763 = vmatpush1.msra.mxu0 %v3762
        %3764 = vmatprep.subr.mxu0 0.0
        %v3765 = vand.u32 %v3005, 4294901760
        %3766 = vmatpush1.msra.mxu0 %v3765
        %3767 = vmatprep.subr.mxu0 0.0
        %v3768 = vand.u32 %v3004, 4294901760
        %3769 = vmatpush1.msra.mxu0 %v3768
        %3770 = vmatprep.subr.mxu0 0.0
        %v3771 = vand.u32 %v3003, 4294901760
        %3772 = vmatpush1.msra.mxu0 %v3771
        %3773 = vmatprep.subr.mxu0 0.0
        %v3774 = vand.u32 %v3002, 4294901760
        %3775 = vmatpush1.msra.mxu0 %v3774
        %3776 = vmatprep.subr.mxu0 0.0
        %v3777 = vand.u32 %v3001, 4294901760
        %3778 = vmatpush1.msra.mxu0 %v3777
        %3779 = vmatprep.subr.mxu0 0.0
        %v3780 = vand.u32 %v3000, 4294901760
        %3781 = vmatpush1.msra.mxu0 %v3780
        %3782 = vmatprep.subr.mxu0 0.0
        %v3783 = vand.u32 %v2999, 4294901760
        %3784 = vmatpush1.msra.mxu0 %v3783
        %3785 = vmatprep.subr.mxu0 0.0
        %v3786 = vand.u32 %v2998, 4294901760
        %3787 = vmatpush1.msra.mxu0 %v3786
        %3788 = vmatprep.subr.mxu0 0.0
        %v3789 = vand.u32 %v2997, 4294901760
        %3790 = vmatpush1.msra.mxu0 %v3789
        %3791 = vmatprep.subr.mxu0 0.0
        %v3792 = vand.u32 %v2996, 4294901760
        %3793 = vmatpush1.msra.mxu0 %v3792
        %3794 = vmatprep.subr.mxu0 0.0
        %v3795 = vand.u32 %v2995, 4294901760
        %3796 = vmatpush1.msra.mxu0 %v3795
        %3797 = vmatprep.subr.mxu0 0.0
        %v3798 = vand.u32 %v2994, 4294901760
        %3799 = vmatpush1.msra.mxu0 %v3798
        %3800 = vmatprep.subr.mxu0 0.0
        %v3801 = vand.u32 %v2993, 4294901760
        %3802 = vmatpush1.msra.mxu0 %v3801
        %3803 = vmatprep.subr.mxu0 0.0
        %v3804 = vand.u32 %v2992, 4294901760
        %3805 = vmatpush1.msra.mxu0 %v3804
        %3806 = vmatprep.subr.mxu0 0.0
        %v3807 = vand.u32 %v2991, 4294901760
        %3808 = vmatpush1.msra.mxu0 %v3807
        %3809 = vmatprep.subr.mxu0 0.0
        %v3810 = vand.u32 %v3022, 4294901760
        %3811 = vmatpush2.msra.mxu0 %v3810
        %3812 = vmatprep.subr.mxu0 0.0
        %v3813 = vand.u32 %v3021, 4294901760
        %3814 = vmatpush2.msra.mxu0 %v3813
        %3815 = vmatprep.subr.mxu0 0.0
        %v3816 = vand.u32 %v3020, 4294901760
        %3817 = vmatpush2.msra.mxu0 %v3816
        %3818 = vmatprep.subr.mxu0 0.0
        %v3819 = vand.u32 %v3019, 4294901760
        %3820 = vmatpush2.msra.mxu0 %v3819
        %3821 = vmatprep.subr.mxu0 0.0
        %v3822 = vand.u32 %v3018, 4294901760
        %3823 = vmatpush2.msra.mxu0 %v3822
        %3824 = vmatprep.subr.mxu0 0.0
        %v3825 = vand.u32 %v3017, 4294901760
        %3826 = vmatpush2.msra.mxu0 %v3825
        %3827 = vmatprep.subr.mxu0 0.0
        %v3828 = vand.u32 %v3016, 4294901760
        %3829 = vmatpush2.msra.mxu0 %v3828
        %3830 = vmatprep.subr.mxu0 0.0
        %v3831 = vand.u32 %v3015, 4294901760
        %3832 = vmatpush2.msra.mxu0 %v3831
        %3833 = vmatprep.subr.mxu0 0.0
        %v3834 = vand.u32 %v3014, 4294901760
        %3835 = vmatpush2.msra.mxu0 %v3834
        %3836 = vmatprep.subr.mxu0 0.0
        %v3837 = vand.u32 %v3013, 4294901760
        %3838 = vmatpush2.msra.mxu0 %v3837
        %3839 = vmatprep.subr.mxu0 0.0
        %v3840 = vand.u32 %v3012, 4294901760
        %3841 = vmatpush2.msra.mxu0 %v3840
        %3842 = vmatprep.subr.mxu0 0.0
        %v3843 = vand.u32 %v3011, 4294901760
        %3844 = vmatpush2.msra.mxu0 %v3843
        %3845 = vmatprep.subr.mxu0 0.0
        %v3846 = vand.u32 %v3010, 4294901760
        %3847 = vmatpush2.msra.mxu0 %v3846
        %3848 = vmatprep.subr.mxu0 0.0
        %v3849 = vand.u32 %v3009, 4294901760
        %3850 = vmatpush2.msra.mxu0 %v3849
        %3851 = vmatprep.subr.mxu0 0.0
        %v3852 = vand.u32 %v3008, 4294901760
        %3853 = vmatpush2.msra.mxu0 %v3852
        %3854 = vmatprep.subr.mxu0 0.0
        %v3855 = vand.u32 %v3007, 4294901760
        %3856 = vmatpush2.msra.mxu0 %v3855
        %v3857 = vand.u32 %v2960, 4294901760
        %v3858 = vsub.f32 %v2960, %v3857
        %v3859 = vand.u32 %v3858, 4294901760
        %3860 = vmatprep.mubr.f32.mxu0 %v3859
        %v3861 = vand.u32 %v2959, 4294901760
        %v3862 = vsub.f32 %v2959, %v3861
        %v3863 = vand.u32 %v3862, 4294901760
        %3864 = vmatmul.mubr.f32.gmra.mxu0 %v3863
        %v3865 = vpop.f32.mrf.mxu0
        %v3866 = vadd.f32 %v3695, %v3865
        %v3867 = vpop.f32.mrf.mxu0
        %v3868 = vand.u32 %v2964, 4294901760
        %v3869 = vsub.f32 %v2964, %v3868
        %v3870 = vand.u32 %v3869, 4294901760
        %3871 = vmatprep.mubr.f32.mxu0 %v3870
        %v3872 = vand.u32 %v2963, 4294901760
        %v3873 = vsub.f32 %v2963, %v3872
        %v3874 = vand.u32 %v3873, 4294901760
        %3875 = vmatmul.mubr.f32.gmra.mxu0 %v3874
        %v3876 = vpop.f32.mrf.mxu0
        %v3877 = vadd.f32 %v3704, %v3876
        %v3878 = vpop.f32.mrf.mxu0
        %v3879 = vand.u32 %v2968, 4294901760
        %v3880 = vsub.f32 %v2968, %v3879
        %v3881 = vand.u32 %v3880, 4294901760
        %3882 = vmatprep.mubr.f32.mxu0 %v3881
        %v3883 = vand.u32 %v2967, 4294901760
        %v3884 = vsub.f32 %v2967, %v3883
        %v3885 = vand.u32 %v3884, 4294901760
        %3886 = vmatmul.mubr.f32.gmra.mxu0 %v3885
        %v3887 = vpop.f32.mrf.mxu0
        %v3888 = vadd.f32 %v3713, %v3887
        %v3889 = vpop.f32.mrf.mxu0
        %v3890 = vand.u32 %v2972, 4294901760
        %v3891 = vsub.f32 %v2972, %v3890
        %v3892 = vand.u32 %v3891, 4294901760
        %3893 = vmatprep.mubr.f32.mxu0 %v3892
        %v3894 = vand.u32 %v2971, 4294901760
        %v3895 = vsub.f32 %v2971, %v3894
        %v3896 = vand.u32 %v3895, 4294901760
        %3897 = vmatmul.mubr.f32.gmra.mxu0 %v3896
        %v3898 = vpop.f32.mrf.mxu0
        %v3899 = vadd.f32 %v3722, %v3898
        %v3900 = vpop.f32.mrf.mxu0
        %v3901 = vand.u32 %v2976, 4294901760
        %v3902 = vsub.f32 %v2976, %v3901
        %v3903 = vand.u32 %v3902, 4294901760
        %3904 = vmatprep.mubr.f32.mxu0 %v3903
        %v3905 = vand.u32 %v2975, 4294901760
        %v3906 = vsub.f32 %v2975, %v3905
        %v3907 = vand.u32 %v3906, 4294901760
        %3908 = vmatmul.mubr.f32.gmra.mxu0 %v3907
        %v3909 = vpop.f32.mrf.mxu0
        %v3910 = vadd.f32 %v3731, %v3909
        %v3911 = vpop.f32.mrf.mxu0
        %v3912 = vand.u32 %v2980, 4294901760
        %v3913 = vsub.f32 %v2980, %v3912
        %v3914 = vand.u32 %v3913, 4294901760
        %3915 = vmatprep.mubr.f32.mxu0 %v3914
        %v3916 = vand.u32 %v2979, 4294901760
        %v3917 = vsub.f32 %v2979, %v3916
        %v3918 = vand.u32 %v3917, 4294901760
        %3919 = vmatmul.mubr.f32.gmra.mxu0 %v3918
        %v3920 = vpop.f32.mrf.mxu0
        %v3921 = vadd.f32 %v3740, %v3920
        %v3922 = vpop.f32.mrf.mxu0
        %v3923 = vand.u32 %v2984, 4294901760
        %v3924 = vsub.f32 %v2984, %v3923
        %v3925 = vand.u32 %v3924, 4294901760
        %3926 = vmatprep.mubr.f32.mxu0 %v3925
        %v3927 = vand.u32 %v2983, 4294901760
        %v3928 = vsub.f32 %v2983, %v3927
        %v3929 = vand.u32 %v3928, 4294901760
        %3930 = vmatmul.mubr.f32.gmra.mxu0 %v3929
        %v3931 = vpop.f32.mrf.mxu0
        %v3932 = vadd.f32 %v3749, %v3931
        %v3933 = vpop.f32.mrf.mxu0
        %v3934 = vand.u32 %v2988, 4294901760
        %v3935 = vsub.f32 %v2988, %v3934
        %v3936 = vand.u32 %v3935, 4294901760
        %3937 = vmatprep.mubr.f32.mxu0 %v3936
        %v3938 = vand.u32 %v2987, 4294901760
        %v3939 = vsub.f32 %v2987, %v3938
        %v3940 = vand.u32 %v3939, 4294901760
        %3941 = vmatmul.mubr.f32.gmra.mxu0 %v3940
        %v3942 = vpop.f32.mrf.mxu0
        %v3943 = vadd.f32 %v3758, %v3942
        %v3944 = vpop.f32.mrf.mxu0
        %3945 = vdwg.mxu0
        %3946 = vmatprep.subr.mxu0 0.0
        %v3947 = vand.u32 %v3006, 4294901760
        %v3948 = vsub.f32 %v3006, %v3947
        %v3949 = vand.u32 %v3948, 4294901760
        %3950 = vmatpush1.msra.mxu0 %v3949
        %3951 = vmatprep.subr.mxu0 0.0
        %v3952 = vand.u32 %v3005, 4294901760
        %v3953 = vsub.f32 %v3005, %v3952
        %v3954 = vand.u32 %v3953, 4294901760
        %3955 = vmatpush1.msra.mxu0 %v3954
        %3956 = vmatprep.subr.mxu0 0.0
        %v3957 = vand.u32 %v3004, 4294901760
        %v3958 = vsub.f32 %v3004, %v3957
        %v3959 = vand.u32 %v3958, 4294901760
        %3960 = vmatpush1.msra.mxu0 %v3959
        %3961 = vmatprep.subr.mxu0 0.0
        %v3962 = vand.u32 %v3003, 4294901760
        %v3963 = vsub.f32 %v3003, %v3962
        %v3964 = vand.u32 %v3963, 4294901760
        %3965 = vmatpush1.msra.mxu0 %v3964
        %3966 = vmatprep.subr.mxu0 0.0
        %v3967 = vand.u32 %v3002, 4294901760
        %v3968 = vsub.f32 %v3002, %v3967
        %v3969 = vand.u32 %v3968, 4294901760
        %3970 = vmatpush1.msra.mxu0 %v3969
        %3971 = vmatprep.subr.mxu0 0.0
        %v3972 = vand.u32 %v3001, 4294901760
        %v3973 = vsub.f32 %v3001, %v3972
        %v3974 = vand.u32 %v3973, 4294901760
        %3975 = vmatpush1.msra.mxu0 %v3974
        %3976 = vmatprep.subr.mxu0 0.0
        %v3977 = vand.u32 %v3000, 4294901760
        %v3978 = vsub.f32 %v3000, %v3977
        %v3979 = vand.u32 %v3978, 4294901760
        %3980 = vmatpush1.msra.mxu0 %v3979
        %3981 = vmatprep.subr.mxu0 0.0
        %v3982 = vand.u32 %v2999, 4294901760
        %v3983 = vsub.f32 %v2999, %v3982
        %v3984 = vand.u32 %v3983, 4294901760
        %3985 = vmatpush1.msra.mxu0 %v3984
        %3986 = vmatprep.subr.mxu0 0.0
        %v3987 = vand.u32 %v2998, 4294901760
        %v3988 = vsub.f32 %v2998, %v3987
        %v3989 = vand.u32 %v3988, 4294901760
        %3990 = vmatpush1.msra.mxu0 %v3989
        %3991 = vmatprep.subr.mxu0 0.0
        %v3992 = vand.u32 %v2997, 4294901760
        %v3993 = vsub.f32 %v2997, %v3992
        %v3994 = vand.u32 %v3993, 4294901760
        %3995 = vmatpush1.msra.mxu0 %v3994
        %3996 = vmatprep.subr.mxu0 0.0
        %v3997 = vand.u32 %v2996, 4294901760
        %v3998 = vsub.f32 %v2996, %v3997
        %v3999 = vand.u32 %v3998, 4294901760
        %4000 = vmatpush1.msra.mxu0 %v3999
        %4001 = vmatprep.subr.mxu0 0.0
        %v4002 = vand.u32 %v2995, 4294901760
        %v4003 = vsub.f32 %v2995, %v4002
        %v4004 = vand.u32 %v4003, 4294901760
        %4005 = vmatpush1.msra.mxu0 %v4004
        %4006 = vmatprep.subr.mxu0 0.0
        %v4007 = vand.u32 %v2994, 4294901760
        %v4008 = vsub.f32 %v2994, %v4007
        %v4009 = vand.u32 %v4008, 4294901760
        %4010 = vmatpush1.msra.mxu0 %v4009
        %4011 = vmatprep.subr.mxu0 0.0
        %v4012 = vand.u32 %v2993, 4294901760
        %v4013 = vsub.f32 %v2993, %v4012
        %v4014 = vand.u32 %v4013, 4294901760
        %4015 = vmatpush1.msra.mxu0 %v4014
        %4016 = vmatprep.subr.mxu0 0.0
        %v4017 = vand.u32 %v2992, 4294901760
        %v4018 = vsub.f32 %v2992, %v4017
        %v4019 = vand.u32 %v4018, 4294901760
        %4020 = vmatpush1.msra.mxu0 %v4019
        %4021 = vmatprep.subr.mxu0 0.0
        %v4022 = vand.u32 %v2991, 4294901760
        %v4023 = vsub.f32 %v2991, %v4022
        %v4024 = vand.u32 %v4023, 4294901760
        %4025 = vmatpush1.msra.mxu0 %v4024
        %4026 = vmatprep.subr.mxu0 0.0
        %v4027 = vand.u32 %v3022, 4294901760
        %v4028 = vsub.f32 %v3022, %v4027
        %v4029 = vand.u32 %v4028, 4294901760
        %4030 = vmatpush2.msra.mxu0 %v4029
        %4031 = vmatprep.subr.mxu0 0.0
        %v4032 = vand.u32 %v3021, 4294901760
        %v4033 = vsub.f32 %v3021, %v4032
        %v4034 = vand.u32 %v4033, 4294901760
        %4035 = vmatpush2.msra.mxu0 %v4034
        %4036 = vmatprep.subr.mxu0 0.0
        %v4037 = vand.u32 %v3020, 4294901760
        %v4038 = vsub.f32 %v3020, %v4037
        %v4039 = vand.u32 %v4038, 4294901760
        %4040 = vmatpush2.msra.mxu0 %v4039
        %4041 = vmatprep.subr.mxu0 0.0
        %v4042 = vand.u32 %v3019, 4294901760
        %v4043 = vsub.f32 %v3019, %v4042
        %v4044 = vand.u32 %v4043, 4294901760
        %4045 = vmatpush2.msra.mxu0 %v4044
        %4046 = vmatprep.subr.mxu0 0.0
        %v4047 = vand.u32 %v3018, 4294901760
        %v4048 = vsub.f32 %v3018, %v4047
        %v4049 = vand.u32 %v4048, 4294901760
        %4050 = vmatpush2.msra.mxu0 %v4049
        %4051 = vmatprep.subr.mxu0 0.0
        %v4052 = vand.u32 %v3017, 4294901760
        %v4053 = vsub.f32 %v3017, %v4052
        %v4054 = vand.u32 %v4053, 4294901760
        %4055 = vmatpush2.msra.mxu0 %v4054
        %4056 = vmatprep.subr.mxu0 0.0
        %v4057 = vand.u32 %v3016, 4294901760
        %v4058 = vsub.f32 %v3016, %v4057
        %v4059 = vand.u32 %v4058, 4294901760
        %4060 = vmatpush2.msra.mxu0 %v4059
        %4061 = vmatprep.subr.mxu0 0.0
        %v4062 = vand.u32 %v3015, 4294901760
        %v4063 = vsub.f32 %v3015, %v4062
        %v4064 = vand.u32 %v4063, 4294901760
        %4065 = vmatpush2.msra.mxu0 %v4064
        %4066 = vmatprep.subr.mxu0 0.0
        %v4067 = vand.u32 %v3014, 4294901760
        %v4068 = vsub.f32 %v3014, %v4067
        %v4069 = vand.u32 %v4068, 4294901760
        %4070 = vmatpush2.msra.mxu0 %v4069
        %4071 = vmatprep.subr.mxu0 0.0
        %v4072 = vand.u32 %v3013, 4294901760
        %v4073 = vsub.f32 %v3013, %v4072
        %v4074 = vand.u32 %v4073, 4294901760
        %4075 = vmatpush2.msra.mxu0 %v4074
        %4076 = vmatprep.subr.mxu0 0.0
        %v4077 = vand.u32 %v3012, 4294901760
        %v4078 = vsub.f32 %v3012, %v4077
        %v4079 = vand.u32 %v4078, 4294901760
        %4080 = vmatpush2.msra.mxu0 %v4079
        %4081 = vmatprep.subr.mxu0 0.0
        %v4082 = vand.u32 %v3011, 4294901760
        %v4083 = vsub.f32 %v3011, %v4082
        %v4084 = vand.u32 %v4083, 4294901760
        %4085 = vmatpush2.msra.mxu0 %v4084
        %4086 = vmatprep.subr.mxu0 0.0
        %v4087 = vand.u32 %v3010, 4294901760
        %v4088 = vsub.f32 %v3010, %v4087
        %v4089 = vand.u32 %v4088, 4294901760
        %4090 = vmatpush2.msra.mxu0 %v4089
        %4091 = vmatprep.subr.mxu0 0.0
        %v4092 = vand.u32 %v3009, 4294901760
        %v4093 = vsub.f32 %v3009, %v4092
        %v4094 = vand.u32 %v4093, 4294901760
        %4095 = vmatpush2.msra.mxu0 %v4094
        %4096 = vmatprep.subr.mxu0 0.0
        %v4097 = vand.u32 %v3008, 4294901760
        %v4098 = vsub.f32 %v3008, %v4097
        %v4099 = vand.u32 %v4098, 4294901760
        %4100 = vmatpush2.msra.mxu0 %v4099
        %4101 = vmatprep.subr.mxu0 0.0
        %v4102 = vand.u32 %v3007, 4294901760
        %v4103 = vsub.f32 %v3007, %v4102
        %v4104 = vand.u32 %v4103, 4294901760
        %4105 = vmatpush2.msra.mxu0 %v4104
        %v4106 = vand.u32 %v2960, 4294901760
        %4107 = vmatprep.mubr.f32.mxu0 %v4106
        %v4108 = vand.u32 %v2959, 4294901760
        %4109 = vmatmul.mubr.f32.gmra.mxu0 %v4108
        %v4110 = vpop.f32.mrf.mxu0
        %v4111 = vadd.f32 %v3866, %v4110
        %v4112 = vpop.f32.mrf.mxu0
        %v4113 = vand.u32 %v2964, 4294901760
        %4114 = vmatprep.mubr.f32.mxu0 %v4113
        %v4115 = vand.u32 %v2963, 4294901760
        %4116 = vmatmul.mubr.f32.gmra.mxu0 %v4115
        %v4117 = vpop.f32.mrf.mxu0
        %v4118 = vadd.f32 %v3877, %v4117
        %v4119 = vpop.f32.mrf.mxu0
        %v4120 = vand.u32 %v2968, 4294901760
        %4121 = vmatprep.mubr.f32.mxu0 %v4120
        %v4122 = vand.u32 %v2967, 4294901760
        %4123 = vmatmul.mubr.f32.gmra.mxu0 %v4122
        %v4124 = vpop.f32.mrf.mxu0
        %v4125 = vadd.f32 %v3888, %v4124
        %v4126 = vpop.f32.mrf.mxu0
        %v4127 = vand.u32 %v2972, 4294901760
        %4128 = vmatprep.mubr.f32.mxu0 %v4127
        %v4129 = vand.u32 %v2971, 4294901760
        %4130 = vmatmul.mubr.f32.gmra.mxu0 %v4129
        %v4131 = vpop.f32.mrf.mxu0
        %v4132 = vadd.f32 %v3899, %v4131
        %v4133 = vpop.f32.mrf.mxu0
        %v4134 = vand.u32 %v2976, 4294901760
        %4135 = vmatprep.mubr.f32.mxu0 %v4134
        %v4136 = vand.u32 %v2975, 4294901760
        %4137 = vmatmul.mubr.f32.gmra.mxu0 %v4136
        %v4138 = vpop.f32.mrf.mxu0
        %v4139 = vadd.f32 %v3910, %v4138
        %v4140 = vpop.f32.mrf.mxu0
        %v4141 = vand.u32 %v2980, 4294901760
        %4142 = vmatprep.mubr.f32.mxu0 %v4141
        %v4143 = vand.u32 %v2979, 4294901760
        %4144 = vmatmul.mubr.f32.gmra.mxu0 %v4143
        %v4145 = vpop.f32.mrf.mxu0
        %v4146 = vadd.f32 %v3921, %v4145
        %v4147 = vpop.f32.mrf.mxu0
        %v4148 = vand.u32 %v2984, 4294901760
        %4149 = vmatprep.mubr.f32.mxu0 %v4148
        %v4150 = vand.u32 %v2983, 4294901760
        %4151 = vmatmul.mubr.f32.gmra.mxu0 %v4150
        %v4152 = vpop.f32.mrf.mxu0
        %v4153 = vadd.f32 %v3932, %v4152
        %v4154 = vpop.f32.mrf.mxu0
        %v4155 = vand.u32 %v2988, 4294901760
        %4156 = vmatprep.mubr.f32.mxu0 %v4155
        %v4157 = vand.u32 %v2987, 4294901760
        %4158 = vmatmul.mubr.f32.gmra.mxu0 %v4157
        %v4159 = vpop.f32.mrf.mxu0
        %v4160 = vadd.f32 %v3943, %v4159
        %v4161 = vpop.f32.mrf.mxu0
        %4162 = vdwg.mxu0
        %4163 = vmatprep.subr.mxu0 0.0
        %v4164 = vand.u32 %v3006, 4294901760
        %4165 = vmatpush1.msra.mxu0 %v4164
        %4166 = vmatprep.subr.mxu0 0.0
        %v4167 = vand.u32 %v3005, 4294901760
        %4168 = vmatpush1.msra.mxu0 %v4167
        %4169 = vmatprep.subr.mxu0 0.0
        %v4170 = vand.u32 %v3004, 4294901760
        %4171 = vmatpush1.msra.mxu0 %v4170
        %4172 = vmatprep.subr.mxu0 0.0
        %v4173 = vand.u32 %v3003, 4294901760
        %4174 = vmatpush1.msra.mxu0 %v4173
        %4175 = vmatprep.subr.mxu0 0.0
        %v4176 = vand.u32 %v3002, 4294901760
        %4177 = vmatpush1.msra.mxu0 %v4176
        %4178 = vmatprep.subr.mxu0 0.0
        %v4179 = vand.u32 %v3001, 4294901760
        %4180 = vmatpush1.msra.mxu0 %v4179
        %4181 = vmatprep.subr.mxu0 0.0
        %v4182 = vand.u32 %v3000, 4294901760
        %4183 = vmatpush1.msra.mxu0 %v4182
        %4184 = vmatprep.subr.mxu0 0.0
        %v4185 = vand.u32 %v2999, 4294901760
        %4186 = vmatpush1.msra.mxu0 %v4185
        %4187 = vmatprep.subr.mxu0 0.0
        %v4188 = vand.u32 %v2998, 4294901760
        %4189 = vmatpush1.msra.mxu0 %v4188
        %4190 = vmatprep.subr.mxu0 0.0
        %v4191 = vand.u32 %v2997, 4294901760
        %4192 = vmatpush1.msra.mxu0 %v4191
        %4193 = vmatprep.subr.mxu0 0.0
        %v4194 = vand.u32 %v2996, 4294901760
        %4195 = vmatpush1.msra.mxu0 %v4194
        %4196 = vmatprep.subr.mxu0 0.0
        %v4197 = vand.u32 %v2995, 4294901760
        %4198 = vmatpush1.msra.mxu0 %v4197
        %4199 = vmatprep.subr.mxu0 0.0
        %v4200 = vand.u32 %v2994, 4294901760
        %4201 = vmatpush1.msra.mxu0 %v4200
        %4202 = vmatprep.subr.mxu0 0.0
        %v4203 = vand.u32 %v2993, 4294901760
        %4204 = vmatpush1.msra.mxu0 %v4203
        %4205 = vmatprep.subr.mxu0 0.0
        %v4206 = vand.u32 %v2992, 4294901760
        %4207 = vmatpush1.msra.mxu0 %v4206
        %4208 = vmatprep.subr.mxu0 0.0
        %v4209 = vand.u32 %v2991, 4294901760
        %4210 = vmatpush1.msra.mxu0 %v4209
        %4211 = vmatprep.subr.mxu0 0.0
        %v4212 = vand.u32 %v3022, 4294901760
        %4213 = vmatpush2.msra.mxu0 %v4212
        %4214 = vmatprep.subr.mxu0 0.0
        %v4215 = vand.u32 %v3021, 4294901760
        %4216 = vmatpush2.msra.mxu0 %v4215
        %4217 = vmatprep.subr.mxu0 0.0
        %v4218 = vand.u32 %v3020, 4294901760
        %4219 = vmatpush2.msra.mxu0 %v4218
        %4220 = vmatprep.subr.mxu0 0.0
        %v4221 = vand.u32 %v3019, 4294901760
        %4222 = vmatpush2.msra.mxu0 %v4221
        %4223 = vmatprep.subr.mxu0 0.0
        %v4224 = vand.u32 %v3018, 4294901760
        %4225 = vmatpush2.msra.mxu0 %v4224
        %4226 = vmatprep.subr.mxu0 0.0
        %v4227 = vand.u32 %v3017, 4294901760
        %4228 = vmatpush2.msra.mxu0 %v4227
        %4229 = vmatprep.subr.mxu0 0.0
        %v4230 = vand.u32 %v3016, 4294901760
        %4231 = vmatpush2.msra.mxu0 %v4230
        %4232 = vmatprep.subr.mxu0 0.0
        %v4233 = vand.u32 %v3015, 4294901760
        %4234 = vmatpush2.msra.mxu0 %v4233
        %4235 = vmatprep.subr.mxu0 0.0
        %v4236 = vand.u32 %v3014, 4294901760
        %4237 = vmatpush2.msra.mxu0 %v4236
        %4238 = vmatprep.subr.mxu0 0.0
        %v4239 = vand.u32 %v3013, 4294901760
        %4240 = vmatpush2.msra.mxu0 %v4239
        %4241 = vmatprep.subr.mxu0 0.0
        %v4242 = vand.u32 %v3012, 4294901760
        %4243 = vmatpush2.msra.mxu0 %v4242
        %4244 = vmatprep.subr.mxu0 0.0
        %v4245 = vand.u32 %v3011, 4294901760
        %4246 = vmatpush2.msra.mxu0 %v4245
        %4247 = vmatprep.subr.mxu0 0.0
        %v4248 = vand.u32 %v3010, 4294901760
        %4249 = vmatpush2.msra.mxu0 %v4248
        %4250 = vmatprep.subr.mxu0 0.0
        %v4251 = vand.u32 %v3009, 4294901760
        %4252 = vmatpush2.msra.mxu0 %v4251
        %4253 = vmatprep.subr.mxu0 0.0
        %v4254 = vand.u32 %v3008, 4294901760
        %4255 = vmatpush2.msra.mxu0 %v4254
        %4256 = vmatprep.subr.mxu0 0.0
        %v4257 = vand.u32 %v3007, 4294901760
        %4258 = vmatpush2.msra.mxu0 %v4257
        %v4259 = vand.u32 %v2960, 4294901760
        %4260 = vmatprep.mubr.f32.mxu0 %v4259
        %v4261 = vand.u32 %v2959, 4294901760
        %4262 = vmatmul.mubr.f32.gmra.mxu0 %v4261
        %v4263 = vpop.f32.mrf.mxu0
        %v4264 = vadd.f32 %v4111, %v4263
        %v4265 = vpop.f32.mrf.mxu0
        %v4266 = vand.u32 %v2964, 4294901760
        %4267 = vmatprep.mubr.f32.mxu0 %v4266
        %v4268 = vand.u32 %v2963, 4294901760
        %4269 = vmatmul.mubr.f32.gmra.mxu0 %v4268
        %v4270 = vpop.f32.mrf.mxu0
        %v4271 = vadd.f32 %v4118, %v4270
        %v4272 = vpop.f32.mrf.mxu0
        %v4273 = vand.u32 %v2968, 4294901760
        %4274 = vmatprep.mubr.f32.mxu0 %v4273
        %v4275 = vand.u32 %v2967, 4294901760
        %4276 = vmatmul.mubr.f32.gmra.mxu0 %v4275
        %v4277 = vpop.f32.mrf.mxu0
        %v4278 = vadd.f32 %v4125, %v4277
        %v4279 = vpop.f32.mrf.mxu0
        %v4280 = vand.u32 %v2972, 4294901760
        %4281 = vmatprep.mubr.f32.mxu0 %v4280
        %v4282 = vand.u32 %v2971, 4294901760
        %4283 = vmatmul.mubr.f32.gmra.mxu0 %v4282
        %v4284 = vpop.f32.mrf.mxu0
        %v4285 = vadd.f32 %v4132, %v4284
        %v4286 = vpop.f32.mrf.mxu0
        %v4287 = vand.u32 %v2976, 4294901760
        %4288 = vmatprep.mubr.f32.mxu0 %v4287
        %v4289 = vand.u32 %v2975, 4294901760
        %4290 = vmatmul.mubr.f32.gmra.mxu0 %v4289
        %v4291 = vpop.f32.mrf.mxu0
        %v4292 = vadd.f32 %v4139, %v4291
        %v4293 = vpop.f32.mrf.mxu0
        %v4294 = vand.u32 %v2980, 4294901760
        %4295 = vmatprep.mubr.f32.mxu0 %v4294
        %v4296 = vand.u32 %v2979, 4294901760
        %4297 = vmatmul.mubr.f32.gmra.mxu0 %v4296
        %v4298 = vpop.f32.mrf.mxu0
        %v4299 = vadd.f32 %v4146, %v4298
        %v4300 = vpop.f32.mrf.mxu0
        %v4301 = vand.u32 %v2984, 4294901760
        %4302 = vmatprep.mubr.f32.mxu0 %v4301
        %v4303 = vand.u32 %v2983, 4294901760
        %4304 = vmatmul.mubr.f32.gmra.mxu0 %v4303
        %v4305 = vpop.f32.mrf.mxu0
        %v4306 = vadd.f32 %v4153, %v4305
        %v4307 = vpop.f32.mrf.mxu0
        %v4308 = vand.u32 %v2988, 4294901760
        %4309 = vmatprep.mubr.f32.mxu0 %v4308
        %v4310 = vand.u32 %v2987, 4294901760
        %4311 = vmatmul.mubr.f32.gmra.mxu0 %v4310
        %v4312 = vpop.f32.mrf.mxu0
        %v4313 = vadd.f32 %v4160, %v4312
        %v4314 = vpop.f32.mrf.mxu0
        %4315 = vdwg.mxu0
        %4316 = vmatprep.subr.mxu0 0.0
        %v4317 = vand.u32 %v3038, 4294901760
        %4318 = vmatpush1.msra.mxu0 %v4317
        %4319 = vmatprep.subr.mxu0 0.0
        %v4320 = vand.u32 %v3037, 4294901760
        %4321 = vmatpush1.msra.mxu0 %v4320
        %4322 = vmatprep.subr.mxu0 0.0
        %v4323 = vand.u32 %v3036, 4294901760
        %4324 = vmatpush1.msra.mxu0 %v4323
        %4325 = vmatprep.subr.mxu0 0.0
        %v4326 = vand.u32 %v3035, 4294901760
        %4327 = vmatpush1.msra.mxu0 %v4326
        %4328 = vmatprep.subr.mxu0 0.0
        %v4329 = vand.u32 %v3034, 4294901760
        %4330 = vmatpush1.msra.mxu0 %v4329
        %4331 = vmatprep.subr.mxu0 0.0
        %v4332 = vand.u32 %v3033, 4294901760
        %4333 = vmatpush1.msra.mxu0 %v4332
        %4334 = vmatprep.subr.mxu0 0.0
        %v4335 = vand.u32 %v3032, 4294901760
        %4336 = vmatpush1.msra.mxu0 %v4335
        %4337 = vmatprep.subr.mxu0 0.0
        %v4338 = vand.u32 %v3031, 4294901760
        %4339 = vmatpush1.msra.mxu0 %v4338
        %4340 = vmatprep.subr.mxu0 0.0
        %v4341 = vand.u32 %v3030, 4294901760
        %4342 = vmatpush1.msra.mxu0 %v4341
        %4343 = vmatprep.subr.mxu0 0.0
        %v4344 = vand.u32 %v3029, 4294901760
        %4345 = vmatpush1.msra.mxu0 %v4344
        %4346 = vmatprep.subr.mxu0 0.0
        %v4347 = vand.u32 %v3028, 4294901760
        %4348 = vmatpush1.msra.mxu0 %v4347
        %4349 = vmatprep.subr.mxu0 0.0
        %v4350 = vand.u32 %v3027, 4294901760
        %4351 = vmatpush1.msra.mxu0 %v4350
        %4352 = vmatprep.subr.mxu0 0.0
        %v4353 = vand.u32 %v3026, 4294901760
        %4354 = vmatpush1.msra.mxu0 %v4353
        %4355 = vmatprep.subr.mxu0 0.0
        %v4356 = vand.u32 %v3025, 4294901760
        %4357 = vmatpush1.msra.mxu0 %v4356
        %4358 = vmatprep.subr.mxu0 0.0
        %v4359 = vand.u32 %v3024, 4294901760
        %4360 = vmatpush1.msra.mxu0 %v4359
        %4361 = vmatprep.subr.mxu0 0.0
        %v4362 = vand.u32 %v3023, 4294901760
        %4363 = vmatpush1.msra.mxu0 %v4362
        %4364 = vmatprep.subr.mxu0 0.0
        %v4365 = vand.u32 %v3054, 4294901760
        %4366 = vmatpush2.msra.mxu0 %v4365
        %4367 = vmatprep.subr.mxu0 0.0
        %v4368 = vand.u32 %v3053, 4294901760
        %4369 = vmatpush2.msra.mxu0 %v4368
        %4370 = vmatprep.subr.mxu0 0.0
        %v4371 = vand.u32 %v3052, 4294901760
        %4372 = vmatpush2.msra.mxu0 %v4371
        %4373 = vmatprep.subr.mxu0 0.0
        %v4374 = vand.u32 %v3051, 4294901760
        %4375 = vmatpush2.msra.mxu0 %v4374
        %4376 = vmatprep.subr.mxu0 0.0
        %v4377 = vand.u32 %v3050, 4294901760
        %4378 = vmatpush2.msra.mxu0 %v4377
        %4379 = vmatprep.subr.mxu0 0.0
        %v4380 = vand.u32 %v3049, 4294901760
        %4381 = vmatpush2.msra.mxu0 %v4380
        %4382 = vmatprep.subr.mxu0 0.0
        %v4383 = vand.u32 %v3048, 4294901760
        %4384 = vmatpush2.msra.mxu0 %v4383
        %4385 = vmatprep.subr.mxu0 0.0
        %v4386 = vand.u32 %v3047, 4294901760
        %4387 = vmatpush2.msra.mxu0 %v4386
        %4388 = vmatprep.subr.mxu0 0.0
        %v4389 = vand.u32 %v3046, 4294901760
        %4390 = vmatpush2.msra.mxu0 %v4389
        %4391 = vmatprep.subr.mxu0 0.0
        %v4392 = vand.u32 %v3045, 4294901760
        %4393 = vmatpush2.msra.mxu0 %v4392
        %4394 = vmatprep.subr.mxu0 0.0
        %v4395 = vand.u32 %v3044, 4294901760
        %4396 = vmatpush2.msra.mxu0 %v4395
        %4397 = vmatprep.subr.mxu0 0.0
        %v4398 = vand.u32 %v3043, 4294901760
        %4399 = vmatpush2.msra.mxu0 %v4398
        %4400 = vmatprep.subr.mxu0 0.0
        %v4401 = vand.u32 %v3042, 4294901760
        %4402 = vmatpush2.msra.mxu0 %v4401
        %4403 = vmatprep.subr.mxu0 0.0
        %v4404 = vand.u32 %v3041, 4294901760
        %4405 = vmatpush2.msra.mxu0 %v4404
        %4406 = vmatprep.subr.mxu0 0.0
        %v4407 = vand.u32 %v3040, 4294901760
        %4408 = vmatpush2.msra.mxu0 %v4407
        %4409 = vmatprep.subr.mxu0 0.0
        %v4410 = vand.u32 %v3039, 4294901760
        %4411 = vmatpush2.msra.mxu0 %v4410
        %v4412 = vand.u32 %v2962, 4294901760
        %v4413 = vsub.f32 %v2962, %v4412
        %v4414 = vand.u32 %v4413, 4294901760
        %v4415 = vsub.f32 %v4413, %v4414
        %v4416 = vand.u32 %v4415, 4294901760
        %4417 = vmatprep.mubr.f32.mxu0 %v4416
        %v4418 = vand.u32 %v2961, 4294901760
        %v4419 = vsub.f32 %v2961, %v4418
        %v4420 = vand.u32 %v4419, 4294901760
        %v4421 = vsub.f32 %v4419, %v4420
        %v4422 = vand.u32 %v4421, 4294901760
        %4423 = vmatmul.mubr.f32.gmra.mxu0 %v4422
        %v4424 = vpop.f32.mrf.mxu0
        %v4425 = vadd.f32 %v4264, %v4424
        %v4426 = vpop.f32.mrf.mxu0
        %v4427 = vand.u32 %v2966, 4294901760
        %v4428 = vsub.f32 %v2966, %v4427
        %v4429 = vand.u32 %v4428, 4294901760
        %v4430 = vsub.f32 %v4428, %v4429
        %v4431 = vand.u32 %v4430, 4294901760
        %4432 = vmatprep.mubr.f32.mxu0 %v4431
        %v4433 = vand.u32 %v2965, 4294901760
        %v4434 = vsub.f32 %v2965, %v4433
        %v4435 = vand.u32 %v4434, 4294901760
        %v4436 = vsub.f32 %v4434, %v4435
        %v4437 = vand.u32 %v4436, 4294901760
        %4438 = vmatmul.mubr.f32.gmra.mxu0 %v4437
        %v4439 = vpop.f32.mrf.mxu0
        %v4440 = vadd.f32 %v4271, %v4439
        %v4441 = vpop.f32.mrf.mxu0
        %v4442 = vand.u32 %v2970, 4294901760
        %v4443 = vsub.f32 %v2970, %v4442
        %v4444 = vand.u32 %v4443, 4294901760
        %v4445 = vsub.f32 %v4443, %v4444
        %v4446 = vand.u32 %v4445, 4294901760
        %4447 = vmatprep.mubr.f32.mxu0 %v4446
        %v4448 = vand.u32 %v2969, 4294901760
        %v4449 = vsub.f32 %v2969, %v4448
        %v4450 = vand.u32 %v4449, 4294901760
        %v4451 = vsub.f32 %v4449, %v4450
        %v4452 = vand.u32 %v4451, 4294901760
        %4453 = vmatmul.mubr.f32.gmra.mxu0 %v4452
        %v4454 = vpop.f32.mrf.mxu0
        %v4455 = vadd.f32 %v4278, %v4454
        %v4456 = vpop.f32.mrf.mxu0
        %v4457 = vand.u32 %v2974, 4294901760
        %v4458 = vsub.f32 %v2974, %v4457
        %v4459 = vand.u32 %v4458, 4294901760
        %v4460 = vsub.f32 %v4458, %v4459
        %v4461 = vand.u32 %v4460, 4294901760
        %4462 = vmatprep.mubr.f32.mxu0 %v4461
        %v4463 = vand.u32 %v2973, 4294901760
        %v4464 = vsub.f32 %v2973, %v4463
        %v4465 = vand.u32 %v4464, 4294901760
        %v4466 = vsub.f32 %v4464, %v4465
        %v4467 = vand.u32 %v4466, 4294901760
        %4468 = vmatmul.mubr.f32.gmra.mxu0 %v4467
        %v4469 = vpop.f32.mrf.mxu0
        %v4470 = vadd.f32 %v4285, %v4469
        %v4471 = vpop.f32.mrf.mxu0
        %v4472 = vand.u32 %v2978, 4294901760
        %v4473 = vsub.f32 %v2978, %v4472
        %v4474 = vand.u32 %v4473, 4294901760
        %v4475 = vsub.f32 %v4473, %v4474
        %v4476 = vand.u32 %v4475, 4294901760
        %4477 = vmatprep.mubr.f32.mxu0 %v4476
        %v4478 = vand.u32 %v2977, 4294901760
        %v4479 = vsub.f32 %v2977, %v4478
        %v4480 = vand.u32 %v4479, 4294901760
        %v4481 = vsub.f32 %v4479, %v4480
        %v4482 = vand.u32 %v4481, 4294901760
        %4483 = vmatmul.mubr.f32.gmra.mxu0 %v4482
        %v4484 = vpop.f32.mrf.mxu0
        %v4485 = vadd.f32 %v4292, %v4484
        %v4486 = vpop.f32.mrf.mxu0
        %v4487 = vand.u32 %v2982, 4294901760
        %v4488 = vsub.f32 %v2982, %v4487
        %v4489 = vand.u32 %v4488, 4294901760
        %v4490 = vsub.f32 %v4488, %v4489
        %v4491 = vand.u32 %v4490, 4294901760
        %4492 = vmatprep.mubr.f32.mxu0 %v4491
        %v4493 = vand.u32 %v2981, 4294901760
        %v4494 = vsub.f32 %v2981, %v4493
        %v4495 = vand.u32 %v4494, 4294901760
        %v4496 = vsub.f32 %v4494, %v4495
        %v4497 = vand.u32 %v4496, 4294901760
        %4498 = vmatmul.mubr.f32.gmra.mxu0 %v4497
        %v4499 = vpop.f32.mrf.mxu0
        %v4500 = vadd.f32 %v4299, %v4499
        %v4501 = vpop.f32.mrf.mxu0
        %v4502 = vand.u32 %v2986, 4294901760
        %v4503 = vsub.f32 %v2986, %v4502
        %v4504 = vand.u32 %v4503, 4294901760
        %v4505 = vsub.f32 %v4503, %v4504
        %v4506 = vand.u32 %v4505, 4294901760
        %4507 = vmatprep.mubr.f32.mxu0 %v4506
        %v4508 = vand.u32 %v2985, 4294901760
        %v4509 = vsub.f32 %v2985, %v4508
        %v4510 = vand.u32 %v4509, 4294901760
        %v4511 = vsub.f32 %v4509, %v4510
        %v4512 = vand.u32 %v4511, 4294901760
        %4513 = vmatmul.mubr.f32.gmra.mxu0 %v4512
        %v4514 = vpop.f32.mrf.mxu0
        %v4515 = vadd.f32 %v4306, %v4514
        %v4516 = vpop.f32.mrf.mxu0
        %v4517 = vand.u32 %v2990, 4294901760
        %v4518 = vsub.f32 %v2990, %v4517
        %v4519 = vand.u32 %v4518, 4294901760
        %v4520 = vsub.f32 %v4518, %v4519
        %v4521 = vand.u32 %v4520, 4294901760
        %4522 = vmatprep.mubr.f32.mxu0 %v4521
        %v4523 = vand.u32 %v2989, 4294901760
        %v4524 = vsub.f32 %v2989, %v4523
        %v4525 = vand.u32 %v4524, 4294901760
        %v4526 = vsub.f32 %v4524, %v4525
        %v4527 = vand.u32 %v4526, 4294901760
        %4528 = vmatmul.mubr.f32.gmra.mxu0 %v4527
        %v4529 = vpop.f32.mrf.mxu0
        %v4530 = vadd.f32 %v4313, %v4529
        %v4531 = vpop.f32.mrf.mxu0
        %4532 = vdwg.mxu0
        %4533 = vmatprep.subr.mxu0 0.0
        %v4534 = vand.u32 %v3038, 4294901760
        %v4535 = vsub.f32 %v3038, %v4534
        %v4536 = vand.u32 %v4535, 4294901760
        %v4537 = vsub.f32 %v4535, %v4536
        %v4538 = vand.u32 %v4537, 4294901760
        %4539 = vmatpush1.msra.mxu0 %v4538
        %4540 = vmatprep.subr.mxu0 0.0
        %v4541 = vand.u32 %v3037, 4294901760
        %v4542 = vsub.f32 %v3037, %v4541
        %v4543 = vand.u32 %v4542, 4294901760
        %v4544 = vsub.f32 %v4542, %v4543
        %v4545 = vand.u32 %v4544, 4294901760
        %4546 = vmatpush1.msra.mxu0 %v4545
        %4547 = vmatprep.subr.mxu0 0.0
        %v4548 = vand.u32 %v3036, 4294901760
        %v4549 = vsub.f32 %v3036, %v4548
        %v4550 = vand.u32 %v4549, 4294901760
        %v4551 = vsub.f32 %v4549, %v4550
        %v4552 = vand.u32 %v4551, 4294901760
        %4553 = vmatpush1.msra.mxu0 %v4552
        %4554 = vmatprep.subr.mxu0 0.0
        %v4555 = vand.u32 %v3035, 4294901760
        %v4556 = vsub.f32 %v3035, %v4555
        %v4557 = vand.u32 %v4556, 4294901760
        %v4558 = vsub.f32 %v4556, %v4557
        %v4559 = vand.u32 %v4558, 4294901760
        %4560 = vmatpush1.msra.mxu0 %v4559
        %4561 = vmatprep.subr.mxu0 0.0
        %v4562 = vand.u32 %v3034, 4294901760
        %v4563 = vsub.f32 %v3034, %v4562
        %v4564 = vand.u32 %v4563, 4294901760
        %v4565 = vsub.f32 %v4563, %v4564
        %v4566 = vand.u32 %v4565, 4294901760
        %4567 = vmatpush1.msra.mxu0 %v4566
        %4568 = vmatprep.subr.mxu0 0.0
        %v4569 = vand.u32 %v3033, 4294901760
        %v4570 = vsub.f32 %v3033, %v4569
        %v4571 = vand.u32 %v4570, 4294901760
        %v4572 = vsub.f32 %v4570, %v4571
        %v4573 = vand.u32 %v4572, 4294901760
        %4574 = vmatpush1.msra.mxu0 %v4573
        %4575 = vmatprep.subr.mxu0 0.0
        %v4576 = vand.u32 %v3032, 4294901760
        %v4577 = vsub.f32 %v3032, %v4576
        %v4578 = vand.u32 %v4577, 4294901760
        %v4579 = vsub.f32 %v4577, %v4578
        %v4580 = vand.u32 %v4579, 4294901760
        %4581 = vmatpush1.msra.mxu0 %v4580
        %4582 = vmatprep.subr.mxu0 0.0
        %v4583 = vand.u32 %v3031, 4294901760
        %v4584 = vsub.f32 %v3031, %v4583
        %v4585 = vand.u32 %v4584, 4294901760
        %v4586 = vsub.f32 %v4584, %v4585
        %v4587 = vand.u32 %v4586, 4294901760
        %4588 = vmatpush1.msra.mxu0 %v4587
        %4589 = vmatprep.subr.mxu0 0.0
        %v4590 = vand.u32 %v3030, 4294901760
        %v4591 = vsub.f32 %v3030, %v4590
        %v4592 = vand.u32 %v4591, 4294901760
        %v4593 = vsub.f32 %v4591, %v4592
        %v4594 = vand.u32 %v4593, 4294901760
        %4595 = vmatpush1.msra.mxu0 %v4594
        %4596 = vmatprep.subr.mxu0 0.0
        %v4597 = vand.u32 %v3029, 4294901760
        %v4598 = vsub.f32 %v3029, %v4597
        %v4599 = vand.u32 %v4598, 4294901760
        %v4600 = vsub.f32 %v4598, %v4599
        %v4601 = vand.u32 %v4600, 4294901760
        %4602 = vmatpush1.msra.mxu0 %v4601
        %4603 = vmatprep.subr.mxu0 0.0
        %v4604 = vand.u32 %v3028, 4294901760
        %v4605 = vsub.f32 %v3028, %v4604
        %v4606 = vand.u32 %v4605, 4294901760
        %v4607 = vsub.f32 %v4605, %v4606
        %v4608 = vand.u32 %v4607, 4294901760
        %4609 = vmatpush1.msra.mxu0 %v4608
        %4610 = vmatprep.subr.mxu0 0.0
        %v4611 = vand.u32 %v3027, 4294901760
        %v4612 = vsub.f32 %v3027, %v4611
        %v4613 = vand.u32 %v4612, 4294901760
        %v4614 = vsub.f32 %v4612, %v4613
        %v4615 = vand.u32 %v4614, 4294901760
        %4616 = vmatpush1.msra.mxu0 %v4615
        %4617 = vmatprep.subr.mxu0 0.0
        %v4618 = vand.u32 %v3026, 4294901760
        %v4619 = vsub.f32 %v3026, %v4618
        %v4620 = vand.u32 %v4619, 4294901760
        %v4621 = vsub.f32 %v4619, %v4620
        %v4622 = vand.u32 %v4621, 4294901760
        %4623 = vmatpush1.msra.mxu0 %v4622
        %4624 = vmatprep.subr.mxu0 0.0
        %v4625 = vand.u32 %v3025, 4294901760
        %v4626 = vsub.f32 %v3025, %v4625
        %v4627 = vand.u32 %v4626, 4294901760
        %v4628 = vsub.f32 %v4626, %v4627
        %v4629 = vand.u32 %v4628, 4294901760
        %4630 = vmatpush1.msra.mxu0 %v4629
        %4631 = vmatprep.subr.mxu0 0.0
        %v4632 = vand.u32 %v3024, 4294901760
        %v4633 = vsub.f32 %v3024, %v4632
        %v4634 = vand.u32 %v4633, 4294901760
        %v4635 = vsub.f32 %v4633, %v4634
        %v4636 = vand.u32 %v4635, 4294901760
        %4637 = vmatpush1.msra.mxu0 %v4636
        %4638 = vmatprep.subr.mxu0 0.0
        %v4639 = vand.u32 %v3023, 4294901760
        %v4640 = vsub.f32 %v3023, %v4639
        %v4641 = vand.u32 %v4640, 4294901760
        %v4642 = vsub.f32 %v4640, %v4641
        %v4643 = vand.u32 %v4642, 4294901760
        %4644 = vmatpush1.msra.mxu0 %v4643
        %4645 = vmatprep.subr.mxu0 0.0
        %v4646 = vand.u32 %v3054, 4294901760
        %v4647 = vsub.f32 %v3054, %v4646
        %v4648 = vand.u32 %v4647, 4294901760
        %v4649 = vsub.f32 %v4647, %v4648
        %v4650 = vand.u32 %v4649, 4294901760
        %4651 = vmatpush2.msra.mxu0 %v4650
        %4652 = vmatprep.subr.mxu0 0.0
        %v4653 = vand.u32 %v3053, 4294901760
        %v4654 = vsub.f32 %v3053, %v4653
        %v4655 = vand.u32 %v4654, 4294901760
        %v4656 = vsub.f32 %v4654, %v4655
        %v4657 = vand.u32 %v4656, 4294901760
        %4658 = vmatpush2.msra.mxu0 %v4657
        %4659 = vmatprep.subr.mxu0 0.0
        %v4660 = vand.u32 %v3052, 4294901760
        %v4661 = vsub.f32 %v3052, %v4660
        %v4662 = vand.u32 %v4661, 4294901760
        %v4663 = vsub.f32 %v4661, %v4662
        %v4664 = vand.u32 %v4663, 4294901760
        %4665 = vmatpush2.msra.mxu0 %v4664
        %4666 = vmatprep.subr.mxu0 0.0
        %v4667 = vand.u32 %v3051, 4294901760
        %v4668 = vsub.f32 %v3051, %v4667
        %v4669 = vand.u32 %v4668, 4294901760
        %v4670 = vsub.f32 %v4668, %v4669
        %v4671 = vand.u32 %v4670, 4294901760
        %4672 = vmatpush2.msra.mxu0 %v4671
        %4673 = vmatprep.subr.mxu0 0.0
        %v4674 = vand.u32 %v3050, 4294901760
        %v4675 = vsub.f32 %v3050, %v4674
        %v4676 = vand.u32 %v4675, 4294901760
        %v4677 = vsub.f32 %v4675, %v4676
        %v4678 = vand.u32 %v4677, 4294901760
        %4679 = vmatpush2.msra.mxu0 %v4678
        %4680 = vmatprep.subr.mxu0 0.0
        %v4681 = vand.u32 %v3049, 4294901760
        %v4682 = vsub.f32 %v3049, %v4681
        %v4683 = vand.u32 %v4682, 4294901760
        %v4684 = vsub.f32 %v4682, %v4683
        %v4685 = vand.u32 %v4684, 4294901760
        %4686 = vmatpush2.msra.mxu0 %v4685
        %4687 = vmatprep.subr.mxu0 0.0
        %v4688 = vand.u32 %v3048, 4294901760
        %v4689 = vsub.f32 %v3048, %v4688
        %v4690 = vand.u32 %v4689, 4294901760
        %v4691 = vsub.f32 %v4689, %v4690
        %v4692 = vand.u32 %v4691, 4294901760
        %4693 = vmatpush2.msra.mxu0 %v4692
        %4694 = vmatprep.subr.mxu0 0.0
        %v4695 = vand.u32 %v3047, 4294901760
        %v4696 = vsub.f32 %v3047, %v4695
        %v4697 = vand.u32 %v4696, 4294901760
        %v4698 = vsub.f32 %v4696, %v4697
        %v4699 = vand.u32 %v4698, 4294901760
        %4700 = vmatpush2.msra.mxu0 %v4699
        %4701 = vmatprep.subr.mxu0 0.0
        %v4702 = vand.u32 %v3046, 4294901760
        %v4703 = vsub.f32 %v3046, %v4702
        %v4704 = vand.u32 %v4703, 4294901760
        %v4705 = vsub.f32 %v4703, %v4704
        %v4706 = vand.u32 %v4705, 4294901760
        %4707 = vmatpush2.msra.mxu0 %v4706
        %4708 = vmatprep.subr.mxu0 0.0
        %v4709 = vand.u32 %v3045, 4294901760
        %v4710 = vsub.f32 %v3045, %v4709
        %v4711 = vand.u32 %v4710, 4294901760
        %v4712 = vsub.f32 %v4710, %v4711
        %v4713 = vand.u32 %v4712, 4294901760
        %4714 = vmatpush2.msra.mxu0 %v4713
        %4715 = vmatprep.subr.mxu0 0.0
        %v4716 = vand.u32 %v3044, 4294901760
        %v4717 = vsub.f32 %v3044, %v4716
        %v4718 = vand.u32 %v4717, 4294901760
        %v4719 = vsub.f32 %v4717, %v4718
        %v4720 = vand.u32 %v4719, 4294901760
        %4721 = vmatpush2.msra.mxu0 %v4720
        %4722 = vmatprep.subr.mxu0 0.0
        %v4723 = vand.u32 %v3043, 4294901760
        %v4724 = vsub.f32 %v3043, %v4723
        %v4725 = vand.u32 %v4724, 4294901760
        %v4726 = vsub.f32 %v4724, %v4725
        %v4727 = vand.u32 %v4726, 4294901760
        %4728 = vmatpush2.msra.mxu0 %v4727
        %4729 = vmatprep.subr.mxu0 0.0
        %v4730 = vand.u32 %v3042, 4294901760
        %v4731 = vsub.f32 %v3042, %v4730
        %v4732 = vand.u32 %v4731, 4294901760
        %v4733 = vsub.f32 %v4731, %v4732
        %v4734 = vand.u32 %v4733, 4294901760
        %4735 = vmatpush2.msra.mxu0 %v4734
        %4736 = vmatprep.subr.mxu0 0.0
        %v4737 = vand.u32 %v3041, 4294901760
        %v4738 = vsub.f32 %v3041, %v4737
        %v4739 = vand.u32 %v4738, 4294901760
        %v4740 = vsub.f32 %v4738, %v4739
        %v4741 = vand.u32 %v4740, 4294901760
        %4742 = vmatpush2.msra.mxu0 %v4741
        %4743 = vmatprep.subr.mxu0 0.0
        %v4744 = vand.u32 %v3040, 4294901760
        %v4745 = vsub.f32 %v3040, %v4744
        %v4746 = vand.u32 %v4745, 4294901760
        %v4747 = vsub.f32 %v4745, %v4746
        %v4748 = vand.u32 %v4747, 4294901760
        %4749 = vmatpush2.msra.mxu0 %v4748
        %4750 = vmatprep.subr.mxu0 0.0
        %v4751 = vand.u32 %v3039, 4294901760
        %v4752 = vsub.f32 %v3039, %v4751
        %v4753 = vand.u32 %v4752, 4294901760
        %v4754 = vsub.f32 %v4752, %v4753
        %v4755 = vand.u32 %v4754, 4294901760
        %4756 = vmatpush2.msra.mxu0 %v4755
        %v4757 = vand.u32 %v2962, 4294901760
        %4758 = vmatprep.mubr.f32.mxu0 %v4757
        %v4759 = vand.u32 %v2961, 4294901760
        %4760 = vmatmul.mubr.f32.gmra.mxu0 %v4759
        %v4761 = vpop.f32.mrf.mxu0
        %v4762 = vadd.f32 %v4425, %v4761
        %v4763 = vpop.f32.mrf.mxu0
        %v4764 = vand.u32 %v2966, 4294901760
        %4765 = vmatprep.mubr.f32.mxu0 %v4764
        %v4766 = vand.u32 %v2965, 4294901760
        %4767 = vmatmul.mubr.f32.gmra.mxu0 %v4766
        %v4768 = vpop.f32.mrf.mxu0
        %v4769 = vadd.f32 %v4440, %v4768
        %v4770 = vpop.f32.mrf.mxu0
        %v4771 = vand.u32 %v2970, 4294901760
        %4772 = vmatprep.mubr.f32.mxu0 %v4771
        %v4773 = vand.u32 %v2969, 4294901760
        %4774 = vmatmul.mubr.f32.gmra.mxu0 %v4773
        %v4775 = vpop.f32.mrf.mxu0
        %v4776 = vadd.f32 %v4455, %v4775
        %v4777 = vpop.f32.mrf.mxu0
        %v4778 = vand.u32 %v2974, 4294901760
        %4779 = vmatprep.mubr.f32.mxu0 %v4778
        %v4780 = vand.u32 %v2973, 4294901760
        %4781 = vmatmul.mubr.f32.gmra.mxu0 %v4780
        %v4782 = vpop.f32.mrf.mxu0
        %v4783 = vadd.f32 %v4470, %v4782
        %v4784 = vpop.f32.mrf.mxu0
        %v4785 = vand.u32 %v2978, 4294901760
        %4786 = vmatprep.mubr.f32.mxu0 %v4785
        %v4787 = vand.u32 %v2977, 4294901760
        %4788 = vmatmul.mubr.f32.gmra.mxu0 %v4787
        %v4789 = vpop.f32.mrf.mxu0
        %v4790 = vadd.f32 %v4485, %v4789
        %v4791 = vpop.f32.mrf.mxu0
        %v4792 = vand.u32 %v2982, 4294901760
        %4793 = vmatprep.mubr.f32.mxu0 %v4792
        %v4794 = vand.u32 %v2981, 4294901760
        %4795 = vmatmul.mubr.f32.gmra.mxu0 %v4794
        %v4796 = vpop.f32.mrf.mxu0
        %v4797 = vadd.f32 %v4500, %v4796
        %v4798 = vpop.f32.mrf.mxu0
        %v4799 = vand.u32 %v2986, 4294901760
        %4800 = vmatprep.mubr.f32.mxu0 %v4799
        %v4801 = vand.u32 %v2985, 4294901760
        %4802 = vmatmul.mubr.f32.gmra.mxu0 %v4801
        %v4803 = vpop.f32.mrf.mxu0
        %v4804 = vadd.f32 %v4515, %v4803
        %v4805 = vpop.f32.mrf.mxu0
        %v4806 = vand.u32 %v2990, 4294901760
        %4807 = vmatprep.mubr.f32.mxu0 %v4806
        %v4808 = vand.u32 %v2989, 4294901760
        %4809 = vmatmul.mubr.f32.gmra.mxu0 %v4808
        %v4810 = vpop.f32.mrf.mxu0
        %v4811 = vadd.f32 %v4530, %v4810
        %v4812 = vpop.f32.mrf.mxu0
        %4813 = vdwg.mxu0
        %4814 = vmatprep.subr.mxu0 0.0
        %v4815 = vand.u32 %v3038, 4294901760
        %v4816 = vsub.f32 %v3038, %v4815
        %4817 = vmatpush1.msra.mxu0 %v4816
        %4818 = vmatprep.subr.mxu0 0.0
        %v4819 = vand.u32 %v3037, 4294901760
        %v4820 = vsub.f32 %v3037, %v4819
        %4821 = vmatpush1.msra.mxu0 %v4820
        %4822 = vmatprep.subr.mxu0 0.0
        %v4823 = vand.u32 %v3036, 4294901760
        %v4824 = vsub.f32 %v3036, %v4823
        %4825 = vmatpush1.msra.mxu0 %v4824
        %4826 = vmatprep.subr.mxu0 0.0
        %v4827 = vand.u32 %v3035, 4294901760
        %v4828 = vsub.f32 %v3035, %v4827
        %4829 = vmatpush1.msra.mxu0 %v4828
        %4830 = vmatprep.subr.mxu0 0.0
        %v4831 = vand.u32 %v3034, 4294901760
        %v4832 = vsub.f32 %v3034, %v4831
        %4833 = vmatpush1.msra.mxu0 %v4832
        %4834 = vmatprep.subr.mxu0 0.0
        %v4835 = vand.u32 %v3033, 4294901760
        %v4836 = vsub.f32 %v3033, %v4835
        %4837 = vmatpush1.msra.mxu0 %v4836
        %4838 = vmatprep.subr.mxu0 0.0
        %v4839 = vand.u32 %v3032, 4294901760
        %v4840 = vsub.f32 %v3032, %v4839
        %4841 = vmatpush1.msra.mxu0 %v4840
        %4842 = vmatprep.subr.mxu0 0.0
        %v4843 = vand.u32 %v3031, 4294901760
        %v4844 = vsub.f32 %v3031, %v4843
        %4845 = vmatpush1.msra.mxu0 %v4844
        %4846 = vmatprep.subr.mxu0 0.0
        %v4847 = vand.u32 %v3030, 4294901760
        %v4848 = vsub.f32 %v3030, %v4847
        %4849 = vmatpush1.msra.mxu0 %v4848
        %4850 = vmatprep.subr.mxu0 0.0
        %v4851 = vand.u32 %v3029, 4294901760
        %v4852 = vsub.f32 %v3029, %v4851
        %4853 = vmatpush1.msra.mxu0 %v4852
        %4854 = vmatprep.subr.mxu0 0.0
        %v4855 = vand.u32 %v3028, 4294901760
        %v4856 = vsub.f32 %v3028, %v4855
        %4857 = vmatpush1.msra.mxu0 %v4856
        %4858 = vmatprep.subr.mxu0 0.0
        %v4859 = vand.u32 %v3027, 4294901760
        %v4860 = vsub.f32 %v3027, %v4859
        %4861 = vmatpush1.msra.mxu0 %v4860
        %4862 = vmatprep.subr.mxu0 0.0
        %v4863 = vand.u32 %v3026, 4294901760
        %v4864 = vsub.f32 %v3026, %v4863
        %4865 = vmatpush1.msra.mxu0 %v4864
        %4866 = vmatprep.subr.mxu0 0.0
        %v4867 = vand.u32 %v3025, 4294901760
        %v4868 = vsub.f32 %v3025, %v4867
        %4869 = vmatpush1.msra.mxu0 %v4868
        %4870 = vmatprep.subr.mxu0 0.0
        %v4871 = vand.u32 %v3024, 4294901760
        %v4872 = vsub.f32 %v3024, %v4871
        %4873 = vmatpush1.msra.mxu0 %v4872
        %4874 = vmatprep.subr.mxu0 0.0
        %v4875 = vand.u32 %v3023, 4294901760
        %v4876 = vsub.f32 %v3023, %v4875
        %4877 = vmatpush1.msra.mxu0 %v4876
        %4878 = vmatprep.subr.mxu0 0.0
        %v4879 = vand.u32 %v3054, 4294901760
        %v4880 = vsub.f32 %v3054, %v4879
        %4881 = vmatpush2.msra.mxu0 %v4880
        %4882 = vmatprep.subr.mxu0 0.0
        %v4883 = vand.u32 %v3053, 4294901760
        %v4884 = vsub.f32 %v3053, %v4883
        %4885 = vmatpush2.msra.mxu0 %v4884
        %4886 = vmatprep.subr.mxu0 0.0
        %v4887 = vand.u32 %v3052, 4294901760
        %v4888 = vsub.f32 %v3052, %v4887
        %4889 = vmatpush2.msra.mxu0 %v4888
        %4890 = vmatprep.subr.mxu0 0.0
        %v4891 = vand.u32 %v3051, 4294901760
        %v4892 = vsub.f32 %v3051, %v4891
        %4893 = vmatpush2.msra.mxu0 %v4892
        %4894 = vmatprep.subr.mxu0 0.0
        %v4895 = vand.u32 %v3050, 4294901760
        %v4896 = vsub.f32 %v3050, %v4895
        %4897 = vmatpush2.msra.mxu0 %v4896
        %4898 = vmatprep.subr.mxu0 0.0
        %v4899 = vand.u32 %v3049, 4294901760
        %v4900 = vsub.f32 %v3049, %v4899
        %4901 = vmatpush2.msra.mxu0 %v4900
        %4902 = vmatprep.subr.mxu0 0.0
        %v4903 = vand.u32 %v3048, 4294901760
        %v4904 = vsub.f32 %v3048, %v4903
        %4905 = vmatpush2.msra.mxu0 %v4904
        %4906 = vmatprep.subr.mxu0 0.0
        %v4907 = vand.u32 %v3047, 4294901760
        %v4908 = vsub.f32 %v3047, %v4907
        %4909 = vmatpush2.msra.mxu0 %v4908
        %4910 = vmatprep.subr.mxu0 0.0
        %v4911 = vand.u32 %v3046, 4294901760
        %v4912 = vsub.f32 %v3046, %v4911
        %4913 = vmatpush2.msra.mxu0 %v4912
        %4914 = vmatprep.subr.mxu0 0.0
        %v4915 = vand.u32 %v3045, 4294901760
        %v4916 = vsub.f32 %v3045, %v4915
        %4917 = vmatpush2.msra.mxu0 %v4916
        %4918 = vmatprep.subr.mxu0 0.0
        %v4919 = vand.u32 %v3044, 4294901760
        %v4920 = vsub.f32 %v3044, %v4919
        %4921 = vmatpush2.msra.mxu0 %v4920
        %4922 = vmatprep.subr.mxu0 0.0
        %v4923 = vand.u32 %v3043, 4294901760
        %v4924 = vsub.f32 %v3043, %v4923
        %4925 = vmatpush2.msra.mxu0 %v4924
        %4926 = vmatprep.subr.mxu0 0.0
        %v4927 = vand.u32 %v3042, 4294901760
        %v4928 = vsub.f32 %v3042, %v4927
        %4929 = vmatpush2.msra.mxu0 %v4928
        %4930 = vmatprep.subr.mxu0 0.0
        %v4931 = vand.u32 %v3041, 4294901760
        %v4932 = vsub.f32 %v3041, %v4931
        %4933 = vmatpush2.msra.mxu0 %v4932
        %4934 = vmatprep.subr.mxu0 0.0
        %v4935 = vand.u32 %v3040, 4294901760
        %v4936 = vsub.f32 %v3040, %v4935
        %4937 = vmatpush2.msra.mxu0 %v4936
        %4938 = vmatprep.subr.mxu0 0.0
        %v4939 = vand.u32 %v3039, 4294901760
        %v4940 = vsub.f32 %v3039, %v4939
        %4941 = vmatpush2.msra.mxu0 %v4940
        %v4942 = vand.u32 %v2962, 4294901760
        %v4943 = vsub.f32 %v2962, %v4942
        %4944 = vmatprep.mubr.f32.mxu0 %v4943
        %v4945 = vand.u32 %v2961, 4294901760
        %v4946 = vsub.f32 %v2961, %v4945
        %4947 = vmatmul.mubr.f32.gmra.mxu0 %v4946
        %v4948 = vpop.f32.mrf.mxu0
        %v4949 = vadd.f32 %v4762, %v4948
        %v4950 = vpop.f32.mrf.mxu0
        %v4951 = vand.u32 %v2966, 4294901760
        %v4952 = vsub.f32 %v2966, %v4951
        %4953 = vmatprep.mubr.f32.mxu0 %v4952
        %v4954 = vand.u32 %v2965, 4294901760
        %v4955 = vsub.f32 %v2965, %v4954
        %4956 = vmatmul.mubr.f32.gmra.mxu0 %v4955
        %v4957 = vpop.f32.mrf.mxu0
        %v4958 = vadd.f32 %v4769, %v4957
        %v4959 = vpop.f32.mrf.mxu0
        %v4960 = vand.u32 %v2970, 4294901760
        %v4961 = vsub.f32 %v2970, %v4960
        %4962 = vmatprep.mubr.f32.mxu0 %v4961
        %v4963 = vand.u32 %v2969, 4294901760
        %v4964 = vsub.f32 %v2969, %v4963
        %4965 = vmatmul.mubr.f32.gmra.mxu0 %v4964
        %v4966 = vpop.f32.mrf.mxu0
        %v4967 = vadd.f32 %v4776, %v4966
        %v4968 = vpop.f32.mrf.mxu0
        %v4969 = vand.u32 %v2974, 4294901760
        %v4970 = vsub.f32 %v2974, %v4969
        %4971 = vmatprep.mubr.f32.mxu0 %v4970
        %v4972 = vand.u32 %v2973, 4294901760
        %v4973 = vsub.f32 %v2973, %v4972
        %4974 = vmatmul.mubr.f32.gmra.mxu0 %v4973
        %v4975 = vpop.f32.mrf.mxu0
        %v4976 = vadd.f32 %v4783, %v4975
        %v4977 = vpop.f32.mrf.mxu0
        %v4978 = vand.u32 %v2978, 4294901760
        %v4979 = vsub.f32 %v2978, %v4978
        %4980 = vmatprep.mubr.f32.mxu0 %v4979
        %v4981 = vand.u32 %v2977, 4294901760
        %v4982 = vsub.f32 %v2977, %v4981
        %4983 = vmatmul.mubr.f32.gmra.mxu0 %v4982
        %v4984 = vpop.f32.mrf.mxu0
        %v4985 = vadd.f32 %v4790, %v4984
        %v4986 = vpop.f32.mrf.mxu0
        %v4987 = vand.u32 %v2982, 4294901760
        %v4988 = vsub.f32 %v2982, %v4987
        %4989 = vmatprep.mubr.f32.mxu0 %v4988
        %v4990 = vand.u32 %v2981, 4294901760
        %v4991 = vsub.f32 %v2981, %v4990
        %4992 = vmatmul.mubr.f32.gmra.mxu0 %v4991
        %v4993 = vpop.f32.mrf.mxu0
        %v4994 = vadd.f32 %v4797, %v4993
        %v4995 = vpop.f32.mrf.mxu0
        %v4996 = vand.u32 %v2986, 4294901760
        %v4997 = vsub.f32 %v2986, %v4996
        %4998 = vmatprep.mubr.f32.mxu0 %v4997
        %v4999 = vand.u32 %v2985, 4294901760
        %v5000 = vsub.f32 %v2985, %v4999
        %5001 = vmatmul.mubr.f32.gmra.mxu0 %v5000
        %v5002 = vpop.f32.mrf.mxu0
        %v5003 = vadd.f32 %v4804, %v5002
        %v5004 = vpop.f32.mrf.mxu0
        %v5005 = vand.u32 %v2990, 4294901760
        %v5006 = vsub.f32 %v2990, %v5005
        %5007 = vmatprep.mubr.f32.mxu0 %v5006
        %v5008 = vand.u32 %v2989, 4294901760
        %v5009 = vsub.f32 %v2989, %v5008
        %5010 = vmatmul.mubr.f32.gmra.mxu0 %v5009
        %v5011 = vpop.f32.mrf.mxu0
        %v5012 = vadd.f32 %v4811, %v5011
        %v5013 = vpop.f32.mrf.mxu0
        %5014 = vdwg.mxu0
        %5015 = vmatprep.subr.mxu0 0.0
        %v5016 = vand.u32 %v3038, 4294901760
        %5017 = vmatpush1.msra.mxu0 %v5016
        %5018 = vmatprep.subr.mxu0 0.0
        %v5019 = vand.u32 %v3037, 4294901760
        %5020 = vmatpush1.msra.mxu0 %v5019
        %5021 = vmatprep.subr.mxu0 0.0
        %v5022 = vand.u32 %v3036, 4294901760
        %5023 = vmatpush1.msra.mxu0 %v5022
        %5024 = vmatprep.subr.mxu0 0.0
        %v5025 = vand.u32 %v3035, 4294901760
        %5026 = vmatpush1.msra.mxu0 %v5025
        %5027 = vmatprep.subr.mxu0 0.0
        %v5028 = vand.u32 %v3034, 4294901760
        %5029 = vmatpush1.msra.mxu0 %v5028
        %5030 = vmatprep.subr.mxu0 0.0
        %v5031 = vand.u32 %v3033, 4294901760
        %5032 = vmatpush1.msra.mxu0 %v5031
        %5033 = vmatprep.subr.mxu0 0.0
        %v5034 = vand.u32 %v3032, 4294901760
        %5035 = vmatpush1.msra.mxu0 %v5034
        %5036 = vmatprep.subr.mxu0 0.0
        %v5037 = vand.u32 %v3031, 4294901760
        %5038 = vmatpush1.msra.mxu0 %v5037
        %5039 = vmatprep.subr.mxu0 0.0
        %v5040 = vand.u32 %v3030, 4294901760
        %5041 = vmatpush1.msra.mxu0 %v5040
        %5042 = vmatprep.subr.mxu0 0.0
        %v5043 = vand.u32 %v3029, 4294901760
        %5044 = vmatpush1.msra.mxu0 %v5043
        %5045 = vmatprep.subr.mxu0 0.0
        %v5046 = vand.u32 %v3028, 4294901760
        %5047 = vmatpush1.msra.mxu0 %v5046
        %5048 = vmatprep.subr.mxu0 0.0
        %v5049 = vand.u32 %v3027, 4294901760
        %5050 = vmatpush1.msra.mxu0 %v5049
        %5051 = vmatprep.subr.mxu0 0.0
        %v5052 = vand.u32 %v3026, 4294901760
        %5053 = vmatpush1.msra.mxu0 %v5052
        %5054 = vmatprep.subr.mxu0 0.0
        %v5055 = vand.u32 %v3025, 4294901760
        %5056 = vmatpush1.msra.mxu0 %v5055
        %5057 = vmatprep.subr.mxu0 0.0
        %v5058 = vand.u32 %v3024, 4294901760
        %5059 = vmatpush1.msra.mxu0 %v5058
        %5060 = vmatprep.subr.mxu0 0.0
        %v5061 = vand.u32 %v3023, 4294901760
        %5062 = vmatpush1.msra.mxu0 %v5061
        %5063 = vmatprep.subr.mxu0 0.0
        %v5064 = vand.u32 %v3054, 4294901760
        %5065 = vmatpush2.msra.mxu0 %v5064
        %5066 = vmatprep.subr.mxu0 0.0
        %v5067 = vand.u32 %v3053, 4294901760
        %5068 = vmatpush2.msra.mxu0 %v5067
        %5069 = vmatprep.subr.mxu0 0.0
        %v5070 = vand.u32 %v3052, 4294901760
        %5071 = vmatpush2.msra.mxu0 %v5070
        %5072 = vmatprep.subr.mxu0 0.0
        %v5073 = vand.u32 %v3051, 4294901760
        %5074 = vmatpush2.msra.mxu0 %v5073
        %5075 = vmatprep.subr.mxu0 0.0
        %v5076 = vand.u32 %v3050, 4294901760
        %5077 = vmatpush2.msra.mxu0 %v5076
        %5078 = vmatprep.subr.mxu0 0.0
        %v5079 = vand.u32 %v3049, 4294901760
        %5080 = vmatpush2.msra.mxu0 %v5079
        %5081 = vmatprep.subr.mxu0 0.0
        %v5082 = vand.u32 %v3048, 4294901760
        %5083 = vmatpush2.msra.mxu0 %v5082
        %5084 = vmatprep.subr.mxu0 0.0
        %v5085 = vand.u32 %v3047, 4294901760
        %5086 = vmatpush2.msra.mxu0 %v5085
        %5087 = vmatprep.subr.mxu0 0.0
        %v5088 = vand.u32 %v3046, 4294901760
        %5089 = vmatpush2.msra.mxu0 %v5088
        %5090 = vmatprep.subr.mxu0 0.0
        %v5091 = vand.u32 %v3045, 4294901760
        %5092 = vmatpush2.msra.mxu0 %v5091
        %5093 = vmatprep.subr.mxu0 0.0
        %v5094 = vand.u32 %v3044, 4294901760
        %5095 = vmatpush2.msra.mxu0 %v5094
        %5096 = vmatprep.subr.mxu0 0.0
        %v5097 = vand.u32 %v3043, 4294901760
        %5098 = vmatpush2.msra.mxu0 %v5097
        %5099 = vmatprep.subr.mxu0 0.0
        %v5100 = vand.u32 %v3042, 4294901760
        %5101 = vmatpush2.msra.mxu0 %v5100
        %5102 = vmatprep.subr.mxu0 0.0
        %v5103 = vand.u32 %v3041, 4294901760
        %5104 = vmatpush2.msra.mxu0 %v5103
        %5105 = vmatprep.subr.mxu0 0.0
        %v5106 = vand.u32 %v3040, 4294901760
        %5107 = vmatpush2.msra.mxu0 %v5106
        %5108 = vmatprep.subr.mxu0 0.0
        %v5109 = vand.u32 %v3039, 4294901760
        %5110 = vmatpush2.msra.mxu0 %v5109
        %v5111 = vand.u32 %v2962, 4294901760
        %v5112 = vsub.f32 %v2962, %v5111
        %v5113 = vand.u32 %v5112, 4294901760
        %5114 = vmatprep.mubr.f32.mxu0 %v5113
        %v5115 = vand.u32 %v2961, 4294901760
        %v5116 = vsub.f32 %v2961, %v5115
        %v5117 = vand.u32 %v5116, 4294901760
        %5118 = vmatmul.mubr.f32.gmra.mxu0 %v5117
        %v5119 = vpop.f32.mrf.mxu0
        %v5120 = vadd.f32 %v4949, %v5119
        %v5121 = vpop.f32.mrf.mxu0
        %v5122 = vand.u32 %v2966, 4294901760
        %v5123 = vsub.f32 %v2966, %v5122
        %v5124 = vand.u32 %v5123, 4294901760
        %5125 = vmatprep.mubr.f32.mxu0 %v5124
        %v5126 = vand.u32 %v2965, 4294901760
        %v5127 = vsub.f32 %v2965, %v5126
        %v5128 = vand.u32 %v5127, 4294901760
        %5129 = vmatmul.mubr.f32.gmra.mxu0 %v5128
        %v5130 = vpop.f32.mrf.mxu0
        %v5131 = vadd.f32 %v4958, %v5130
        %v5132 = vpop.f32.mrf.mxu0
        %v5133 = vand.u32 %v2970, 4294901760
        %v5134 = vsub.f32 %v2970, %v5133
        %v5135 = vand.u32 %v5134, 4294901760
        %5136 = vmatprep.mubr.f32.mxu0 %v5135
        %v5137 = vand.u32 %v2969, 4294901760
        %v5138 = vsub.f32 %v2969, %v5137
        %v5139 = vand.u32 %v5138, 4294901760
        %5140 = vmatmul.mubr.f32.gmra.mxu0 %v5139
        %v5141 = vpop.f32.mrf.mxu0
        %v5142 = vadd.f32 %v4967, %v5141
        %v5143 = vpop.f32.mrf.mxu0
        %v5144 = vand.u32 %v2974, 4294901760
        %v5145 = vsub.f32 %v2974, %v5144
        %v5146 = vand.u32 %v5145, 4294901760
        %5147 = vmatprep.mubr.f32.mxu0 %v5146
        %v5148 = vand.u32 %v2973, 4294901760
        %v5149 = vsub.f32 %v2973, %v5148
        %v5150 = vand.u32 %v5149, 4294901760
        %5151 = vmatmul.mubr.f32.gmra.mxu0 %v5150
        %v5152 = vpop.f32.mrf.mxu0
        %v5153 = vadd.f32 %v4976, %v5152
        %v5154 = vpop.f32.mrf.mxu0
        %v5155 = vand.u32 %v2978, 4294901760
        %v5156 = vsub.f32 %v2978, %v5155
        %v5157 = vand.u32 %v5156, 4294901760
        %5158 = vmatprep.mubr.f32.mxu0 %v5157
        %v5159 = vand.u32 %v2977, 4294901760
        %v5160 = vsub.f32 %v2977, %v5159
        %v5161 = vand.u32 %v5160, 4294901760
        %5162 = vmatmul.mubr.f32.gmra.mxu0 %v5161
        %v5163 = vpop.f32.mrf.mxu0
        %v5164 = vadd.f32 %v4985, %v5163
        %v5165 = vpop.f32.mrf.mxu0
        %v5166 = vand.u32 %v2982, 4294901760
        %v5167 = vsub.f32 %v2982, %v5166
        %v5168 = vand.u32 %v5167, 4294901760
        %5169 = vmatprep.mubr.f32.mxu0 %v5168
        %v5170 = vand.u32 %v2981, 4294901760
        %v5171 = vsub.f32 %v2981, %v5170
        %v5172 = vand.u32 %v5171, 4294901760
        %5173 = vmatmul.mubr.f32.gmra.mxu0 %v5172
        %v5174 = vpop.f32.mrf.mxu0
        %v5175 = vadd.f32 %v4994, %v5174
        %v5176 = vpop.f32.mrf.mxu0
        %v5177 = vand.u32 %v2986, 4294901760
        %v5178 = vsub.f32 %v2986, %v5177
        %v5179 = vand.u32 %v5178, 4294901760
        %5180 = vmatprep.mubr.f32.mxu0 %v5179
        %v5181 = vand.u32 %v2985, 4294901760
        %v5182 = vsub.f32 %v2985, %v5181
        %v5183 = vand.u32 %v5182, 4294901760
        %5184 = vmatmul.mubr.f32.gmra.mxu0 %v5183
        %v5185 = vpop.f32.mrf.mxu0
        %v5186 = vadd.f32 %v5003, %v5185
        %v5187 = vpop.f32.mrf.mxu0
        %v5188 = vand.u32 %v2990, 4294901760
        %v5189 = vsub.f32 %v2990, %v5188
        %v5190 = vand.u32 %v5189, 4294901760
        %5191 = vmatprep.mubr.f32.mxu0 %v5190
        %v5192 = vand.u32 %v2989, 4294901760
        %v5193 = vsub.f32 %v2989, %v5192
        %v5194 = vand.u32 %v5193, 4294901760
        %5195 = vmatmul.mubr.f32.gmra.mxu0 %v5194
        %v5196 = vpop.f32.mrf.mxu0
        %v5197 = vadd.f32 %v5012, %v5196
        %v5198 = vpop.f32.mrf.mxu0
        %5199 = vdwg.mxu0
        %5200 = vmatprep.subr.mxu0 0.0
        %v5201 = vand.u32 %v3038, 4294901760
        %v5202 = vsub.f32 %v3038, %v5201
        %v5203 = vand.u32 %v5202, 4294901760
        %5204 = vmatpush1.msra.mxu0 %v5203
        %5205 = vmatprep.subr.mxu0 0.0
        %v5206 = vand.u32 %v3037, 4294901760
        %v5207 = vsub.f32 %v3037, %v5206
        %v5208 = vand.u32 %v5207, 4294901760
        %5209 = vmatpush1.msra.mxu0 %v5208
        %5210 = vmatprep.subr.mxu0 0.0
        %v5211 = vand.u32 %v3036, 4294901760
        %v5212 = vsub.f32 %v3036, %v5211
        %v5213 = vand.u32 %v5212, 4294901760
        %5214 = vmatpush1.msra.mxu0 %v5213
        %5215 = vmatprep.subr.mxu0 0.0
        %v5216 = vand.u32 %v3035, 4294901760
        %v5217 = vsub.f32 %v3035, %v5216
        %v5218 = vand.u32 %v5217, 4294901760
        %5219 = vmatpush1.msra.mxu0 %v5218
        %5220 = vmatprep.subr.mxu0 0.0
        %v5221 = vand.u32 %v3034, 4294901760
        %v5222 = vsub.f32 %v3034, %v5221
        %v5223 = vand.u32 %v5222, 4294901760
        %5224 = vmatpush1.msra.mxu0 %v5223
        %5225 = vmatprep.subr.mxu0 0.0
        %v5226 = vand.u32 %v3033, 4294901760
        %v5227 = vsub.f32 %v3033, %v5226
        %v5228 = vand.u32 %v5227, 4294901760
        %5229 = vmatpush1.msra.mxu0 %v5228
        %5230 = vmatprep.subr.mxu0 0.0
        %v5231 = vand.u32 %v3032, 4294901760
        %v5232 = vsub.f32 %v3032, %v5231
        %v5233 = vand.u32 %v5232, 4294901760
        %5234 = vmatpush1.msra.mxu0 %v5233
        %5235 = vmatprep.subr.mxu0 0.0
        %v5236 = vand.u32 %v3031, 4294901760
        %v5237 = vsub.f32 %v3031, %v5236
        %v5238 = vand.u32 %v5237, 4294901760
        %5239 = vmatpush1.msra.mxu0 %v5238
        %5240 = vmatprep.subr.mxu0 0.0
        %v5241 = vand.u32 %v3030, 4294901760
        %v5242 = vsub.f32 %v3030, %v5241
        %v5243 = vand.u32 %v5242, 4294901760
        %5244 = vmatpush1.msra.mxu0 %v5243
        %5245 = vmatprep.subr.mxu0 0.0
        %v5246 = vand.u32 %v3029, 4294901760
        %v5247 = vsub.f32 %v3029, %v5246
        %v5248 = vand.u32 %v5247, 4294901760
        %5249 = vmatpush1.msra.mxu0 %v5248
        %5250 = vmatprep.subr.mxu0 0.0
        %v5251 = vand.u32 %v3028, 4294901760
        %v5252 = vsub.f32 %v3028, %v5251
        %v5253 = vand.u32 %v5252, 4294901760
        %5254 = vmatpush1.msra.mxu0 %v5253
        %5255 = vmatprep.subr.mxu0 0.0
        %v5256 = vand.u32 %v3027, 4294901760
        %v5257 = vsub.f32 %v3027, %v5256
        %v5258 = vand.u32 %v5257, 4294901760
        %5259 = vmatpush1.msra.mxu0 %v5258
        %5260 = vmatprep.subr.mxu0 0.0
        %v5261 = vand.u32 %v3026, 4294901760
        %v5262 = vsub.f32 %v3026, %v5261
        %v5263 = vand.u32 %v5262, 4294901760
        %5264 = vmatpush1.msra.mxu0 %v5263
        %5265 = vmatprep.subr.mxu0 0.0
        %v5266 = vand.u32 %v3025, 4294901760
        %v5267 = vsub.f32 %v3025, %v5266
        %v5268 = vand.u32 %v5267, 4294901760
        %5269 = vmatpush1.msra.mxu0 %v5268
        %5270 = vmatprep.subr.mxu0 0.0
        %v5271 = vand.u32 %v3024, 4294901760
        %v5272 = vsub.f32 %v3024, %v5271
        %v5273 = vand.u32 %v5272, 4294901760
        %5274 = vmatpush1.msra.mxu0 %v5273
        %5275 = vmatprep.subr.mxu0 0.0
        %v5276 = vand.u32 %v3023, 4294901760
        %v5277 = vsub.f32 %v3023, %v5276
        %v5278 = vand.u32 %v5277, 4294901760
        %5279 = vmatpush1.msra.mxu0 %v5278
        %5280 = vmatprep.subr.mxu0 0.0
        %v5281 = vand.u32 %v3054, 4294901760
        %v5282 = vsub.f32 %v3054, %v5281
        %v5283 = vand.u32 %v5282, 4294901760
        %5284 = vmatpush2.msra.mxu0 %v5283
        %5285 = vmatprep.subr.mxu0 0.0
        %v5286 = vand.u32 %v3053, 4294901760
        %v5287 = vsub.f32 %v3053, %v5286
        %v5288 = vand.u32 %v5287, 4294901760
        %5289 = vmatpush2.msra.mxu0 %v5288
        %5290 = vmatprep.subr.mxu0 0.0
        %v5291 = vand.u32 %v3052, 4294901760
        %v5292 = vsub.f32 %v3052, %v5291
        %v5293 = vand.u32 %v5292, 4294901760
        %5294 = vmatpush2.msra.mxu0 %v5293
        %5295 = vmatprep.subr.mxu0 0.0
        %v5296 = vand.u32 %v3051, 4294901760
        %v5297 = vsub.f32 %v3051, %v5296
        %v5298 = vand.u32 %v5297, 4294901760
        %5299 = vmatpush2.msra.mxu0 %v5298
        %5300 = vmatprep.subr.mxu0 0.0
        %v5301 = vand.u32 %v3050, 4294901760
        %v5302 = vsub.f32 %v3050, %v5301
        %v5303 = vand.u32 %v5302, 4294901760
        %5304 = vmatpush2.msra.mxu0 %v5303
        %5305 = vmatprep.subr.mxu0 0.0
        %v5306 = vand.u32 %v3049, 4294901760
        %v5307 = vsub.f32 %v3049, %v5306
        %v5308 = vand.u32 %v5307, 4294901760
        %5309 = vmatpush2.msra.mxu0 %v5308
        %5310 = vmatprep.subr.mxu0 0.0
        %v5311 = vand.u32 %v3048, 4294901760
        %v5312 = vsub.f32 %v3048, %v5311
        %v5313 = vand.u32 %v5312, 4294901760
        %5314 = vmatpush2.msra.mxu0 %v5313
        %5315 = vmatprep.subr.mxu0 0.0
        %v5316 = vand.u32 %v3047, 4294901760
        %v5317 = vsub.f32 %v3047, %v5316
        %v5318 = vand.u32 %v5317, 4294901760
        %5319 = vmatpush2.msra.mxu0 %v5318
        %5320 = vmatprep.subr.mxu0 0.0
        %v5321 = vand.u32 %v3046, 4294901760
        %v5322 = vsub.f32 %v3046, %v5321
        %v5323 = vand.u32 %v5322, 4294901760
        %5324 = vmatpush2.msra.mxu0 %v5323
        %5325 = vmatprep.subr.mxu0 0.0
        %v5326 = vand.u32 %v3045, 4294901760
        %v5327 = vsub.f32 %v3045, %v5326
        %v5328 = vand.u32 %v5327, 4294901760
        %5329 = vmatpush2.msra.mxu0 %v5328
        %5330 = vmatprep.subr.mxu0 0.0
        %v5331 = vand.u32 %v3044, 4294901760
        %v5332 = vsub.f32 %v3044, %v5331
        %v5333 = vand.u32 %v5332, 4294901760
        %5334 = vmatpush2.msra.mxu0 %v5333
        %5335 = vmatprep.subr.mxu0 0.0
        %v5336 = vand.u32 %v3043, 4294901760
        %v5337 = vsub.f32 %v3043, %v5336
        %v5338 = vand.u32 %v5337, 4294901760
        %5339 = vmatpush2.msra.mxu0 %v5338
        %5340 = vmatprep.subr.mxu0 0.0
        %v5341 = vand.u32 %v3042, 4294901760
        %v5342 = vsub.f32 %v3042, %v5341
        %v5343 = vand.u32 %v5342, 4294901760
        %5344 = vmatpush2.msra.mxu0 %v5343
        %5345 = vmatprep.subr.mxu0 0.0
        %v5346 = vand.u32 %v3041, 4294901760
        %v5347 = vsub.f32 %v3041, %v5346
        %v5348 = vand.u32 %v5347, 4294901760
        %5349 = vmatpush2.msra.mxu0 %v5348
        %5350 = vmatprep.subr.mxu0 0.0
        %v5351 = vand.u32 %v3040, 4294901760
        %v5352 = vsub.f32 %v3040, %v5351
        %v5353 = vand.u32 %v5352, 4294901760
        %5354 = vmatpush2.msra.mxu0 %v5353
        %5355 = vmatprep.subr.mxu0 0.0
        %v5356 = vand.u32 %v3039, 4294901760
        %v5357 = vsub.f32 %v3039, %v5356
        %v5358 = vand.u32 %v5357, 4294901760
        %5359 = vmatpush2.msra.mxu0 %v5358
        %v5360 = vand.u32 %v2962, 4294901760
        %5361 = vmatprep.mubr.f32.mxu0 %v5360
        %v5362 = vand.u32 %v2961, 4294901760
        %5363 = vmatmul.mubr.f32.gmra.mxu0 %v5362
        %v5364 = vpop.f32.mrf.mxu0
        %v5365 = vadd.f32 %v5120, %v5364
        %v5366 = vpop.f32.mrf.mxu0
        %v5367 = vand.u32 %v2966, 4294901760
        %5368 = vmatprep.mubr.f32.mxu0 %v5367
        %v5369 = vand.u32 %v2965, 4294901760
        %5370 = vmatmul.mubr.f32.gmra.mxu0 %v5369
        %v5371 = vpop.f32.mrf.mxu0
        %v5372 = vadd.f32 %v5131, %v5371
        %v5373 = vpop.f32.mrf.mxu0
        %v5374 = vand.u32 %v2970, 4294901760
        %5375 = vmatprep.mubr.f32.mxu0 %v5374
        %v5376 = vand.u32 %v2969, 4294901760
        %5377 = vmatmul.mubr.f32.gmra.mxu0 %v5376
        %v5378 = vpop.f32.mrf.mxu0
        %v5379 = vadd.f32 %v5142, %v5378
        %v5380 = vpop.f32.mrf.mxu0
        %v5381 = vand.u32 %v2974, 4294901760
        %5382 = vmatprep.mubr.f32.mxu0 %v5381
        %v5383 = vand.u32 %v2973, 4294901760
        %5384 = vmatmul.mubr.f32.gmra.mxu0 %v5383
        %v5385 = vpop.f32.mrf.mxu0
        %v5386 = vadd.f32 %v5153, %v5385
        %v5387 = vpop.f32.mrf.mxu0
        %v5388 = vand.u32 %v2978, 4294901760
        %5389 = vmatprep.mubr.f32.mxu0 %v5388
        %v5390 = vand.u32 %v2977, 4294901760
        %5391 = vmatmul.mubr.f32.gmra.mxu0 %v5390
        %v5392 = vpop.f32.mrf.mxu0
        %v5393 = vadd.f32 %v5164, %v5392
        %v5394 = vpop.f32.mrf.mxu0
        %v5395 = vand.u32 %v2982, 4294901760
        %5396 = vmatprep.mubr.f32.mxu0 %v5395
        %v5397 = vand.u32 %v2981, 4294901760
        %5398 = vmatmul.mubr.f32.gmra.mxu0 %v5397
        %v5399 = vpop.f32.mrf.mxu0
        %v5400 = vadd.f32 %v5175, %v5399
        %v5401 = vpop.f32.mrf.mxu0
        %v5402 = vand.u32 %v2986, 4294901760
        %5403 = vmatprep.mubr.f32.mxu0 %v5402
        %v5404 = vand.u32 %v2985, 4294901760
        %5405 = vmatmul.mubr.f32.gmra.mxu0 %v5404
        %v5406 = vpop.f32.mrf.mxu0
        %v5407 = vadd.f32 %v5186, %v5406
        %v5408 = vpop.f32.mrf.mxu0
        %v5409 = vand.u32 %v2990, 4294901760
        %5410 = vmatprep.mubr.f32.mxu0 %v5409
        %v5411 = vand.u32 %v2989, 4294901760
        %5412 = vmatmul.mubr.f32.gmra.mxu0 %v5411
        %v5413 = vpop.f32.mrf.mxu0
        %v5414 = vadd.f32 %v5197, %v5413
        %v5415 = vpop.f32.mrf.mxu0
        %5416 = vdwg.mxu0
        %5417 = vmatprep.subr.mxu0 0.0
        %v5418 = vand.u32 %v3038, 4294901760
        %5419 = vmatpush1.msra.mxu0 %v5418
        %5420 = vmatprep.subr.mxu0 0.0
        %v5421 = vand.u32 %v3037, 4294901760
        %5422 = vmatpush1.msra.mxu0 %v5421
        %5423 = vmatprep.subr.mxu0 0.0
        %v5424 = vand.u32 %v3036, 4294901760
        %5425 = vmatpush1.msra.mxu0 %v5424
        %5426 = vmatprep.subr.mxu0 0.0
        %v5427 = vand.u32 %v3035, 4294901760
        %5428 = vmatpush1.msra.mxu0 %v5427
        %5429 = vmatprep.subr.mxu0 0.0
        %v5430 = vand.u32 %v3034, 4294901760
        %5431 = vmatpush1.msra.mxu0 %v5430
        %5432 = vmatprep.subr.mxu0 0.0
        %v5433 = vand.u32 %v3033, 4294901760
        %5434 = vmatpush1.msra.mxu0 %v5433
        %5435 = vmatprep.subr.mxu0 0.0
        %v5436 = vand.u32 %v3032, 4294901760
        %5437 = vmatpush1.msra.mxu0 %v5436
        %5438 = vmatprep.subr.mxu0 0.0
        %v5439 = vand.u32 %v3031, 4294901760
        %5440 = vmatpush1.msra.mxu0 %v5439
        %5441 = vmatprep.subr.mxu0 0.0
        %v5442 = vand.u32 %v3030, 4294901760
        %5443 = vmatpush1.msra.mxu0 %v5442
        %5444 = vmatprep.subr.mxu0 0.0
        %v5445 = vand.u32 %v3029, 4294901760
        %5446 = vmatpush1.msra.mxu0 %v5445
        %5447 = vmatprep.subr.mxu0 0.0
        %v5448 = vand.u32 %v3028, 4294901760
        %5449 = vmatpush1.msra.mxu0 %v5448
        %5450 = vmatprep.subr.mxu0 0.0
        %v5451 = vand.u32 %v3027, 4294901760
        %5452 = vmatpush1.msra.mxu0 %v5451
        %5453 = vmatprep.subr.mxu0 0.0
        %v5454 = vand.u32 %v3026, 4294901760
        %5455 = vmatpush1.msra.mxu0 %v5454
        %5456 = vmatprep.subr.mxu0 0.0
        %v5457 = vand.u32 %v3025, 4294901760
        %5458 = vmatpush1.msra.mxu0 %v5457
        %5459 = vmatprep.subr.mxu0 0.0
        %v5460 = vand.u32 %v3024, 4294901760
        %5461 = vmatpush1.msra.mxu0 %v5460
        %5462 = vmatprep.subr.mxu0 0.0
        %v5463 = vand.u32 %v3023, 4294901760
        %5464 = vmatpush1.msra.mxu0 %v5463
        %5465 = vmatprep.subr.mxu0 0.0
        %v5466 = vand.u32 %v3054, 4294901760
        %5467 = vmatpush2.msra.mxu0 %v5466
        %5468 = vmatprep.subr.mxu0 0.0
        %v5469 = vand.u32 %v3053, 4294901760
        %5470 = vmatpush2.msra.mxu0 %v5469
        %5471 = vmatprep.subr.mxu0 0.0
        %v5472 = vand.u32 %v3052, 4294901760
        %5473 = vmatpush2.msra.mxu0 %v5472
        %5474 = vmatprep.subr.mxu0 0.0
        %v5475 = vand.u32 %v3051, 4294901760
        %5476 = vmatpush2.msra.mxu0 %v5475
        %5477 = vmatprep.subr.mxu0 0.0
        %v5478 = vand.u32 %v3050, 4294901760
        %5479 = vmatpush2.msra.mxu0 %v5478
        %5480 = vmatprep.subr.mxu0 0.0
        %v5481 = vand.u32 %v3049, 4294901760
        %5482 = vmatpush2.msra.mxu0 %v5481
        %5483 = vmatprep.subr.mxu0 0.0
        %v5484 = vand.u32 %v3048, 4294901760
        %5485 = vmatpush2.msra.mxu0 %v5484
        %5486 = vmatprep.subr.mxu0 0.0
        %v5487 = vand.u32 %v3047, 4294901760
        %5488 = vmatpush2.msra.mxu0 %v5487
        %5489 = vmatprep.subr.mxu0 0.0
        %v5490 = vand.u32 %v3046, 4294901760
        %5491 = vmatpush2.msra.mxu0 %v5490
        %5492 = vmatprep.subr.mxu0 0.0
        %v5493 = vand.u32 %v3045, 4294901760
        %5494 = vmatpush2.msra.mxu0 %v5493
        %5495 = vmatprep.subr.mxu0 0.0
        %v5496 = vand.u32 %v3044, 4294901760
        %5497 = vmatpush2.msra.mxu0 %v5496
        %5498 = vmatprep.subr.mxu0 0.0
        %v5499 = vand.u32 %v3043, 4294901760
        %5500 = vmatpush2.msra.mxu0 %v5499
        %5501 = vmatprep.subr.mxu0 0.0
        %v5502 = vand.u32 %v3042, 4294901760
        %5503 = vmatpush2.msra.mxu0 %v5502
        %5504 = vmatprep.subr.mxu0 0.0
        %v5505 = vand.u32 %v3041, 4294901760
        %5506 = vmatpush2.msra.mxu0 %v5505
        %5507 = vmatprep.subr.mxu0 0.0
        %v5508 = vand.u32 %v3040, 4294901760
        %5509 = vmatpush2.msra.mxu0 %v5508
        %5510 = vmatprep.subr.mxu0 0.0
        %v5511 = vand.u32 %v3039, 4294901760
        %5512 = vmatpush2.msra.mxu0 %v5511
        %v5513 = vand.u32 %v2962, 4294901760
        %5514 = vmatprep.mubr.f32.mxu0 %v5513
        %v5515 = vand.u32 %v2961, 4294901760
        %5516 = vmatmul.mubr.f32.gmra.mxu0 %v5515
        %v5517 = vpop.f32.mrf.mxu0
        %v5518 = vadd.f32 %v5365, %v5517
        %v5519 = vpop.f32.mrf.mxu0
        %v5520 = vand.u32 %v2966, 4294901760
        %5521 = vmatprep.mubr.f32.mxu0 %v5520
        %v5522 = vand.u32 %v2965, 4294901760
        %5523 = vmatmul.mubr.f32.gmra.mxu0 %v5522
        %v5524 = vpop.f32.mrf.mxu0
        %v5525 = vadd.f32 %v5372, %v5524
        %v5526 = vpop.f32.mrf.mxu0
        %v5527 = vand.u32 %v2970, 4294901760
        %5528 = vmatprep.mubr.f32.mxu0 %v5527
        %v5529 = vand.u32 %v2969, 4294901760
        %5530 = vmatmul.mubr.f32.gmra.mxu0 %v5529
        %v5531 = vpop.f32.mrf.mxu0
        %v5532 = vadd.f32 %v5379, %v5531
        %v5533 = vpop.f32.mrf.mxu0
        %v5534 = vand.u32 %v2974, 4294901760
        %5535 = vmatprep.mubr.f32.mxu0 %v5534
        %v5536 = vand.u32 %v2973, 4294901760
        %5537 = vmatmul.mubr.f32.gmra.mxu0 %v5536
        %v5538 = vpop.f32.mrf.mxu0
        %v5539 = vadd.f32 %v5386, %v5538
        %v5540 = vpop.f32.mrf.mxu0
        %v5541 = vand.u32 %v2978, 4294901760
        %5542 = vmatprep.mubr.f32.mxu0 %v5541
        %v5543 = vand.u32 %v2977, 4294901760
        %5544 = vmatmul.mubr.f32.gmra.mxu0 %v5543
        %v5545 = vpop.f32.mrf.mxu0
        %v5546 = vadd.f32 %v5393, %v5545
        %v5547 = vpop.f32.mrf.mxu0
        %v5548 = vand.u32 %v2982, 4294901760
        %5549 = vmatprep.mubr.f32.mxu0 %v5548
        %v5550 = vand.u32 %v2981, 4294901760
        %5551 = vmatmul.mubr.f32.gmra.mxu0 %v5550
        %v5552 = vpop.f32.mrf.mxu0
        %v5553 = vadd.f32 %v5400, %v5552
        %v5554 = vpop.f32.mrf.mxu0
        %v5555 = vand.u32 %v2986, 4294901760
        %5556 = vmatprep.mubr.f32.mxu0 %v5555
        %v5557 = vand.u32 %v2985, 4294901760
        %5558 = vmatmul.mubr.f32.gmra.mxu0 %v5557
        %v5559 = vpop.f32.mrf.mxu0
        %v5560 = vadd.f32 %v5407, %v5559
        %v5561 = vpop.f32.mrf.mxu0
        %v5562 = vand.u32 %v2990, 4294901760
        %5563 = vmatprep.mubr.f32.mxu0 %v5562
        %v5564 = vand.u32 %v2989, 4294901760
        %5565 = vmatmul.mubr.f32.gmra.mxu0 %v5564
        %v5566 = vpop.f32.mrf.mxu0
        %v5567 = vadd.f32 %v5414, %v5566
        %v5568 = vpop.f32.mrf.mxu0
        %5569 = vdwg.mxu0
        %v5570 = vld [vmem:[%s5] sm:$0x1]
        %v5571 = vld [vmem:[%s6] sm:$0x1]
        %v5572 = vadd.f32 %v5518, %v341
        %v5573 = vadd.f32 %v5525, %v342
        %v5574 = vadd.f32 %v5532, %v343
        %v5575 = vadd.f32 %v5539, %v344
        %v5576 = vadd.f32 %v5546, %v345
        %v5577 = vadd.f32 %v5553, %v346
        %v5578 = vadd.f32 %v5560, %v347
        %v5579 = vadd.f32 %v5567, %v348
        %5580 = vadd.xlane.f32.xlu0 %v5572
        %v5581 = vpop.xlane.xlu0 %5580
        %5582 = vadd.xlane.f32.xlu0 %v5573
        %v5583 = vpop.xlane.xlu0 %5582
        %5584 = vadd.xlane.f32.xlu0 %v5574
        %v5585 = vpop.xlane.xlu0 %5584
        %5586 = vadd.xlane.f32.xlu0 %v5575
        %v5587 = vpop.xlane.xlu0 %5586
        %5588 = vadd.xlane.f32.xlu0 %v5576
        %v5589 = vpop.xlane.xlu0 %5588
        %5590 = vadd.xlane.f32.xlu0 %v5577
        %v5591 = vpop.xlane.xlu0 %5590
        %5592 = vadd.xlane.f32.xlu0 %v5578
        %v5593 = vpop.xlane.xlu0 %5592
        %5594 = vadd.xlane.f32.xlu0 %v5579
        %v5595 = vpop.xlane.xlu0 %5594
        %v5596 = vrcp.pop 128.0
        %v5597 = vmul.f32 %v5581, %v5596
        %v5598 = vmul.f32 %v5583, %v5596
        %v5599 = vmul.f32 %v5585, %v5596
        %v5600 = vmul.f32 %v5587, %v5596
        %v5601 = vmul.f32 %v5589, %v5596
        %v5602 = vmul.f32 %v5591, %v5596
        %v5603 = vmul.f32 %v5593, %v5596
        %v5604 = vmul.f32 %v5595, %v5596
        %v5605 = vsub.f32 %v5572, %v5597
        %v5606 = vsub.f32 %v5573, %v5598
        %v5607 = vsub.f32 %v5574, %v5599
        %v5608 = vsub.f32 %v5575, %v5600
        %v5609 = vsub.f32 %v5576, %v5601
        %v5610 = vsub.f32 %v5577, %v5602
        %v5611 = vsub.f32 %v5578, %v5603
        %v5612 = vsub.f32 %v5579, %v5604
        %v5613 = vmul.f32 %v5605, %v5605
        %v5614 = vmul.f32 %v5606, %v5606
        %v5615 = vmul.f32 %v5607, %v5607
        %v5616 = vmul.f32 %v5608, %v5608
        %v5617 = vmul.f32 %v5609, %v5609
        %v5618 = vmul.f32 %v5610, %v5610
        %v5619 = vmul.f32 %v5611, %v5611
        %v5620 = vmul.f32 %v5612, %v5612
        %5621 = vadd.xlane.f32.xlu0 %v5613
        %v5622 = vpop.xlane.xlu0 %5621
        %5623 = vadd.xlane.f32.xlu0 %v5614
        %v5624 = vpop.xlane.xlu0 %5623
        %5625 = vadd.xlane.f32.xlu0 %v5615
        %v5626 = vpop.xlane.xlu0 %5625
        %5627 = vadd.xlane.f32.xlu0 %v5616
        %v5628 = vpop.xlane.xlu0 %5627
        %5629 = vadd.xlane.f32.xlu0 %v5617
        %v5630 = vpop.xlane.xlu0 %5629
        %5631 = vadd.xlane.f32.xlu0 %v5618
        %v5632 = vpop.xlane.xlu0 %5631
        %5633 = vadd.xlane.f32.xlu0 %v5619
        %v5634 = vpop.xlane.xlu0 %5633
        %5635 = vadd.xlane.f32.xlu0 %v5620
        %v5636 = vpop.xlane.xlu0 %5635
        %v5637 = vmul.f32 %v5622, %v5596
        %v5638 = vmul.f32 %v5624, %v5596
        %v5639 = vmul.f32 %v5626, %v5596
        %v5640 = vmul.f32 %v5628, %v5596
        %v5641 = vmul.f32 %v5630, %v5596
        %v5642 = vmul.f32 %v5632, %v5596
        %v5643 = vmul.f32 %v5634, %v5596
        %v5644 = vmul.f32 %v5636, %v5596
        %v5645 = vadd.f32 %v5637, 1e-05
        %v5646 = vadd.f32 %v5638, 1e-05
        %v5647 = vadd.f32 %v5639, 1e-05
        %v5648 = vadd.f32 %v5640, 1e-05
        %v5649 = vadd.f32 %v5641, 1e-05
        %v5650 = vadd.f32 %v5642, 1e-05
        %v5651 = vadd.f32 %v5643, 1e-05
        %v5652 = vadd.f32 %v5644, 1e-05
        %v5653 = vrsqrt.pop %v5645
        %v5654 = vrsqrt.pop %v5646
        %v5655 = vrsqrt.pop %v5647
        %v5656 = vrsqrt.pop %v5648
        %v5657 = vrsqrt.pop %v5649
        %v5658 = vrsqrt.pop %v5650
        %v5659 = vrsqrt.pop %v5651
        %v5660 = vrsqrt.pop %v5652
        %v5661 = vmul.f32 %v5605, %v5653
        %v5662 = vmul.f32 %v5606, %v5654
        %v5663 = vmul.f32 %v5607, %v5655
        %v5664 = vmul.f32 %v5608, %v5656
        %v5665 = vmul.f32 %v5609, %v5657
        %v5666 = vmul.f32 %v5610, %v5658
        %v5667 = vmul.f32 %v5611, %v5659
        %v5668 = vmul.f32 %v5612, %v5660
        %v5670 = vlaneseq
        %v5671 = vshrl.u32 %v5670, 7
        %v5672 = vsub.s32 0, %v5671
        %v5673 = vrot.slane %v5570, %v5672
        %v5675 = vmul.f32 %v5661, %v5673
        %v5676 = vmul.f32 %v5662, %v5673
        %v5677 = vmul.f32 %v5663, %v5673
        %v5678 = vmul.f32 %v5664, %v5673
        %v5679 = vmul.f32 %v5665, %v5673
        %v5680 = vmul.f32 %v5666, %v5673
        %v5681 = vmul.f32 %v5667, %v5673
        %v5682 = vmul.f32 %v5668, %v5673
        %v5684 = vlaneseq
        %v5685 = vshrl.u32 %v5684, 7
        %v5686 = vsub.s32 0, %v5685
        %v5687 = vrot.slane %v5571, %v5686
        %v5689 = vadd.f32 %v5675, %v5687
        %v5690 = vadd.f32 %v5676, %v5687
        %v5691 = vadd.f32 %v5677, %v5687
        %v5692 = vadd.f32 %v5678, %v5687
        %v5693 = vadd.f32 %v5679, %v5687
        %v5694 = vadd.f32 %v5680, %v5687
        %v5695 = vadd.f32 %v5681, %v5687
        %v5696 = vadd.f32 %v5682, %v5687
        %5697 = vst [vmem:[%s338] sm:$0xff] %v5689
        %5698 = vst [vmem:[%s338 + $0x8] sm:$0xff] %v5690
        %5699 = vst [vmem:[%s338 + $0x10] sm:$0xff] %v5691
        %5700 = vst [vmem:[%s338 + $0x18] sm:$0xff] %v5692
        %5701 = vst [vmem:[%s338 + $0x20] sm:$0xff] %v5693
        %5702 = vst [vmem:[%s338 + $0x28] sm:$0xff] %v5694
        %5703 = vst [vmem:[%s338 + $0x30] sm:$0xff] %v5695
        %5704 = vst [vmem:[%s338 + $0x38] sm:$0xff] %v5696
        %s5705 = sand.u32 %s186, 1
        %s5706 = scalar_lea.sflag [#allocation4], %s5705
        %s5707 = sand.u32 %s186, 1
        %s5708 = smul.addr %s5707, 64
        %s5709 = scalar_lea.vmem [#allocation10], %s5708
        // Predicated region
        $region65: #{tpu_custom_call.1} parent=47 // pred_check
          %p5710 = pneg %p196
        $region66: #{tpu_custom_call.1} parent=47 // pred_check_branch
          %5712 = sbr.rel (%p5710) target = $region68
        $region67: #{tpu_custom_call.1} parent=47 // pred_region
          %s5713 = smul.u32 8, %s26
          %s5715 = ssub.s32 1024, 1024
          %5716 = vsyncadd %s5706, %s5715
          %s5717 = smul.addr %s5713, 128
          %s5718 = scalar_lea.hbm %s7, %s5717
          %s5719 = sshll.u32 %s5709, 4
          %s5720 = int_to_ptr.vmem [resolvable:$true] %s5719
          %5725 = dma.vmem_to_hbm [thread:$0]  %s5720, 1024, %s5718, %s5706, 128, 128, 8
        $region68: #{tpu_custom_call.1} parent=47 // pred_fallthru
          _
      $region48: #{tpu_custom_call.1} parent=5 // pred_fallthru
        _
      %p5726 = scmp.le.s32.totalorder 2, %s21
      // Predicated region
      $region69: #{tpu_custom_call.1} parent=5 // pred_check
        %p5727 = pneg %p5726
      $region70: #{tpu_custom_call.1} parent=5 // pred_check_branch
        %5729 = sbr.rel (%p5727) target = $region72
      $region71: #{tpu_custom_call.1} parent=5 // pred_region
        %s5730 = ssub.s32 %s21, 2
        // Predicated region
        $region73: #{tpu_custom_call.1} parent=71 // pred_check
          %p5731 = pneg %p202
        $region74: #{tpu_custom_call.1} parent=71 // pred_check_branch
          %5733 = sbr.rel (%p5731) target = $region76
        $region75: #{tpu_custom_call.1} parent=71 // pred_region
          %s5734 = sand.u32 %s187, 1
          %s5735 = scalar_lea.sflag [#allocation4], %s5734
          %s5736 = sand.u32 %s187, 1
          %s5737 = smul.addr %s5736, 64
          %s5738 = scalar_lea.vmem [#allocation10], %s5737
          %5739 = dma.done %s5735, 1024
        $region76: #{tpu_custom_call.1} parent=71 // pred_fallthru
          _
      $region72: #{tpu_custom_call.1} parent=5 // pred_fallthru
        _
    $region6: #{tpu_custom_call.1} parent=1 // loop_footer
      %s25 = sadd.s32 1, %s21
    $region7: #{tpu_custom_call.1} parent=1 // loop_footer_branch
      %20 = sbr.rel target = $region3
    $region8: #{tpu_custom_call.1} parent=1 // loop_exit
      _
    %5740 = vsyncpa [#allocation3], 1
    %s5741 = scalar_lea.sflag [#allocation3], 1
    %5742 = vsyncpa %s5741, 1
    %5743 = vsyncpa [#allocation6], 1
    %5744 = vsyncpa [#allocation9], 1
    %5745 = vsyncpa [#allocation4], 1
    %s5746 = scalar_lea.sflag [#allocation4], 1
    %5747 = vsyncpa %s5746, 1

</llo_original>
